<compile_context>
chip_gen: v7x
topology: tpu7x:2x2x1
jax: 0.10.0
libtpu: 0.0.40
codegen_flags: <defaults>
</compile_context>

<pallas_src>
import functools
import math

import numpy as np

import jax
import jax.numpy as jnp
from jax import lax
from jax.experimental import pallas as pl
from jax.experimental.pallas import tpu as pltpu


# ----------------------------- Pallas kernels --------------------------------

def _fused_mm_kernel(num_dots, has_res, do_relu, *refs):
    """out = act( sum_i x_i @ w_i + bias [+ residual] ), f32 accumulation."""
    o_ref = refs[-1]
    pos = 0
    acc = None
    for _ in range(num_dots):
        x_ref, w_ref = refs[pos], refs[pos + 1]
        pos += 2
        y = jnp.dot(x_ref[...], w_ref[...], preferred_element_type=jnp.float32)
        acc = y if acc is None else acc + y
    acc = acc + refs[pos][...]                 # folded-BN bias, f32, (1, tn)
    pos += 1
    if has_res:
        acc = acc + refs[pos][...].astype(jnp.float32)
        pos += 1
    if do_relu:
        acc = jnp.maximum(acc, 0.0)
    o_ref[...] = acc.astype(o_ref.dtype)


def _make_conv3x3_kernel(tap_plan, n_src, Ho, Wo, Cin, Cout):
    """3x3 conv as 9 accumulated matmuls over (dy, dx) taps, fully in-kernel."""
    def kernel(*refs):
        srcs = refs[:n_src]
        w_ref, b_ref, o_ref = refs[n_src], refs[n_src + 1], refs[n_src + 2]
        acc = jnp.zeros((Ho * Wo, Cout), jnp.float32)
        for t, (si, ro, co) in enumerate(tap_plan):
            patch = srcs[si][0, ro:ro + Ho, co:co + Wo, :]      # (Ho, Wo, Cin) bf16
            pmat = patch.reshape(Ho * Wo, Cin)
            wt = w_ref[t * Cin:(t + 1) * Cin, :]                # (Cin, Cout) bf16
            acc = acc + jnp.dot(pmat, wt, preferred_element_type=jnp.float32)
        y = jnp.maximum(acc + b_ref[...], 0.0)
        o_ref[0] = y.astype(o_ref.dtype)
    return kernel


# ----------------------------- tiling helpers ---------------------------------

def _row_tile(m, target):
    if m <= target:
        return m
    if m % 8:
        return m                               # uncommon fallback: one full block
    tm = target - (target % 8)
    while m % tm:
        tm -= 8
    return tm


def _col_tile(n, target=256):
    if n <= target or n % target:
        return n
    return target


def _vmem_limit(block_bytes):
    return int(min(max(4 * block_bytes, 32 * 1024 * 1024), 48 * 1024 * 1024))


# ----------------------------- kernel wrappers --------------------------------

def fused_matmul_bn_act(operands, bias, residual=None, relu=True,
                        out_dtype=jnp.bfloat16, tm_target=512, tn_target=256):
    """act( sum_i (x_i @ w_i) + bias [+ residual] ), row/column tiled.

    operands: list of (x (M, K_i), w (K_i, N)) pairs (bf16).
    bias: (N,) f32 folded-BN bias.  residual: optional (M, N).
    """
    M = operands[0][0].shape[0]
    N = operands[0][1].shape[1]
    tm = _row_tile(M, tm_target)
    tn = _col_tile(N, tn_target)
    grid = (pl.cdiv(M, tm), N // tn)

    in_specs, args = [], []
    block_bytes = 0
    flops = 0
    for x, w in operands:
        K = x.shape[1]
        in_specs.append(pl.BlockSpec((tm, K), lambda i, j: (i, 0)))
        in_specs.append(pl.BlockSpec((K, tn), lambda i, j: (0, j)))
        args += [x, w]
        block_bytes += (tm * K + K * tn) * x.dtype.itemsize
        flops += 2 * M * K * N
    in_specs.append(pl.BlockSpec((1, tn), lambda i, j: (0, j)))
    args.append(bias.reshape(1, N).astype(jnp.float32))
    block_bytes += tn * 4
    if residual is not None:
        in_specs.append(pl.BlockSpec((tm, tn), lambda i, j: (i, j)))
        args.append(residual)
        block_bytes += tm * tn * residual.dtype.itemsize
    out_itemsize = np.dtype(out_dtype).itemsize
    block_bytes += tm * tn * out_itemsize

    bytes_accessed = (sum(x.size * x.dtype.itemsize + w.size * w.dtype.itemsize
                          for x, w in operands)
                      + (0 if residual is None
                         else residual.size * residual.dtype.itemsize)
                      + M * N * out_itemsize + N * 4)

    kernel = functools.partial(_fused_mm_kernel, len(operands),
                               residual is not None, relu)
    return pl.pallas_call(
        kernel,
        out_shape=jax.ShapeDtypeStruct((M, N), out_dtype),
        grid=grid,
        in_specs=in_specs,
        out_specs=pl.BlockSpec((tm, tn), lambda i, j: (i, j)),
        compiler_params=pltpu.CompilerParams(
            dimension_semantics=("parallel", "parallel"),
            vmem_limit_bytes=_vmem_limit(block_bytes)),
        cost_estimate=pl.CostEstimate(flops=int(flops), transcendentals=0,
                                      bytes_accessed=int(bytes_accessed)),
    )(*args)


def conv3x3_bn_relu(h_nhwc, w_folded, bias, stride):
    """3x3 / pad=1 / stride conv + folded-BN bias + ReLU, no HBM im2col.

    The 9 taps are accumulated inside one Pallas kernel.  For stride > 1 the
    padded map is pre-split into stride*stride spatial parity phases so every
    in-kernel read is a contiguous slice.  Returns (out (N, Ho*Wo, Cout) bf16,
    Ho, Wo).
    """
    N, H, W, Cin = h_nhwc.shape
    Cout = w_folded.shape[1]
    Ho = (H + 2 - 3) // stride + 1
    Wo = (W + 2 - 3) // stride + 1
    hp = jnp.pad(h_nhwc, ((0, 0), (1, 1), (1, 1), (0, 0)))

    if stride == 1:
        srcs = [hp]
        plan = [(0, dy, dx) for dy in range(3) for dx in range(3)]
    else:
        srcs = [hp[:, p::stride, q::stride, :]
                for p in range(stride) for q in range(stride)]
        plan = [((dy % stride) * stride + (dx % stride), dy // stride, dx // stride)
                for dy in range(3) for dx in range(3)]
        # Make sure every tap window fits inside its phase (pad at the far edge).
        need = [[0, 0] for _ in srcs]
        for si, ro, co in plan:
            need[si][0] = max(need[si][0], ro + Ho)
            need[si][1] = max(need[si][1], co + Wo)
        padded = []
        for i, s in enumerate(srcs):
            pr = max(0, need[i][0] - s.shape[1])
            pc = max(0, need[i][1] - s.shape[2])
            if pr or pc:
                s = jnp.pad(s, ((0, 0), (0, pr), (0, pc), (0, 0)))
            padded.append(s)
        srcs = padded

    kernel = _make_conv3x3_kernel(plan, len(srcs), Ho, Wo, Cin, Cout)
    src_specs = [pl.BlockSpec((1,) + s.shape[1:], lambda n: (n, 0, 0, 0))
                 for s in srcs]
    block_bytes = (sum(math.prod(s.shape[1:]) for s in srcs) * 2
                   + w_folded.size * 2 + Cout * 4 + Ho * Wo * Cout * 2)
    bytes_accessed = (sum(s.size * 2 for s in srcs) + w_folded.size * 2
                      + N * Ho * Wo * Cout * 2 + Cout * 4)

    out = pl.pallas_call(
        kernel,
        out_shape=jax.ShapeDtypeStruct((N, Ho * Wo, Cout), jnp.bfloat16),
        grid=(N,),
        in_specs=src_specs + [
            pl.BlockSpec(w_folded.shape, lambda n: (0, 0)),
            pl.BlockSpec((1, Cout), lambda n: (0, 0)),
        ],
        out_specs=pl.BlockSpec((1, Ho * Wo, Cout), lambda n: (n, 0, 0)),
        compiler_params=pltpu.CompilerParams(
            dimension_semantics=("parallel",),
            vmem_limit_bytes=_vmem_limit(block_bytes)),
        cost_estimate=pl.CostEstimate(
            flops=int(2 * N * Ho * Wo * 9 * Cin * Cout), transcendentals=0,
            bytes_accessed=int(bytes_accessed)),
    )(*srcs, w_folded, bias.reshape(1, Cout).astype(jnp.float32))
    return out, Ho, Wo


# ------------------------------- JAX glue -------------------------------------

def _fold_bn(gamma, beta, mean, var, eps=1e-5):
    scale = gamma / jnp.sqrt(var + eps)
    bias = beta - mean * scale
    return scale, bias


def init_bottleneck_params(key, in_channels, channels, expansion=4, stride=1):
    out_channels = expansion * channels
    ks = jax.random.split(key, 16)

    def bn_params(k, c):
        k1, k2, k3, k4 = jax.random.split(k, 4)
        gamma = jax.random.uniform(k1, (c,), minval=0.5, maxval=1.5)
        beta = 0.1 * jax.random.normal(k2, (c,))
        mean = 0.1 * jax.random.normal(k3, (c,))
        var = jax.random.uniform(k4, (c,), minval=0.5, maxval=1.5)
        return _fold_bn(gamma, beta, mean, var)

    p = {}
    # conv1: 1x1, in_channels -> channels  (stored as (K, N) matmul weights)
    p["w1"] = 0.1 * jax.random.normal(ks[0], (in_channels, channels))
    p["s1"], p["b1"] = bn_params(ks[1], channels)
    # conv2: 3x3, channels -> channels, stride; weight (9*C, C), rows = (dy, dx, cin)
    p["w2"] = 0.1 * jax.random.normal(ks[2], (9 * channels, channels))
    p["s2"], p["b2"] = bn_params(ks[3], channels)
    # conv3: 1x1, channels -> out_channels
    p["w3"] = 0.1 * jax.random.normal(ks[4], (channels, out_channels))
    p["s3"], p["b3"] = bn_params(ks[5], out_channels)
    if stride != 1 or in_channels != out_channels:
        p["ws"] = 0.1 * jax.random.normal(ks[6], (in_channels, out_channels))
        p["ss"], p["bs"] = bn_params(ks[7], out_channels)
    return p


def bottleneck_forward(x_nchw, params, stride):
    """Pallas implementation of Bottleneck.forward (inference BN).  NCHW in/out."""
    x = jnp.transpose(x_nchw, (0, 2, 3, 1)).astype(jnp.bfloat16)   # -> NHWC bf16
    N, H, W, Cin = x.shape
    C = params["w1"].shape[1]
    Cout = params["w3"].shape[1]

    # Fold BN scales into the conv weights (f32 precompute), then cast to bf16.
    w1 = (params["w1"] * params["s1"][None, :]).astype(jnp.bfloat16)
    w2 = (params["w2"] * params["s2"][None, :]).astype(jnp.bfloat16)
    w3 = (params["w3"] * params["s3"][None, :]).astype(jnp.bfloat16)
    b1 = params["b1"].astype(jnp.float32)
    b2 = params["b2"].astype(jnp.float32)
    b3 = params["b3"].astype(jnp.float32)

    # conv1 (1x1) + bn1 + relu
    h1 = fused_matmul_bn_act([(x.reshape(-1, Cin), w1)], b1, relu=True)
    h1 = h1.reshape(N, H, W, C)

    # conv2 (3x3, stride, pad=1) + bn2 + relu -- 9 taps accumulated in-kernel
    h2, Ho, Wo = conv3x3_bn_relu(h1, w2, b2, stride)
    h2 = h2.reshape(-1, C)

    # conv3 (1x1) + bn3 + shortcut + relu, fused into a single kernel
    if "ws" in params:
        ws = (params["ws"] * params["ss"][None, :]).astype(jnp.bfloat16)
        bsc = (params["b3"] + params["bs"]).astype(jnp.float32)
        # TODO(synk): read the strided shortcut input directly inside the fused
        # kernel (pl.ds(stride=...)) instead of materializing this XLA slice.
        xs = x[:, ::stride, ::stride, :].reshape(-1, Cin)
        out = fused_matmul_bn_act([(h2, w3), (xs, ws)], bsc, relu=True,
                                  out_dtype=jnp.float32)
    else:
        res = x.reshape(-1, Cin)          # identity: Cin == Cout, stride == 1
        out = fused_matmul_bn_act([(h2, w3)], b3, residual=res, relu=True,
                                  out_dtype=jnp.float32)

    out = out.reshape(N, Ho, Wo, Cout)
    return jnp.transpose(out, (0, 3, 1, 2))  # -> NCHW


# --------------------------- pure-JAX reference -------------------------------

def reference_forward(x_nchw, params, stride):
    x = jnp.transpose(x_nchw, (0, 2, 3, 1)).astype(jnp.float32)
    dn = ("NHWC", "HWIO", "NHWC")

    def conv(v, w_hwio, s, pad):
        return lax.conv_general_dilated(v, w_hwio, (s, s), pad,
                                        dimension_numbers=dn)

    Cin, C = params["w1"].shape
    Cout = params["w3"].shape[1]
    h = jax.nn.relu(conv(x, params["w1"].reshape(1, 1, Cin, C), 1,
                         [(0, 0), (0, 0)]) * params["s1"] + params["b1"])
    h = jax.nn.relu(conv(h, params["w2"].reshape(3, 3, C, C), stride,
                         [(1, 1), (1, 1)]) * params["s2"] + params["b2"])
    h = conv(h, params["w3"].reshape(1, 1, C, Cout), 1,
             [(0, 0), (0, 0)]) * params["s3"] + params["b3"]
    if "ws" in params:
        sc = conv(x, params["ws"].reshape(1, 1, Cin, Cout), stride,
                  [(0, 0), (0, 0)]) * params["ss"] + params["bs"]
    else:
        sc = x
    return jnp.transpose(jax.nn.relu(h + sc), (0, 3, 1, 2))


# ---------------------------------- main --------------------------------------

if __name__ == "__main__":
    key = jax.random.PRNGKey(0)
    k_x1, k_p1, k_x2, k_p2 = jax.random.split(key, 4)

    fwd = jax.jit(bottleneck_forward, static_argnums=2)

    # Case 1: projection shortcut (stride 2, channel expansion).
    in_c, ch, exp, stride = 8, 8, 4, 2
    x1 = jax.random.normal(k_x1, (2, in_c, 16, 16), dtype=jnp.float32)   # NCHW
    p1 = init_bottleneck_params(k_p1, in_c, ch, exp, stride)
    out1 = jax.block_until_ready(fwd(x1, p1, stride))
    ref1 = jax.block_until_ready(reference_forward(x1, p1, stride))
    assert out1.shape == ref1.shape == (2, exp * ch, 8, 8), out1.shape
    err1 = float(jnp.max(jnp.abs(out1 - ref1)))
    assert jnp.allclose(out1, ref1, atol=3e-2, rtol=3e-2), err1

    # Case 2: identity shortcut (stride 1, in_channels == expansion * channels).
    in_c, ch, exp, stride = 32, 8, 4, 1
    x2 = jax.random.normal(k_x2, (2, in_c, 16, 16), dtype=jnp.float32)
    p2 = init_bottleneck_params(k_p2, in_c, ch, exp, stride)
    out2 = jax.block_until_ready(fwd(x2, p2, stride))
    ref2 = jax.block_until_ready(reference_forward(x2, p2, stride))
    assert out2.shape == ref2.shape == (2, exp * ch, 16, 16), out2.shape
    err2 = float(jnp.max(jnp.abs(out2 - ref2)))
    assert jnp.allclose(out2, ref2, atol=3e-2, rtol=3e-2), err2

    print("KERNEL_OK")
</pallas_src>

<mosaic_0001>
module attributes {stable_mosaic.version = 11 : i64} {
  func.func @_fused_mm_kernel(%arg0: i32, %arg1: i32, %arg2: memref<512x8xbf16, #tpu.memory_space<vmem>>, %arg3: memref<8x8xbf16, #tpu.memory_space<vmem>>, %arg4: memref<1x8xf32, #tpu.memory_space<vmem>>, %arg5: memref<512x8xbf16, #tpu.memory_space<vmem>>) attributes {dimension_semantics = [#tpu.dimension_semantics<parallel>, #tpu.dimension_semantics<parallel>], iteration_bounds = array<i64: 1, 1>, scalar_prefetch = 0 : i64, scratch_operands = 0 : i64, tpu.core_type = #tpu.core_type<tc>, window_params = [{transform_indices = @transform_0, window_bounds = array<i64: 512, 8>}, {transform_indices = @transform_1, window_bounds = array<i64: 8, 8>}, {transform_indices = @transform_2, window_bounds = array<i64: 1, 8>}, {transform_indices = @transform_3, window_bounds = array<i64: 512, 8>}]} {
    %c0 = arith.constant 0 : index
    %c0_0 = arith.constant 0 : index
    %0 = vector.load %arg2[%c0, %c0_0] : memref<512x8xbf16, #tpu.memory_space<vmem>>, vector<512x8xbf16>
    %c0_1 = arith.constant 0 : index
    %c0_2 = arith.constant 0 : index
    %1 = vector.load %arg3[%c0_1, %c0_2] : memref<8x8xbf16, #tpu.memory_space<vmem>>, vector<8x8xbf16>
    %cst = arith.constant dense<0.000000e+00> : vector<512x8xf32>
    %2 = tpu.matmul %0, %1, %cst {dimension_numbers = #tpu.dot_dimension_numbers<[1], [0], [0], [1], [0, 0, 1, 1], [], []>} : vector<512x8xbf16>, vector<8x8xbf16>, vector<512x8xf32> -> vector<512x8xf32>
    %c0_3 = arith.constant 0 : index
    %c0_4 = arith.constant 0 : index
    %3 = vector.load %arg4[%c0_3, %c0_4] : memref<1x8xf32, #tpu.memory_space<vmem>>, vector<1x8xf32>
    %4 = vector.broadcast %3 : vector<1x8xf32> to vector<512x8xf32>
    %5 = arith.addf %2, %4 : vector<512x8xf32>
    %cst_5 = arith.constant 0.000000e+00 : f32
    %6 = vector.broadcast %cst_5 : f32 to vector<512x8xf32>
    %7 = arith.maximumf %5, %6 : vector<512x8xf32>
    %8 = arith.truncf %7 : vector<512x8xf32> to vector<512x8xbf16>
    %c0_6 = arith.constant 0 : index
    %c0_7 = arith.constant 0 : index
    %9 = vector.load %arg5[%c0_6, %c0_7] : memref<512x8xbf16, #tpu.memory_space<vmem>>, vector<512x8xbf16>
    tpu.vector_store %arg5[%c0_6, %c0_7], %8 {strides = array<i32>} : memref<512x8xbf16, #tpu.memory_space<vmem>>, vector<512x8xbf16>,
    return
  }
  func.func @transform_0(%arg0: i32, %arg1: i32) -> (i32, i32) {
    %c0_i32 = arith.constant 0 : i32
    %c0_i32_0 = arith.constant 0 : i32
    return %arg0, %c0_i32 : i32, i32
  }
  func.func @transform_1(%arg0: i32, %arg1: i32) -> (i32, i32) {
    %c0_i32 = arith.constant 0 : i32
    %c0_i32_0 = arith.constant 0 : i32
    return %c0_i32, %arg1 : i32, i32
  }
  func.func @transform_2(%arg0: i32, %arg1: i32) -> (i32, i32) {
    %c0_i32 = arith.constant 0 : i32
    %c0_i32_0 = arith.constant 0 : i32
    return %c0_i32, %arg1 : i32, i32
  }
  func.func @transform_3(%arg0: i32, %arg1: i32) -> (i32, i32) {
    %c0_i32 = arith.constant 0 : i32
    return %arg0, %arg1 : i32, i32
  }
}

module attributes {stable_mosaic.version = 11 : i64} {
  func.func @kernel(%arg0: i32, %arg1: memref<1x9x9x8xbf16, #tpu.memory_space<vmem>>, %arg2: memref<1x9x9x8xbf16, #tpu.memory_space<vmem>>, %arg3: memref<1x9x9x8xbf16, #tpu.memory_space<vmem>>, %arg4: memref<1x9x9x8xbf16, #tpu.memory_space<vmem>>, %arg5: memref<72x8xbf16, #tpu.memory_space<vmem>>, %arg6: memref<1x8xf32, #tpu.memory_space<vmem>>, %arg7: memref<1x64x8xbf16, #tpu.memory_space<vmem>>) attributes {dimension_semantics = [#tpu.dimension_semantics<parallel>], iteration_bounds = array<i64: 2>, scalar_prefetch = 0 : i64, scratch_operands = 0 : i64, tpu.core_type = #tpu.core_type<tc>, window_params = [{transform_indices = @transform_0, window_bounds = array<i64: 1, 9, 9, 8>}, {transform_indices = @transform_1, window_bounds = array<i64: 1, 9, 9, 8>}, {transform_indices = @transform_2, window_bounds = array<i64: 1, 9, 9, 8>}, {transform_indices = @transform_3, window_bounds = array<i64: 1, 9, 9, 8>}, {pipeline_mode = #tpu.pipeline_mode<synchronous>, transform_indices = @transform_4, window_bounds = array<i64: 72, 8>}, {pipeline_mode = #tpu.pipeline_mode<synchronous>, transform_indices = @transform_5, window_bounds = array<i64: 1, 8>}, {transform_indices = @transform_6, window_bounds = array<i64: 1, 64, 8>}]} {
    %cst = arith.constant 0.000000e+00 : f32
    %0 = vector.broadcast %cst : f32 to vector<64x8xf32>
    %c0 = arith.constant 0 : index
    %c0_0 = arith.constant 0 : index
    %c0_1 = arith.constant 0 : index
    %c0_2 = arith.constant 0 : index
    %1 = vector.load %arg1[%c0, %c0_0, %c0_1, %c0_2] : memref<1x9x9x8xbf16, #tpu.memory_space<vmem>>, vector<1x8x8x8xbf16>
    %2 = vector.shape_cast %1 : vector<1x8x8x8xbf16> to vector<8x8x8xbf16>
    %3 = vector.shape_cast %2 : vector<8x8x8xbf16> to vector<64x8xbf16>
    %c0_3 = arith.constant 0 : index
    %c0_4 = arith.constant 0 : index
    %4 = vector.load %arg5[%c0_3, %c0_4] : memref<72x8xbf16, #tpu.memory_space<vmem>>, vector<8x8xbf16>
    %cst_5 = arith.constant dense<0.000000e+00> : vector<64x8xf32>
    %5 = tpu.matmul %3, %4, %cst_5 {dimension_numbers = #tpu.dot_dimension_numbers<[1], [0], [0], [1], [0, 0, 1, 1], [], []>} : vector<64x8xbf16>, vector<8x8xbf16>, vector<64x8xf32> -> vector<64x8xf32>
    %6 = arith.addf %0, %5 : vector<64x8xf32>
    %c0_6 = arith.constant 0 : index
    %c0_7 = arith.constant 0 : index
    %c0_8 = arith.constant 0 : index
    %c0_9 = arith.constant 0 : index
    %7 = vector.load %arg2[%c0_6, %c0_7, %c0_8, %c0_9] : memref<1x9x9x8xbf16, #tpu.memory_space<vmem>>, vector<1x8x8x8xbf16>
    %8 = vector.shape_cast %7 : vector<1x8x8x8xbf16> to vector<8x8x8xbf16>
    %9 = vector.shape_cast %8 : vector<8x8x8xbf16> to vector<64x8xbf16>
    %c8 = arith.constant 8 : index
    %c0_10 = arith.constant 0 : index
    %10 = vector.load %arg5[%c8, %c0_10] : memref<72x8xbf16, #tpu.memory_space<vmem>>, vector<8x8xbf16>
    %cst_11 = arith.constant dense<0.000000e+00> : vector<64x8xf32>
    %11 = tpu.matmul %9, %10, %cst_11 {dimension_numbers = #tpu.dot_dimension_numbers<[1], [0], [0], [1], [0, 0, 1, 1], [], []>} : vector<64x8xbf16>, vector<8x8xbf16>, vector<64x8xf32> -> vector<64x8xf32>
    %12 = arith.addf %6, %11 : vector<64x8xf32>
    %c0_12 = arith.constant 0 : index
    %c0_13 = arith.constant 0 : index
    %c1 = arith.constant 1 : index
    %c0_14 = arith.constant 0 : index
    %13 = vector.load %arg1[%c0_12, %c0_13, %c1, %c0_14] : memref<1x9x9x8xbf16, #tpu.memory_space<vmem>>, vector<1x8x8x8xbf16>
    %14 = vector.shape_cast %13 : vector<1x8x8x8xbf16> to vector<8x8x8xbf16>
    %15 = vector.shape_cast %14 : vector<8x8x8xbf16> to vector<64x8xbf16>
    %c16 = arith.constant 16 : index
    %c0_15 = arith.constant 0 : index
    %16 = vector.load %arg5[%c16, %c0_15] : memref<72x8xbf16, #tpu.memory_space<vmem>>, vector<8x8xbf16>
    %cst_16 = arith.constant dense<0.000000e+00> : vector<64x8xf32>
    %17 = tpu.matmul %15, %16, %cst_16 {dimension_numbers = #tpu.dot_dimension_numbers<[1], [0], [0], [1], [0, 0, 1, 1], [], []>} : vector<64x8xbf16>, vector<8x8xbf16>, vector<64x8xf32> -> vector<64x8xf32>
    %18 = arith.addf %12, %17 : vector<64x8xf32>
    %c0_17 = arith.constant 0 : index
    %c0_18 = arith.constant 0 : index
    %c0_19 = arith.constant 0 : index
    %c0_20 = arith.constant 0 : index
    %19 = vector.load %arg3[%c0_17, %c0_18, %c0_19, %c0_20] : memref<1x9x9x8xbf16, #tpu.memory_space<vmem>>, vector<1x8x8x8xbf16>
    %20 = vector.shape_cast %19 : vector<1x8x8x8xbf16> to vector<8x8x8xbf16>
    %21 = vector.shape_cast %20 : vector<8x8x8xbf16> to vector<64x8xbf16>
    %c24 = arith.constant 24 : index
    %c0_21 = arith.constant 0 : index
    %22 = vector.load %arg5[%c24, %c0_21] : memref<72x8xbf16, #tpu.memory_space<vmem>>, vector<8x8xbf16>
    %cst_22 = arith.constant dense<0.000000e+00> : vector<64x8xf32>
    %23 = tpu.matmul %21, %22, %cst_22 {dimension_numbers = #tpu.dot_dimension_numbers<[1], [0], [0], [1], [0, 0, 1, 1], [], []>} : vector<64x8xbf16>, vector<8x8xbf16>, vector<64x8xf32> -> vector<64x8xf32>
    %24 = arith.addf %18, %23 : vector<64x8xf32>
    %c0_23 = arith.constant 0 : index
    %c0_24 = arith.constant 0 : index
    %c0_25 = arith.constant 0 : index
    %c0_26 = arith.constant 0 : index
    %25 = vector.load %arg4[%c0_23, %c0_24, %c0_25, %c0_26] : memref<1x9x9x8xbf16, #tpu.memory_space<vmem>>, vector<1x8x8x8xbf16>
    %26 = vector.shape_cast %25 : vector<1x8x8x8xbf16> to vector<8x8x8xbf16>
    %27 = vector.shape_cast %26 : vector<8x8x8xbf16> to vector<64x8xbf16>
    %c32 = arith.constant 32 : index
    %c0_27 = arith.constant 0 : index
    %28 = vector.load %arg5[%c32, %c0_27] : memref<72x8xbf16, #tpu.memory_space<vmem>>, vector<8x8xbf16>
    %cst_28 = arith.constant dense<0.000000e+00> : vector<64x8xf32>
    %29 = tpu.matmul %27, %28, %cst_28 {dimension_numbers = #tpu.dot_dimension_numbers<[1], [0], [0], [1], [0, 0, 1, 1], [], []>} : vector<64x8xbf16>, vector<8x8xbf16>, vector<64x8xf32> -> vector<64x8xf32>
    %30 = arith.addf %24, %29 : vector<64x8xf32>
    %c0_29 = arith.constant 0 : index
    %c0_30 = arith.constant 0 : index
    %c1_31 = arith.constant 1 : index
    %c0_32 = arith.constant 0 : index
    %31 = vector.load %arg3[%c0_29, %c0_30, %c1_31, %c0_32] : memref<1x9x9x8xbf16, #tpu.memory_space<vmem>>, vector<1x8x8x8xbf16>
    %32 = vector.shape_cast %31 : vector<1x8x8x8xbf16> to vector<8x8x8xbf16>
    %33 = vector.shape_cast %32 : vector<8x8x8xbf16> to vector<64x8xbf16>
    %c40 = arith.constant 40 : index
    %c0_33 = arith.constant 0 : index
    %34 = vector.load %arg5[%c40, %c0_33] : memref<72x8xbf16, #tpu.memory_space<vmem>>, vector<8x8xbf16>
    %cst_34 = arith.constant dense<0.000000e+00> : vector<64x8xf32>
    %35 = tpu.matmul %33, %34, %cst_34 {dimension_numbers = #tpu.dot_dimension_numbers<[1], [0], [0], [1], [0, 0, 1, 1], [], []>} : vector<64x8xbf16>, vector<8x8xbf16>, vector<64x8xf32> -> vector<64x8xf32>
    %36 = arith.addf %30, %35 : vector<64x8xf32>
    %c0_35 = arith.constant 0 : index
    %c1_36 = arith.constant 1 : index
    %c0_37 = arith.constant 0 : index
    %c0_38 = arith.constant 0 : index
    %37 = vector.load %arg1[%c0_35, %c1_36, %c0_37, %c0_38] : memref<1x9x9x8xbf16, #tpu.memory_space<vmem>>, vector<1x8x8x8xbf16>
    %38 = vector.shape_cast %37 : vector<1x8x8x8xbf16> to vector<8x8x8xbf16>
    %39 = vector.shape_cast %38 : vector<8x8x8xbf16> to vector<64x8xbf16>
    %c48 = arith.constant 48 : index
    %c0_39 = arith.constant 0 : index
    %40 = vector.load %arg5[%c48, %c0_39] : memref<72x8xbf16, #tpu.memory_space<vmem>>, vector<8x8xbf16>
    %cst_40 = arith.constant dense<0.000000e+00> : vector<64x8xf32>
    %41 = tpu.matmul %39, %40, %cst_40 {dimension_numbers = #tpu.dot_dimension_numbers<[1], [0], [0], [1], [0, 0, 1, 1], [], []>} : vector<64x8xbf16>, vector<8x8xbf16>, vector<64x8xf32> -> vector<64x8xf32>
    %42 = arith.addf %36, %41 : vector<64x8xf32>
    %c0_41 = arith.constant 0 : index
    %c1_42 = arith.constant 1 : index
    %c0_43 = arith.constant 0 : index
    %c0_44 = arith.constant 0 : index
    %43 = vector.load %arg2[%c0_41, %c1_42, %c0_43, %c0_44] : memref<1x9x9x8xbf16, #tpu.memory_space<vmem>>, vector<1x8x8x8xbf16>
    %44 = vector.shape_cast %43 : vector<1x8x8x8xbf16> to vector<8x8x8xbf16>
    %45 = vector.shape_cast %44 : vector<8x8x8xbf16> to vector<64x8xbf16>
    %c56 = arith.constant 56 : index
    %c0_45 = arith.constant 0 : index
    %46 = vector.load %arg5[%c56, %c0_45] : memref<72x8xbf16, #tpu.memory_space<vmem>>, vector<8x8xbf16>
    %cst_46 = arith.constant dense<0.000000e+00> : vector<64x8xf32>
    %47 = tpu.matmul %45, %46, %cst_46 {dimension_numbers = #tpu.dot_dimension_numbers<[1], [0], [0], [1], [0, 0, 1, 1], [], []>} : vector<64x8xbf16>, vector<8x8xbf16>, vector<64x8xf32> -> vector<64x8xf32>
    %48 = arith.addf %42, %47 : vector<64x8xf32>
    %c0_47 = arith.constant 0 : index
    %c1_48 = arith.constant 1 : index
    %c1_49 = arith.constant 1 : index
    %c0_50 = arith.constant 0 : index
    %49 = vector.load %arg1[%c0_47, %c1_48, %c1_49, %c0_50] : memref<1x9x9x8xbf16, #tpu.memory_space<vmem>>, vector<1x8x8x8xbf16>
    %50 = vector.shape_cast %49 : vector<1x8x8x8xbf16> to vector<8x8x8xbf16>
    %51 = vector.shape_cast %50 : vector<8x8x8xbf16> to vector<64x8xbf16>
    %c64 = arith.constant 64 : index
    %c0_51 = arith.constant 0 : index
    %52 = vector.load %arg5[%c64, %c0_51] : memref<72x8xbf16, #tpu.memory_space<vmem>>, vector<8x8xbf16>
    %cst_52 = arith.constant dense<0.000000e+00> : vector<64x8xf32>
    %53 = tpu.matmul %51, %52, %cst_52 {dimension_numbers = #tpu.dot_dimension_numbers<[1], [0], [0], [1], [0, 0, 1, 1], [], []>} : vector<64x8xbf16>, vector<8x8xbf16>, vector<64x8xf32> -> vector<64x8xf32>
    %54 = arith.addf %48, %53 : vector<64x8xf32>
    %c0_53 = arith.constant 0 : index
    %c0_54 = arith.constant 0 : index
    %55 = vector.load %arg6[%c0_53, %c0_54] : memref<1x8xf32, #tpu.memory_space<vmem>>, vector<1x8xf32>
    %56 = vector.broadcast %55 : vector<1x8xf32> to vector<64x8xf32>
    %57 = arith.addf %54, %56 : vector<64x8xf32>
    %cst_55 = arith.constant 0.000000e+00 : f32
    %58 = vector.broadcast %cst_55 : f32 to vector<64x8xf32>
    %59 = arith.maximumf %57, %58 : vector<64x8xf32>
    %60 = arith.truncf %59 : vector<64x8xf32> to vector<64x8xbf16>
    %c0_56 = arith.constant 0 : index
    %c0_57 = arith.constant 0 : index
    %c0_58 = arith.constant 0 : index
    %61 = vector.load %arg7[%c0_56, %c0_57, %c0_58] : memref<1x64x8xbf16, #tpu.memory_space<vmem>>, vector<1x64x8xbf16>
    %62 = vector.shape_cast %61 : vector<1x64x8xbf16> to vector<64x8xbf16>
    %63 = vector.shape_cast %60 : vector<64x8xbf16> to vector<1x64x8xbf16>
    tpu.vector_store %arg7[%c0_56, %c0_57, %c0_58], %63 {strides = array<i32>} : memref<1x64x8xbf16, #tpu.memory_space<vmem>>, vector<1x64x8xbf16>,
    return
  }
  func.func @transform_0(%arg0: i32) -> (i32, i32, i32, i32) {
    %c0_i32 = arith.constant 0 : i32
    %c0_i32_0 = arith.constant 0 : i32
    %c0_i32_1 = arith.constant 0 : i32
    %c0_i32_2 = arith.constant 0 : i32
    return %arg0, %c0_i32, %c0_i32_0, %c0_i32_1 : i32, i32, i32, i32
  }
  func.func @transform_1(%arg0: i32) -> (i32, i32, i32, i32) {
    %c0_i32 = arith.constant 0 : i32
    %c0_i32_0 = arith.constant 0 : i32
    %c0_i32_1 = arith.constant 0 : i32
    %c0_i32_2 = arith.constant 0 : i32
    return %arg0, %c0_i32, %c0_i32_0, %c0_i32_1 : i32, i32, i32, i32
  }
  func.func @transform_2(%arg0: i32) -> (i32, i32, i32, i32) {
    %c0_i32 = arith.constant 0 : i32
    %c0_i32_0 = arith.constant 0 : i32
    %c0_i32_1 = arith.constant 0 : i32
    %c0_i32_2 = arith.constant 0 : i32
    return %arg0, %c0_i32, %c0_i32_0, %c0_i32_1 : i32, i32, i32, i32
  }
  func.func @transform_3(%arg0: i32) -> (i32, i32, i32, i32) {
    %c0_i32 = arith.constant 0 : i32
    %c0_i32_0 = arith.constant 0 : i32
    %c0_i32_1 = arith.constant 0 : i32
    %c0_i32_2 = arith.constant 0 : i32
    return %arg0, %c0_i32, %c0_i32_0, %c0_i32_1 : i32, i32, i32, i32
  }
  func.func @transform_4(%arg0: i32) -> (i32, i32) {
    %c0_i32 = arith.constant 0 : i32
    %c0_i32_0 = arith.constant 0 : i32
    %c0_i32_1 = arith.constant 0 : i32
    return %c0_i32, %c0_i32_0 : i32, i32
  }
  func.func @transform_5(%arg0: i32) -> (i32, i32) {
    %c0_i32 = arith.constant 0 : i32
    %c0_i32_0 = arith.constant 0 : i32
    %c0_i32_1 = arith.constant 0 : i32
    return %c0_i32, %c0_i32_0 : i32, i32
  }
  func.func @transform_6(%arg0: i32) -> (i32, i32, i32) {
    %c0_i32 = arith.constant 0 : i32
    %c0_i32_0 = arith.constant 0 : i32
    %c0_i32_1 = arith.constant 0 : i32
    return %arg0, %c0_i32, %c0_i32_0 : i32, i32, i32
  }
}

module attributes {stable_mosaic.version = 11 : i64} {
  func.func @_fused_mm_kernel(%arg0: i32, %arg1: i32, %arg2: memref<128x8xbf16, #tpu.memory_space<vmem>>, %arg3: memref<8x32xbf16, #tpu.memory_space<vmem>>, %arg4: memref<128x8xbf16, #tpu.memory_space<vmem>>, %arg5: memref<8x32xbf16, #tpu.memory_space<vmem>>, %arg6: memref<1x32xf32, #tpu.memory_space<vmem>>, %arg7: memref<128x32xf32, #tpu.memory_space<vmem>>) attributes {dimension_semantics = [#tpu.dimension_semantics<parallel>, #tpu.dimension_semantics<parallel>], iteration_bounds = array<i64: 1, 1>, scalar_prefetch = 0 : i64, scratch_operands = 0 : i64, tpu.core_type = #tpu.core_type<tc>, window_params = [{transform_indices = @transform_0, window_bounds = array<i64: 128, 8>}, {transform_indices = @transform_1, window_bounds = array<i64: 8, 32>}, {transform_indices = @transform_2, window_bounds = array<i64: 128, 8>}, {transform_indices = @transform_3, window_bounds = array<i64: 8, 32>}, {transform_indices = @transform_4, window_bounds = array<i64: 1, 32>}, {transform_indices = @transform_5, window_bounds = array<i64: 128, 32>}]} {
    %c0 = arith.constant 0 : index
    %c0_0 = arith.constant 0 : index
    %0 = vector.load %arg2[%c0, %c0_0] : memref<128x8xbf16, #tpu.memory_space<vmem>>, vector<128x8xbf16>
    %c0_1 = arith.constant 0 : index
    %c0_2 = arith.constant 0 : index
    %1 = vector.load %arg3[%c0_1, %c0_2] : memref<8x32xbf16, #tpu.memory_space<vmem>>, vector<8x32xbf16>
    %cst = arith.constant dense<0.000000e+00> : vector<128x32xf32>
    %2 = tpu.matmul %0, %1, %cst {dimension_numbers = #tpu.dot_dimension_numbers<[1], [0], [0], [1], [0, 0, 1, 1], [], []>} : vector<128x8xbf16>, vector<8x32xbf16>, vector<128x32xf32> -> vector<128x32xf32>
    %c0_3 = arith.constant 0 : index
    %c0_4 = arith.constant 0 : index
    %3 = vector.load %arg4[%c0_3, %c0_4] : memref<128x8xbf16, #tpu.memory_space<vmem>>, vector<128x8xbf16>
    %c0_5 = arith.constant 0 : index
    %c0_6 = arith.constant 0 : index
    %4 = vector.load %arg5[%c0_5, %c0_6] : memref<8x32xbf16, #tpu.memory_space<vmem>>, vector<8x32xbf16>
    %cst_7 = arith.constant dense<0.000000e+00> : vector<128x32xf32>
    %5 = tpu.matmul %3, %4, %cst_7 {dimension_numbers = #tpu.dot_dimension_numbers<[1], [0], [0], [1], [0, 0, 1, 1], [], []>} : vector<128x8xbf16>, vector<8x32xbf16>, vector<128x32xf32> -> vector<128x32xf32>
    %6 = arith.addf %2, %5 : vector<128x32xf32>
    %c0_8 = arith.constant 0 : index
    %c0_9 = arith.constant 0 : index
    %7 = vector.load %arg6[%c0_8, %c0_9] : memref<1x32xf32, #tpu.memory_space<vmem>>, vector<1x32xf32>
    %8 = vector.broadcast %7 : vector<1x32xf32> to vector<128x32xf32>
    %9 = arith.addf %6, %8 : vector<128x32xf32>
    %cst_10 = arith.constant 0.000000e+00 : f32
    %10 = vector.broadcast %cst_10 : f32 to vector<128x32xf32>
    %11 = arith.maximumf %9, %10 : vector<128x32xf32>
    %c0_11 = arith.constant 0 : index
    %c0_12 = arith.constant 0 : index
    %12 = vector.load %arg7[%c0_11, %c0_12] : memref<128x32xf32, #tpu.memory_space<vmem>>, vector<128x32xf32>
    tpu.vector_store %arg7[%c0_11, %c0_12], %11 {strides = array<i32>} : memref<128x32xf32, #tpu.memory_space<vmem>>, vector<128x32xf32>,
    return
  }
  func.func @transform_0(%arg0: i32, %arg1: i32) -> (i32, i32) {
    %c0_i32 = arith.constant 0 : i32
    %c0_i32_0 = arith.constant 0 : i32
    return %arg0, %c0_i32 : i32, i32
  }
  func.func @transform_1(%arg0: i32, %arg1: i32) -> (i32, i32) {
    %c0_i32 = arith.constant 0 : i32
    %c0_i32_0 = arith.constant 0 : i32
    return %c0_i32, %arg1 : i32, i32
  }
  func.func @transform_2(%arg0: i32, %arg1: i32) -> (i32, i32) {
    %c0_i32 = arith.constant 0 : i32
    %c0_i32_0 = arith.constant 0 : i32
    return %arg0, %c0_i32 : i32, i32
  }
  func.func @transform_3(%arg0: i32, %arg1: i32) -> (i32, i32) {
    %c0_i32 = arith.constant 0 : i32
    %c0_i32_0 = arith.constant 0 : i32
    return %c0_i32, %arg1 : i32, i32
  }
  func.func @transform_4(%arg0: i32, %arg1: i32) -> (i32, i32) {
    %c0_i32 = arith.constant 0 : i32
    %c0_i32_0 = arith.constant 0 : i32
    return %c0_i32, %arg1 : i32, i32
  }
  func.func @transform_5(%arg0: i32, %arg1: i32) -> (i32, i32) {
    %c0_i32 = arith.constant 0 : i32
    return %arg0, %arg1 : i32, i32
  }
}

</mosaic_0001>

<llo_original>
// kernel: bottleneck_forward.5
$region0: #{bottleneck_forward.5}
  #allocation0 [shape = 'u32[]', space=smem, size = 0x4, offset = 0x4, fixed_abs, tag = 'smem constant byte address 0x4 - core index']
  #allocation1 [shape = 'u32[144,128]{1,0:T(1,128)}', space=vmem, size = 0x12000, scoped, tag = 'internal scratch']
  %s0 = inlined_call_operand.vmem [shape: bf16[128,8], index: 0, kind: input, shape index: {}]
  %s1 = inlined_call_operand.vmem [shape: bf16[8,32], index: 1, kind: input, shape index: {}]
  %s2 = inlined_call_operand.vmem [shape: bf16[128,8], index: 2, kind: input, shape index: {}]
  %s3 = inlined_call_operand.vmem [shape: bf16[8,32], index: 3, kind: input, shape index: {}]
  %s4 = inlined_call_operand.vmem [shape: f32[1,32], index: 4, kind: input, shape index: {}]
  %s5 = inlined_call_operand.hbm [shape: f32[128,32], index: 5, kind: output, shape index: {}]
  %s6 = sld [smem:[#allocation0]]
  $region30: #{bottleneck_forward.5} parent=0
    _
  %s8 = ssub.s32 1, %s6
  %s9 = scalar_select 0, %s8, %s6
  $region1: #{bottleneck_forward.5} parent=0
    #allocation2 [shape = 'u8[65536]{0}', space=vmem, size = 0x10000, scoped, tag = 'output window, operand 0, single buffered']
    #allocation3 [shape = 's32[1]{0}', space=sflag, size = 0x4, scoped, tag = 'scoped memory for bottleneck_forward.5']
    %10 = vsyncpa [#allocation3], 0
    // Predicated region
    $region2: #{bottleneck_forward.5} parent=1 // pred_check
      _
    $region3: #{bottleneck_forward.5} parent=1 // pred_check_branch
      %12 = sbr.rel (0) target = $region5
    $region4: #{bottleneck_forward.5} parent=1 // pred_region
      _
    $region5: #{bottleneck_forward.5} parent=1 // pred_fallthru
      _
    // Predicated region
    $region6: #{bottleneck_forward.5} parent=1 // pred_check
      _
    $region7: #{bottleneck_forward.5} parent=1 // pred_check_branch
      %14 = sbr.rel (0) target = $region9
    $region8: #{bottleneck_forward.5} parent=1 // pred_region
      _
    $region9: #{bottleneck_forward.5} parent=1 // pred_fallthru
      _
    // Predicated region
    $region10: #{bottleneck_forward.5} parent=1 // pred_check
      _
    $region11: #{bottleneck_forward.5} parent=1 // pred_check_branch
      %16 = sbr.rel (0) target = $region13
    $region12: #{bottleneck_forward.5} parent=1 // pred_region
      _
    $region13: #{bottleneck_forward.5} parent=1 // pred_fallthru
      _
    // Predicated region
    $region14: #{bottleneck_forward.5} parent=1 // pred_check
      _
    $region15: #{bottleneck_forward.5} parent=1 // pred_check_branch
      %18 = sbr.rel (0) target = $region17
    $region16: #{bottleneck_forward.5} parent=1 // pred_region
      _
    $region17: #{bottleneck_forward.5} parent=1 // pred_fallthru
      _
    // Predicated region
    $region18: #{bottleneck_forward.5} parent=1 // pred_check
      _
    $region19: #{bottleneck_forward.5} parent=1 // pred_check_branch
      %20 = sbr.rel (0) target = $region21
    $region20: #{bottleneck_forward.5} parent=1 // pred_region
      _
    $region21: #{bottleneck_forward.5} parent=1 // pred_fallthru
      _
    %v22 = vld [vmem:[%s0] sm:$0xf]
    %v23 = vld [vmem:[%s0 + $0x4] sm:$0xf]
    %v24 = vld [vmem:[%s0 + $0x8] sm:$0xf]
    %v25 = vld [vmem:[%s0 + $0xc] sm:$0xf]
    %v26 = vld [vmem:[%s0 + $0x10] sm:$0xf]
    %v27 = vld [vmem:[%s0 + $0x14] sm:$0xf]
    %v28 = vld [vmem:[%s0 + $0x18] sm:$0xf]
    %v29 = vld [vmem:[%s0 + $0x1c] sm:$0xf]
    %v30 = vld [vmem:[%s0 + $0x20] sm:$0xf]
    %v31 = vld [vmem:[%s0 + $0x24] sm:$0xf]
    %v32 = vld [vmem:[%s0 + $0x28] sm:$0xf]
    %v33 = vld [vmem:[%s0 + $0x2c] sm:$0xf]
    %v34 = vld [vmem:[%s0 + $0x30] sm:$0xf]
    %v35 = vld [vmem:[%s0 + $0x34] sm:$0xf]
    %v36 = vld [vmem:[%s0 + $0x38] sm:$0xf]
    %v37 = vld [vmem:[%s0 + $0x3c] sm:$0xf]
    %v38 = vld [vmem:[%s1] sm:$0xf]
    %v39 = vld [vmem:[%s2] sm:$0xf]
    %v40 = vld [vmem:[%s2 + $0x4] sm:$0xf]
    %v41 = vld [vmem:[%s2 + $0x8] sm:$0xf]
    %v42 = vld [vmem:[%s2 + $0xc] sm:$0xf]
    %v43 = vld [vmem:[%s2 + $0x10] sm:$0xf]
    %v44 = vld [vmem:[%s2 + $0x14] sm:$0xf]
    %v45 = vld [vmem:[%s2 + $0x18] sm:$0xf]
    %v46 = vld [vmem:[%s2 + $0x1c] sm:$0xf]
    %v47 = vld [vmem:[%s2 + $0x20] sm:$0xf]
    %v48 = vld [vmem:[%s2 + $0x24] sm:$0xf]
    %v49 = vld [vmem:[%s2 + $0x28] sm:$0xf]
    %v50 = vld [vmem:[%s2 + $0x2c] sm:$0xf]
    %v51 = vld [vmem:[%s2 + $0x30] sm:$0xf]
    %v52 = vld [vmem:[%s2 + $0x34] sm:$0xf]
    %v53 = vld [vmem:[%s2 + $0x38] sm:$0xf]
    %v54 = vld [vmem:[%s2 + $0x3c] sm:$0xf]
    %v55 = vld [vmem:[%s3] sm:$0xf]
    %v72 = vunpack.c.l.b16 %v39
    %v73 = vunpack.c.l.b16 %v40
    %v74 = vunpack.c.l.b16 %v41
    %v75 = vunpack.c.l.b16 %v42
    %v76 = vunpack.c.l.b16 %v43
    %v77 = vunpack.c.l.b16 %v44
    %v78 = vunpack.c.l.b16 %v45
    %v79 = vunpack.c.l.b16 %v46
    %v80 = vunpack.c.l.b16 %v47
    %v81 = vunpack.c.l.b16 %v48
    %v82 = vunpack.c.l.b16 %v49
    %v83 = vunpack.c.l.b16 %v50
    %v84 = vunpack.c.l.b16 %v51
    %v85 = vunpack.c.l.b16 %v52
    %v86 = vunpack.c.l.b16 %v53
    %v87 = vunpack.c.l.b16 %v54
    %v88 = vpack.c.b16 %v73, %v72
    %v89 = vpack.c.b16 %v75, %v74
    %v90 = vpack.c.b16 %v77, %v76
    %v91 = vpack.c.b16 %v79, %v78
    %v92 = vpack.c.b16 %v81, %v80
    %v93 = vpack.c.b16 %v83, %v82
    %v94 = vpack.c.b16 %v85, %v84
    %v95 = vpack.c.b16 %v87, %v86
    %vm96 = vcmask 64512
    %v98 = vsel %vm96, %v88, 0
    %v101 = vsel %vm96, %v89, 0
    %v104 = vsel %vm96, %v90, 0
    %v107 = vsel %vm96, %v91, 0
    %v110 = vsel %vm96, %v92, 0
    %v113 = vsel %vm96, %v93, 0
    %v116 = vsel %vm96, %v94, 0
    %v119 = vsel %vm96, %v95, 0
    %vm121 = vcmask 1043456
    %v123 = vsel %vm121, %v55, 0
    %125 = vmatprep.subr.bf16.mxu0 0
    %126 = vmatpush1.bf16.msra.mxu0 %v123
    %127 = vmatprep.subr.bf16.mxu0 0
    %128 = vmatpush1.bf16.msra.mxu0 0
    %129 = vmatprep.subr.bf16.mxu0 0
    %130 = vmatpush1.bf16.msra.mxu0 0
    %131 = vmatprep.subr.bf16.mxu0 0
    %132 = vmatpush1.bf16.msra.mxu0 0
    %133 = vmatprep.subr.bf16.mxu0 0
    %134 = vmatpush1.bf16.msra.mxu0 0
    %135 = vmatprep.subr.bf16.mxu0 0
    %136 = vmatpush1.bf16.msra.mxu0 0
    %137 = vmatprep.subr.bf16.mxu0 0
    %138 = vmatpush1.bf16.msra.mxu0 0
    %139 = vmatprep.subr.bf16.mxu0 0
    %140 = vmatpush1.bf16.msra.mxu0 0
    %141 = vmatprep.subr.bf16.mxu0 0
    %142 = vmatpush1.bf16.msra.mxu0 0
    %143 = vmatprep.subr.bf16.mxu0 0
    %144 = vmatpush1.bf16.msra.mxu0 0
    %145 = vmatprep.subr.bf16.mxu0 0
    %146 = vmatpush1.bf16.msra.mxu0 0
    %147 = vmatprep.subr.bf16.mxu0 0
    %148 = vmatpush1.bf16.msra.mxu0 0
    %149 = vmatprep.subr.bf16.mxu0 0
    %150 = vmatpush1.bf16.msra.mxu0 0
    %151 = vmatprep.subr.bf16.mxu0 0
    %152 = vmatpush1.bf16.msra.mxu0 0
    %153 = vmatprep.subr.bf16.mxu0 0
    %154 = vmatpush1.bf16.msra.mxu0 0
    %155 = vmatprep.subr.bf16.mxu0 0
    %156 = vmatpush1.bf16.msra.mxu0 0
    %157 = vmatprep.mubr.bf16.mxu0 0
    %158 = vmatmul.mubr.bf16.gmra.mrb[0].mxu0 %v98
    %v159 = vpop.f32.mrb[0].mxu0
    %v160 = vadd.f32 0.0, %v159
    %v161 = vpop.f32.mrb[0].mxu0
    %v162 = vpop.f32.mrb[0].mxu0
    %v163 = vadd.f32 0.0, %v162
    %v164 = vpop.f32.mrb[0].mxu0
    %165 = vmatprep.mubr.bf16.mxu0 0
    %166 = vmatmul.mubr.bf16.gmra.mrb[0].mxu0 %v101
    %v167 = vpop.f32.mrb[0].mxu0
    %v168 = vadd.f32 0.0, %v167
    %v169 = vpop.f32.mrb[0].mxu0
    %v170 = vpop.f32.mrb[0].mxu0
    %v171 = vadd.f32 0.0, %v170
    %v172 = vpop.f32.mrb[0].mxu0
    %173 = vmatprep.mubr.bf16.mxu0 0
    %174 = vmatmul.mubr.bf16.gmra.mrb[0].mxu0 %v104
    %v175 = vpop.f32.mrb[0].mxu0
    %v176 = vadd.f32 0.0, %v175
    %v177 = vpop.f32.mrb[0].mxu0
    %v178 = vpop.f32.mrb[0].mxu0
    %v179 = vadd.f32 0.0, %v178
    %v180 = vpop.f32.mrb[0].mxu0
    %181 = vmatprep.mubr.bf16.mxu0 0
    %182 = vmatmul.mubr.bf16.gmra.mrb[0].mxu0 %v107
    %v183 = vpop.f32.mrb[0].mxu0
    %v184 = vadd.f32 0.0, %v183
    %v185 = vpop.f32.mrb[0].mxu0
    %v186 = vpop.f32.mrb[0].mxu0
    %v187 = vadd.f32 0.0, %v186
    %v188 = vpop.f32.mrb[0].mxu0
    %189 = vmatprep.mubr.bf16.mxu0 0
    %190 = vmatmul.mubr.bf16.gmra.mrb[0].mxu0 %v110
    %v191 = vpop.f32.mrb[0].mxu0
    %v192 = vadd.f32 0.0, %v191
    %v193 = vpop.f32.mrb[0].mxu0
    %v194 = vpop.f32.mrb[0].mxu0
    %v195 = vadd.f32 0.0, %v194
    %v196 = vpop.f32.mrb[0].mxu0
    %197 = vmatprep.mubr.bf16.mxu0 0
    %198 = vmatmul.mubr.bf16.gmra.mrb[0].mxu0 %v113
    %v199 = vpop.f32.mrb[0].mxu0
    %v200 = vadd.f32 0.0, %v199
    %v201 = vpop.f32.mrb[0].mxu0
    %v202 = vpop.f32.mrb[0].mxu0
    %v203 = vadd.f32 0.0, %v202
    %v204 = vpop.f32.mrb[0].mxu0
    %205 = vmatprep.mubr.bf16.mxu0 0
    %206 = vmatmul.mubr.bf16.gmra.mrb[0].mxu0 %v116
    %v207 = vpop.f32.mrb[0].mxu0
    %v208 = vadd.f32 0.0, %v207
    %v209 = vpop.f32.mrb[0].mxu0
    %v210 = vpop.f32.mrb[0].mxu0
    %v211 = vadd.f32 0.0, %v210
    %v212 = vpop.f32.mrb[0].mxu0
    %213 = vmatprep.mubr.bf16.mxu0 0
    %214 = vmatmul.mubr.bf16.gmra.mrb[0].mxu0 %v119
    %v215 = vpop.f32.mrb[0].mxu0
    %v216 = vadd.f32 0.0, %v215
    %v217 = vpop.f32.mrb[0].mxu0
    %v218 = vpop.f32.mrb[0].mxu0
    %v219 = vadd.f32 0.0, %v218
    %v220 = vpop.f32.mrb[0].mxu0
    %221 = vdwg.mxu0
    %v238 = vunpack.c.l.b16 %v22
    %v239 = vunpack.c.l.b16 %v23
    %v240 = vunpack.c.l.b16 %v24
    %v241 = vunpack.c.l.b16 %v25
    %v242 = vunpack.c.l.b16 %v26
    %v243 = vunpack.c.l.b16 %v27
    %v244 = vunpack.c.l.b16 %v28
    %v245 = vunpack.c.l.b16 %v29
    %v246 = vunpack.c.l.b16 %v30
    %v247 = vunpack.c.l.b16 %v31
    %v248 = vunpack.c.l.b16 %v32
    %v249 = vunpack.c.l.b16 %v33
    %v250 = vunpack.c.l.b16 %v34
    %v251 = vunpack.c.l.b16 %v35
    %v252 = vunpack.c.l.b16 %v36
    %v253 = vunpack.c.l.b16 %v37
    %v254 = vpack.c.b16 %v239, %v238
    %v255 = vpack.c.b16 %v241, %v240
    %v256 = vpack.c.b16 %v243, %v242
    %v257 = vpack.c.b16 %v245, %v244
    %v258 = vpack.c.b16 %v247, %v246
    %v259 = vpack.c.b16 %v249, %v248
    %v260 = vpack.c.b16 %v251, %v250
    %v261 = vpack.c.b16 %v253, %v252
    %v263 = vsel %vm96, %v254, 0
    %v266 = vsel %vm96, %v255, 0
    %v269 = vsel %vm96, %v256, 0
    %v272 = vsel %vm96, %v257, 0
    %v275 = vsel %vm96, %v258, 0
    %v278 = vsel %vm96, %v259, 0
    %v281 = vsel %vm96, %v260, 0
    %v284 = vsel %vm96, %v261, 0
    %v287 = vsel %vm121, %v38, 0
    %289 = vmatprep.subr.bf16.mxu0 0
    %290 = vmatpush1.bf16.msra.mxu0 %v287
    %291 = vmatprep.subr.bf16.mxu0 0
    %292 = vmatpush1.bf16.msra.mxu0 0
    %293 = vmatprep.subr.bf16.mxu0 0
    %294 = vmatpush1.bf16.msra.mxu0 0
    %295 = vmatprep.subr.bf16.mxu0 0
    %296 = vmatpush1.bf16.msra.mxu0 0
    %297 = vmatprep.subr.bf16.mxu0 0
    %298 = vmatpush1.bf16.msra.mxu0 0
    %299 = vmatprep.subr.bf16.mxu0 0
    %300 = vmatpush1.bf16.msra.mxu0 0
    %301 = vmatprep.subr.bf16.mxu0 0
    %302 = vmatpush1.bf16.msra.mxu0 0
    %303 = vmatprep.subr.bf16.mxu0 0
    %304 = vmatpush1.bf16.msra.mxu0 0
    %305 = vmatprep.subr.bf16.mxu0 0
    %306 = vmatpush1.bf16.msra.mxu0 0
    %307 = vmatprep.subr.bf16.mxu0 0
    %308 = vmatpush1.bf16.msra.mxu0 0
    %309 = vmatprep.subr.bf16.mxu0 0
    %310 = vmatpush1.bf16.msra.mxu0 0
    %311 = vmatprep.subr.bf16.mxu0 0
    %312 = vmatpush1.bf16.msra.mxu0 0
    %313 = vmatprep.subr.bf16.mxu0 0
    %314 = vmatpush1.bf16.msra.mxu0 0
    %315 = vmatprep.subr.bf16.mxu0 0
    %316 = vmatpush1.bf16.msra.mxu0 0
    %317 = vmatprep.subr.bf16.mxu0 0
    %318 = vmatpush1.bf16.msra.mxu0 0
    %319 = vmatprep.subr.bf16.mxu0 0
    %320 = vmatpush1.bf16.msra.mxu0 0
    %321 = vmatprep.mubr.bf16.mxu0 0
    %322 = vmatmul.mubr.bf16.gmra.mrb[0].mxu0 %v263
    %v323 = vpop.f32.mrb[0].mxu0
    %v324 = vadd.f32 %v160, %v323
    %v325 = vpop.f32.mrb[0].mxu0
    %v326 = vpop.f32.mrb[0].mxu0
    %v327 = vadd.f32 %v163, %v326
    %v328 = vpop.f32.mrb[0].mxu0
    %329 = vmatprep.mubr.bf16.mxu0 0
    %330 = vmatmul.mubr.bf16.gmra.mrb[0].mxu0 %v266
    %v331 = vpop.f32.mrb[0].mxu0
    %v332 = vadd.f32 %v168, %v331
    %v333 = vpop.f32.mrb[0].mxu0
    %v334 = vpop.f32.mrb[0].mxu0
    %v335 = vadd.f32 %v171, %v334
    %v336 = vpop.f32.mrb[0].mxu0
    %337 = vmatprep.mubr.bf16.mxu0 0
    %338 = vmatmul.mubr.bf16.gmra.mrb[0].mxu0 %v269
    %v339 = vpop.f32.mrb[0].mxu0
    %v340 = vadd.f32 %v176, %v339
    %v341 = vpop.f32.mrb[0].mxu0
    %v342 = vpop.f32.mrb[0].mxu0
    %v343 = vadd.f32 %v179, %v342
    %v344 = vpop.f32.mrb[0].mxu0
    %345 = vmatprep.mubr.bf16.mxu0 0
    %346 = vmatmul.mubr.bf16.gmra.mrb[0].mxu0 %v272
    %v347 = vpop.f32.mrb[0].mxu0
    %v348 = vadd.f32 %v184, %v347
    %v349 = vpop.f32.mrb[0].mxu0
    %v350 = vpop.f32.mrb[0].mxu0
    %v351 = vadd.f32 %v187, %v350
    %v352 = vpop.f32.mrb[0].mxu0
    %353 = vmatprep.mubr.bf16.mxu0 0
    %354 = vmatmul.mubr.bf16.gmra.mrb[0].mxu0 %v275
    %v355 = vpop.f32.mrb[0].mxu0
    %v356 = vadd.f32 %v192, %v355
    %v357 = vpop.f32.mrb[0].mxu0
    %v358 = vpop.f32.mrb[0].mxu0
    %v359 = vadd.f32 %v195, %v358
    %v360 = vpop.f32.mrb[0].mxu0
    %361 = vmatprep.mubr.bf16.mxu0 0
    %362 = vmatmul.mubr.bf16.gmra.mrb[0].mxu0 %v278
    %v363 = vpop.f32.mrb[0].mxu0
    %v364 = vadd.f32 %v200, %v363
    %v365 = vpop.f32.mrb[0].mxu0
    %v366 = vpop.f32.mrb[0].mxu0
    %v367 = vadd.f32 %v203, %v366
    %v368 = vpop.f32.mrb[0].mxu0
    %369 = vmatprep.mubr.bf16.mxu0 0
    %370 = vmatmul.mubr.bf16.gmra.mrb[0].mxu0 %v281
    %v371 = vpop.f32.mrb[0].mxu0
    %v372 = vadd.f32 %v208, %v371
    %v373 = vpop.f32.mrb[0].mxu0
    %v374 = vpop.f32.mrb[0].mxu0
    %v375 = vadd.f32 %v211, %v374
    %v376 = vpop.f32.mrb[0].mxu0
    %377 = vmatprep.mubr.bf16.mxu0 0
    %378 = vmatmul.mubr.bf16.gmra.mrb[0].mxu0 %v284
    %v379 = vpop.f32.mrb[0].mxu0
    %v380 = vadd.f32 %v216, %v379
    %v381 = vpop.f32.mrb[0].mxu0
    %v382 = vpop.f32.mrb[0].mxu0
    %v383 = vadd.f32 %v219, %v382
    %v384 = vpop.f32.mrb[0].mxu0
    %385 = vdwg.mxu0
    %v386 = vld [vmem:[%s4] sm:$0x1]
    %v388 = vlaneseq
    %v389 = vshrl.u32 %v388, 7
    %v390 = vsub.s32 0, %v389
    %v391 = vrot.slane %v386, %v390
    %v393 = vadd.f32 %v324, %v391
    %v394 = vadd.f32 %v327, %v391
    %v395 = vadd.f32 %v332, %v391
    %v396 = vadd.f32 %v335, %v391
    %v397 = vadd.f32 %v340, %v391
    %v398 = vadd.f32 %v343, %v391
    %v399 = vadd.f32 %v348, %v391
    %v400 = vadd.f32 %v351, %v391
    %v401 = vadd.f32 %v356, %v391
    %v402 = vadd.f32 %v359, %v391
    %v403 = vadd.f32 %v364, %v391
    %v404 = vadd.f32 %v367, %v391
    %v405 = vadd.f32 %v372, %v391
    %v406 = vadd.f32 %v375, %v391
    %v407 = vadd.f32 %v380, %v391
    %v408 = vadd.f32 %v383, %v391
    %v409 = vmax.f32 %v393, 0.0
    %v410 = vmax.f32 %v394, 0.0
    %v411 = vmax.f32 %v395, 0.0
    %v412 = vmax.f32 %v396, 0.0
    %v413 = vmax.f32 %v397, 0.0
    %v414 = vmax.f32 %v398, 0.0
    %v415 = vmax.f32 %v399, 0.0
    %v416 = vmax.f32 %v400, 0.0
    %v417 = vmax.f32 %v401, 0.0
    %v418 = vmax.f32 %v402, 0.0
    %v419 = vmax.f32 %v403, 0.0
    %v420 = vmax.f32 %v404, 0.0
    %v421 = vmax.f32 %v405, 0.0
    %v422 = vmax.f32 %v406, 0.0
    %v423 = vmax.f32 %v407, 0.0
    %v424 = vmax.f32 %v408, 0.0
    %vm425 = vcmask 261120
    %426 = vst.msk [vmem:[#allocation2] sm:$0xff] %vm425, %v409
    %427 = vst.msk [vmem:[#allocation2 + $0x8] sm:$0xff] %vm425, %v410
    %428 = vst.msk [vmem:[#allocation2 + $0x10] sm:$0xff] %vm425, %v411
    %429 = vst.msk [vmem:[#allocation2 + $0x18] sm:$0xff] %vm425, %v412
    %430 = vst.msk [vmem:[#allocation2 + $0x20] sm:$0xff] %vm425, %v413
    %431 = vst.msk [vmem:[#allocation2 + $0x28] sm:$0xff] %vm425, %v414
    %432 = vst.msk [vmem:[#allocation2 + $0x30] sm:$0xff] %vm425, %v415
    %433 = vst.msk [vmem:[#allocation2 + $0x38] sm:$0xff] %vm425, %v416
    %434 = vst.msk [vmem:[#allocation2 + $0x40] sm:$0xff] %vm425, %v417
    %435 = vst.msk [vmem:[#allocation2 + $0x48] sm:$0xff] %vm425, %v418
    %436 = vst.msk [vmem:[#allocation2 + $0x50] sm:$0xff] %vm425, %v419
    %437 = vst.msk [vmem:[#allocation2 + $0x58] sm:$0xff] %vm425, %v420
    %438 = vst.msk [vmem:[#allocation2 + $0x60] sm:$0xff] %vm425, %v421
    %439 = vst.msk [vmem:[#allocation2 + $0x68] sm:$0xff] %vm425, %v422
    %440 = vst.msk [vmem:[#allocation2 + $0x70] sm:$0xff] %vm425, %v423
    %441 = vst.msk [vmem:[#allocation2 + $0x78] sm:$0xff] %vm425, %v424
    // Predicated region
    $region22: #{bottleneck_forward.5} parent=1 // pred_check
      _
    $region23: #{bottleneck_forward.5} parent=1 // pred_check_branch
      %443 = sbr.rel (0) target = $region25
    $region24: #{bottleneck_forward.5} parent=1 // pred_region
      %s445 = ssub.s32 2048, 2048
      %446 = vsyncadd [#allocation3], %s445
      %s447 = sshll.u32 [#allocation2], 4
      %s448 = int_to_ptr.vmem [resolvable:$true] %s447
      %453 = dma.vmem_to_hbm [thread:$0]  %s448, 2048, %s5, [#allocation3], 128, 128, 8
    $region25: #{bottleneck_forward.5} parent=1 // pred_fallthru
      _
    // Predicated region
    $region26: #{bottleneck_forward.5} parent=1 // pred_check
      _
    $region27: #{bottleneck_forward.5} parent=1 // pred_check_branch
      %455 = sbr.rel (0) target = $region29
    $region28: #{bottleneck_forward.5} parent=1 // pred_region
      %456 = dma.done [#allocation3], 2048
    $region29: #{bottleneck_forward.5} parent=1 // pred_fallthru
      _
    %457 = vsyncpa [#allocation3], 1

// kernel: bottleneck_forward.3
$region0: #{bottleneck_forward.3}
  #allocation0 [shape = 'u32[]', space=smem, size = 0x4, offset = 0x4, fixed_abs, tag = 'smem constant byte address 0x4 - core index']
  #allocation1 [shape = 'u32[144,128]{1,0:T(1,128)}', space=vmem, size = 0x12000, scoped, tag = 'internal scratch']
  %s0 = inlined_call_operand.vmem [shape: bf16[512,8], index: 0, kind: input, shape index: {}]
  %s1 = inlined_call_operand.vmem [shape: bf16[8,8], index: 1, kind: input, shape index: {}]
  %s2 = inlined_call_operand.vmem [shape: f32[1,8], index: 2, kind: input, shape index: {}]
  %s3 = inlined_call_operand.vmem [shape: bf16[512,8], index: 3, kind: output, shape index: {}]
  %s4 = sld [smem:[#allocation0]]
  $region22: #{bottleneck_forward.3} parent=0
    _
  %s6 = ssub.s32 1, %s4
  %s7 = scalar_select 0, %s6, %s4
  // Predicated region
  $region2: #{bottleneck_forward.3} parent=0 // pred_check
    _
  $region3: #{bottleneck_forward.3} parent=0 // pred_check_branch
    %9 = sbr.rel (0) target = $region5
  $region4: #{bottleneck_forward.3} parent=0 // pred_region
    _
  $region5: #{bottleneck_forward.3} parent=0 // pred_fallthru
    _
  // Predicated region
  $region6: #{bottleneck_forward.3} parent=0 // pred_check
    _
  $region7: #{bottleneck_forward.3} parent=0 // pred_check_branch
    %11 = sbr.rel (0) target = $region9
  $region8: #{bottleneck_forward.3} parent=0 // pred_region
    _
  $region9: #{bottleneck_forward.3} parent=0 // pred_fallthru
    _
  // Predicated region
  $region10: #{bottleneck_forward.3} parent=0 // pred_check
    _
  $region11: #{bottleneck_forward.3} parent=0 // pred_check_branch
    %13 = sbr.rel (0) target = $region13
  $region12: #{bottleneck_forward.3} parent=0 // pred_region
    _
  $region13: #{bottleneck_forward.3} parent=0 // pred_fallthru
    _
  %v15 = vld [vmem:[%s0] sm:$0xf]
  %v16 = vld [vmem:[%s0 + $0x4] sm:$0xf]
  %v17 = vld [vmem:[%s0 + $0x8] sm:$0xf]
  %v18 = vld [vmem:[%s0 + $0xc] sm:$0xf]
  %v19 = vld [vmem:[%s0 + $0x10] sm:$0xf]
  %v20 = vld [vmem:[%s0 + $0x14] sm:$0xf]
  %v21 = vld [vmem:[%s0 + $0x18] sm:$0xf]
  %v22 = vld [vmem:[%s0 + $0x1c] sm:$0xf]
  %v23 = vld [vmem:[%s0 + $0x20] sm:$0xf]
  %v24 = vld [vmem:[%s0 + $0x24] sm:$0xf]
  %v25 = vld [vmem:[%s0 + $0x28] sm:$0xf]
  %v26 = vld [vmem:[%s0 + $0x2c] sm:$0xf]
  %v27 = vld [vmem:[%s0 + $0x30] sm:$0xf]
  %v28 = vld [vmem:[%s0 + $0x34] sm:$0xf]
  %v29 = vld [vmem:[%s0 + $0x38] sm:$0xf]
  %v30 = vld [vmem:[%s0 + $0x3c] sm:$0xf]
  %v31 = vld [vmem:[%s0 + $0x40] sm:$0xf]
  %v32 = vld [vmem:[%s0 + $0x44] sm:$0xf]
  %v33 = vld [vmem:[%s0 + $0x48] sm:$0xf]
  %v34 = vld [vmem:[%s0 + $0x4c] sm:$0xf]
  %v35 = vld [vmem:[%s0 + $0x50] sm:$0xf]
  %v36 = vld [vmem:[%s0 + $0x54] sm:$0xf]
  %v37 = vld [vmem:[%s0 + $0x58] sm:$0xf]
  %v38 = vld [vmem:[%s0 + $0x5c] sm:$0xf]
  %v39 = vld [vmem:[%s0 + $0x60] sm:$0xf]
  %v40 = vld [vmem:[%s0 + $0x64] sm:$0xf]
  %v41 = vld [vmem:[%s0 + $0x68] sm:$0xf]
  %v42 = vld [vmem:[%s0 + $0x6c] sm:$0xf]
  %v43 = vld [vmem:[%s0 + $0x70] sm:$0xf]
  %v44 = vld [vmem:[%s0 + $0x74] sm:$0xf]
  %v45 = vld [vmem:[%s0 + $0x78] sm:$0xf]
  %v46 = vld [vmem:[%s0 + $0x7c] sm:$0xf]
  %v47 = vld [vmem:[%s0 + $0x80] sm:$0xf]
  %v48 = vld [vmem:[%s0 + $0x84] sm:$0xf]
  %v49 = vld [vmem:[%s0 + $0x88] sm:$0xf]
  %v50 = vld [vmem:[%s0 + $0x8c] sm:$0xf]
  %v51 = vld [vmem:[%s0 + $0x90] sm:$0xf]
  %v52 = vld [vmem:[%s0 + $0x94] sm:$0xf]
  %v53 = vld [vmem:[%s0 + $0x98] sm:$0xf]
  %v54 = vld [vmem:[%s0 + $0x9c] sm:$0xf]
  %v55 = vld [vmem:[%s0 + $0xa0] sm:$0xf]
  %v56 = vld [vmem:[%s0 + $0xa4] sm:$0xf]
  %v57 = vld [vmem:[%s0 + $0xa8] sm:$0xf]
  %v58 = vld [vmem:[%s0 + $0xac] sm:$0xf]
  %v59 = vld [vmem:[%s0 + $0xb0] sm:$0xf]
  %v60 = vld [vmem:[%s0 + $0xb4] sm:$0xf]
  %v61 = vld [vmem:[%s0 + $0xb8] sm:$0xf]
  %v62 = vld [vmem:[%s0 + $0xbc] sm:$0xf]
  %v63 = vld [vmem:[%s0 + $0xc0] sm:$0xf]
  %v64 = vld [vmem:[%s0 + $0xc4] sm:$0xf]
  %v65 = vld [vmem:[%s0 + $0xc8] sm:$0xf]
  %v66 = vld [vmem:[%s0 + $0xcc] sm:$0xf]
  %v67 = vld [vmem:[%s0 + $0xd0] sm:$0xf]
  %v68 = vld [vmem:[%s0 + $0xd4] sm:$0xf]
  %v69 = vld [vmem:[%s0 + $0xd8] sm:$0xf]
  %v70 = vld [vmem:[%s0 + $0xdc] sm:$0xf]
  %v71 = vld [vmem:[%s0 + $0xe0] sm:$0xf]
  %v72 = vld [vmem:[%s0 + $0xe4] sm:$0xf]
  %v73 = vld [vmem:[%s0 + $0xe8] sm:$0xf]
  %v74 = vld [vmem:[%s0 + $0xec] sm:$0xf]
  %v75 = vld [vmem:[%s0 + $0xf0] sm:$0xf]
  %v76 = vld [vmem:[%s0 + $0xf4] sm:$0xf]
  %v77 = vld [vmem:[%s0 + $0xf8] sm:$0xf]
  %v78 = vld [vmem:[%s0 + $0xfc] sm:$0xf]
  %v79 = vld [vmem:[%s1] sm:$0xf]
  %v80 = vld [vmem:[%s2] sm:$0x1]
  %v82 = vlaneseq
  %v83 = vshrl.u32 %v82, 7
  %v84 = vsub.s32 0, %v83
  %v85 = vrot.slane %v80, %v84
  %v151 = vunpack.c.l.b16 %v15
  %v152 = vunpack.c.l.b16 %v16
  %v153 = vunpack.c.l.b16 %v17
  %v154 = vunpack.c.l.b16 %v18
  %v155 = vunpack.c.l.b16 %v19
  %v156 = vunpack.c.l.b16 %v20
  %v157 = vunpack.c.l.b16 %v21
  %v158 = vunpack.c.l.b16 %v22
  %v159 = vunpack.c.l.b16 %v23
  %v160 = vunpack.c.l.b16 %v24
  %v161 = vunpack.c.l.b16 %v25
  %v162 = vunpack.c.l.b16 %v26
  %v163 = vunpack.c.l.b16 %v27
  %v164 = vunpack.c.l.b16 %v28
  %v165 = vunpack.c.l.b16 %v29
  %v166 = vunpack.c.l.b16 %v30
  %v167 = vunpack.c.l.b16 %v31
  %v168 = vunpack.c.l.b16 %v32
  %v169 = vunpack.c.l.b16 %v33
  %v170 = vunpack.c.l.b16 %v34
  %v171 = vunpack.c.l.b16 %v35
  %v172 = vunpack.c.l.b16 %v36
  %v173 = vunpack.c.l.b16 %v37
  %v174 = vunpack.c.l.b16 %v38
  %v175 = vunpack.c.l.b16 %v39
  %v176 = vunpack.c.l.b16 %v40
  %v177 = vunpack.c.l.b16 %v41
  %v178 = vunpack.c.l.b16 %v42
  %v179 = vunpack.c.l.b16 %v43
  %v180 = vunpack.c.l.b16 %v44
  %v181 = vunpack.c.l.b16 %v45
  %v182 = vunpack.c.l.b16 %v46
  %v183 = vunpack.c.l.b16 %v47
  %v184 = vunpack.c.l.b16 %v48
  %v185 = vunpack.c.l.b16 %v49
  %v186 = vunpack.c.l.b16 %v50
  %v187 = vunpack.c.l.b16 %v51
  %v188 = vunpack.c.l.b16 %v52
  %v189 = vunpack.c.l.b16 %v53
  %v190 = vunpack.c.l.b16 %v54
  %v191 = vunpack.c.l.b16 %v55
  %v192 = vunpack.c.l.b16 %v56
  %v193 = vunpack.c.l.b16 %v57
  %v194 = vunpack.c.l.b16 %v58
  %v195 = vunpack.c.l.b16 %v59
  %v196 = vunpack.c.l.b16 %v60
  %v197 = vunpack.c.l.b16 %v61
  %v198 = vunpack.c.l.b16 %v62
  %v199 = vunpack.c.l.b16 %v63
  %v200 = vunpack.c.l.b16 %v64
  %v201 = vunpack.c.l.b16 %v65
  %v202 = vunpack.c.l.b16 %v66
  %v203 = vunpack.c.l.b16 %v67
  %v204 = vunpack.c.l.b16 %v68
  %v205 = vunpack.c.l.b16 %v69
  %v206 = vunpack.c.l.b16 %v70
  %v207 = vunpack.c.l.b16 %v71
  %v208 = vunpack.c.l.b16 %v72
  %v209 = vunpack.c.l.b16 %v73
  %v210 = vunpack.c.l.b16 %v74
  %v211 = vunpack.c.l.b16 %v75
  %v212 = vunpack.c.l.b16 %v76
  %v213 = vunpack.c.l.b16 %v77
  %v214 = vunpack.c.l.b16 %v78
  %v215 = vpack.c.b16 %v152, %v151
  %v216 = vpack.c.b16 %v154, %v153
  %v217 = vpack.c.b16 %v156, %v155
  %v218 = vpack.c.b16 %v158, %v157
  %v219 = vpack.c.b16 %v160, %v159
  %v220 = vpack.c.b16 %v162, %v161
  %v221 = vpack.c.b16 %v164, %v163
  %v222 = vpack.c.b16 %v166, %v165
  %v223 = vpack.c.b16 %v168, %v167
  %v224 = vpack.c.b16 %v170, %v169
  %v225 = vpack.c.b16 %v172, %v171
  %v226 = vpack.c.b16 %v174, %v173
  %v227 = vpack.c.b16 %v176, %v175
  %v228 = vpack.c.b16 %v178, %v177
  %v229 = vpack.c.b16 %v180, %v179
  %v230 = vpack.c.b16 %v182, %v181
  %v231 = vpack.c.b16 %v184, %v183
  %v232 = vpack.c.b16 %v186, %v185
  %v233 = vpack.c.b16 %v188, %v187
  %v234 = vpack.c.b16 %v190, %v189
  %v235 = vpack.c.b16 %v192, %v191
  %v236 = vpack.c.b16 %v194, %v193
  %v237 = vpack.c.b16 %v196, %v195
  %v238 = vpack.c.b16 %v198, %v197
  %v239 = vpack.c.b16 %v200, %v199
  %v240 = vpack.c.b16 %v202, %v201
  %v241 = vpack.c.b16 %v204, %v203
  %v242 = vpack.c.b16 %v206, %v205
  %v243 = vpack.c.b16 %v208, %v207
  %v244 = vpack.c.b16 %v210, %v209
  %v245 = vpack.c.b16 %v212, %v211
  %v246 = vpack.c.b16 %v214, %v213
  %vm247 = vcmask 64512
  %v249 = vsel %vm247, %v215, 0
  %v252 = vsel %vm247, %v216, 0
  %v255 = vsel %vm247, %v217, 0
  %v258 = vsel %vm247, %v218, 0
  %v261 = vsel %vm247, %v219, 0
  %v264 = vsel %vm247, %v220, 0
  %v267 = vsel %vm247, %v221, 0
  %v270 = vsel %vm247, %v222, 0
  %v273 = vsel %vm247, %v223, 0
  %v276 = vsel %vm247, %v224, 0
  %v279 = vsel %vm247, %v225, 0
  %v282 = vsel %vm247, %v226, 0
  %v285 = vsel %vm247, %v227, 0
  %v288 = vsel %vm247, %v228, 0
  %v291 = vsel %vm247, %v229, 0
  %v294 = vsel %vm247, %v230, 0
  %v297 = vsel %vm247, %v231, 0
  %v300 = vsel %vm247, %v232, 0
  %v303 = vsel %vm247, %v233, 0
  %v306 = vsel %vm247, %v234, 0
  %v309 = vsel %vm247, %v235, 0
  %v312 = vsel %vm247, %v236, 0
  %v315 = vsel %vm247, %v237, 0
  %v318 = vsel %vm247, %v238, 0
  %v321 = vsel %vm247, %v239, 0
  %v324 = vsel %vm247, %v240, 0
  %v327 = vsel %vm247, %v241, 0
  %v330 = vsel %vm247, %v242, 0
  %v333 = vsel %vm247, %v243, 0
  %v336 = vsel %vm247, %v244, 0
  %v339 = vsel %vm247, %v245, 0
  %v342 = vsel %vm247, %v246, 0
  %vm344 = vcmask 1043456
  %v346 = vsel %vm344, %v79, 0
  %348 = vmatprep.subr.bf16.mxu0 0
  %349 = vmatpush1.bf16.msra.mxu0 %v346
  %350 = vmatprep.subr.bf16.mxu0 0
  %351 = vmatpush1.bf16.msra.mxu0 0
  %352 = vmatprep.subr.bf16.mxu0 0
  %353 = vmatpush1.bf16.msra.mxu0 0
  %354 = vmatprep.subr.bf16.mxu0 0
  %355 = vmatpush1.bf16.msra.mxu0 0
  %356 = vmatprep.subr.bf16.mxu0 0
  %357 = vmatpush1.bf16.msra.mxu0 0
  %358 = vmatprep.subr.bf16.mxu0 0
  %359 = vmatpush1.bf16.msra.mxu0 0
  %360 = vmatprep.subr.bf16.mxu0 0
  %361 = vmatpush1.bf16.msra.mxu0 0
  %362 = vmatprep.subr.bf16.mxu0 0
  %363 = vmatpush1.bf16.msra.mxu0 0
  %364 = vmatprep.subr.bf16.mxu0 0
  %365 = vmatpush1.bf16.msra.mxu0 0
  %366 = vmatprep.subr.bf16.mxu0 0
  %367 = vmatpush1.bf16.msra.mxu0 0
  %368 = vmatprep.subr.bf16.mxu0 0
  %369 = vmatpush1.bf16.msra.mxu0 0
  %370 = vmatprep.subr.bf16.mxu0 0
  %371 = vmatpush1.bf16.msra.mxu0 0
  %372 = vmatprep.subr.bf16.mxu0 0
  %373 = vmatpush1.bf16.msra.mxu0 0
  %374 = vmatprep.subr.bf16.mxu0 0
  %375 = vmatpush1.bf16.msra.mxu0 0
  %376 = vmatprep.subr.bf16.mxu0 0
  %377 = vmatpush1.bf16.msra.mxu0 0
  %378 = vmatprep.subr.bf16.mxu0 0
  %379 = vmatpush1.bf16.msra.mxu0 0
  %380 = vmatprep.mubr.bf16.mxu0 0
  %381 = vmatmul.mubr.bf16.gmra.mrb[0].mxu0 %v249
  %v382 = vpop.f32.mrb[0].mxu0
  %v383 = vadd.f32 %v85, %v382
  %v384 = vpop.f32.mrb[0].mxu0
  %v385 = vpop.f32.mrb[0].mxu0
  %v386 = vadd.f32 %v85, %v385
  %v387 = vpop.f32.mrb[0].mxu0
  %388 = vmatprep.mubr.bf16.mxu0 0
  %389 = vmatmul.mubr.bf16.gmra.mrb[0].mxu0 %v252
  %v390 = vpop.f32.mrb[0].mxu0
  %v391 = vadd.f32 %v85, %v390
  %v392 = vpop.f32.mrb[0].mxu0
  %v393 = vpop.f32.mrb[0].mxu0
  %v394 = vadd.f32 %v85, %v393
  %v395 = vpop.f32.mrb[0].mxu0
  %396 = vmatprep.mubr.bf16.mxu0 0
  %397 = vmatmul.mubr.bf16.gmra.mrb[0].mxu0 %v255
  %v398 = vpop.f32.mrb[0].mxu0
  %v399 = vadd.f32 %v85, %v398
  %v400 = vpop.f32.mrb[0].mxu0
  %v401 = vpop.f32.mrb[0].mxu0
  %v402 = vadd.f32 %v85, %v401
  %v403 = vpop.f32.mrb[0].mxu0
  %404 = vmatprep.mubr.bf16.mxu0 0
  %405 = vmatmul.mubr.bf16.gmra.mrb[0].mxu0 %v258
  %v406 = vpop.f32.mrb[0].mxu0
  %v407 = vadd.f32 %v85, %v406
  %v408 = vpop.f32.mrb[0].mxu0
  %v409 = vpop.f32.mrb[0].mxu0
  %v410 = vadd.f32 %v85, %v409
  %v411 = vpop.f32.mrb[0].mxu0
  %412 = vmatprep.mubr.bf16.mxu0 0
  %413 = vmatmul.mubr.bf16.gmra.mrb[0].mxu0 %v261
  %v414 = vpop.f32.mrb[0].mxu0
  %v415 = vadd.f32 %v85, %v414
  %v416 = vpop.f32.mrb[0].mxu0
  %v417 = vpop.f32.mrb[0].mxu0
  %v418 = vadd.f32 %v85, %v417
  %v419 = vpop.f32.mrb[0].mxu0
  %420 = vmatprep.mubr.bf16.mxu0 0
  %421 = vmatmul.mubr.bf16.gmra.mrb[0].mxu0 %v264
  %v422 = vpop.f32.mrb[0].mxu0
  %v423 = vadd.f32 %v85, %v422
  %v424 = vpop.f32.mrb[0].mxu0
  %v425 = vpop.f32.mrb[0].mxu0
  %v426 = vadd.f32 %v85, %v425
  %v427 = vpop.f32.mrb[0].mxu0
  %428 = vmatprep.mubr.bf16.mxu0 0
  %429 = vmatmul.mubr.bf16.gmra.mrb[0].mxu0 %v267
  %v430 = vpop.f32.mrb[0].mxu0
  %v431 = vadd.f32 %v85, %v430
  %v432 = vpop.f32.mrb[0].mxu0
  %v433 = vpop.f32.mrb[0].mxu0
  %v434 = vadd.f32 %v85, %v433
  %v435 = vpop.f32.mrb[0].mxu0
  %436 = vmatprep.mubr.bf16.mxu0 0
  %437 = vmatmul.mubr.bf16.gmra.mrb[0].mxu0 %v270
  %v438 = vpop.f32.mrb[0].mxu0
  %v439 = vadd.f32 %v85, %v438
  %v440 = vpop.f32.mrb[0].mxu0
  %v441 = vpop.f32.mrb[0].mxu0
  %v442 = vadd.f32 %v85, %v441
  %v443 = vpop.f32.mrb[0].mxu0
  %444 = vmatprep.mubr.bf16.mxu0 0
  %445 = vmatmul.mubr.bf16.gmra.mrb[0].mxu0 %v273
  %v446 = vpop.f32.mrb[0].mxu0
  %v447 = vadd.f32 %v85, %v446
  %v448 = vpop.f32.mrb[0].mxu0
  %v449 = vpop.f32.mrb[0].mxu0
  %v450 = vadd.f32 %v85, %v449
  %v451 = vpop.f32.mrb[0].mxu0
  %452 = vmatprep.mubr.bf16.mxu0 0
  %453 = vmatmul.mubr.bf16.gmra.mrb[0].mxu0 %v276
  %v454 = vpop.f32.mrb[0].mxu0
  %v455 = vadd.f32 %v85, %v454
  %v456 = vpop.f32.mrb[0].mxu0
  %v457 = vpop.f32.mrb[0].mxu0
  %v458 = vadd.f32 %v85, %v457
  %v459 = vpop.f32.mrb[0].mxu0
  %460 = vmatprep.mubr.bf16.mxu0 0
  %461 = vmatmul.mubr.bf16.gmra.mrb[0].mxu0 %v279
  %v462 = vpop.f32.mrb[0].mxu0
  %v463 = vadd.f32 %v85, %v462
  %v464 = vpop.f32.mrb[0].mxu0
  %v465 = vpop.f32.mrb[0].mxu0
  %v466 = vadd.f32 %v85, %v465
  %v467 = vpop.f32.mrb[0].mxu0
  %468 = vmatprep.mubr.bf16.mxu0 0
  %469 = vmatmul.mubr.bf16.gmra.mrb[0].mxu0 %v282
  %v470 = vpop.f32.mrb[0].mxu0
  %v471 = vadd.f32 %v85, %v470
  %v472 = vpop.f32.mrb[0].mxu0
  %v473 = vpop.f32.mrb[0].mxu0
  %v474 = vadd.f32 %v85, %v473
  %v475 = vpop.f32.mrb[0].mxu0
  %476 = vmatprep.mubr.bf16.mxu0 0
  %477 = vmatmul.mubr.bf16.gmra.mrb[0].mxu0 %v285
  %v478 = vpop.f32.mrb[0].mxu0
  %v479 = vadd.f32 %v85, %v478
  %v480 = vpop.f32.mrb[0].mxu0
  %v481 = vpop.f32.mrb[0].mxu0
  %v482 = vadd.f32 %v85, %v481
  %v483 = vpop.f32.mrb[0].mxu0
  %484 = vmatprep.mubr.bf16.mxu0 0
  %485 = vmatmul.mubr.bf16.gmra.mrb[0].mxu0 %v288
  %v486 = vpop.f32.mrb[0].mxu0
  %v487 = vadd.f32 %v85, %v486
  %v488 = vpop.f32.mrb[0].mxu0
  %v489 = vpop.f32.mrb[0].mxu0
  %v490 = vadd.f32 %v85, %v489
  %v491 = vpop.f32.mrb[0].mxu0
  %492 = vmatprep.mubr.bf16.mxu0 0
  %493 = vmatmul.mubr.bf16.gmra.mrb[0].mxu0 %v291
  %v494 = vpop.f32.mrb[0].mxu0
  %v495 = vadd.f32 %v85, %v494
  %v496 = vpop.f32.mrb[0].mxu0
  %v497 = vpop.f32.mrb[0].mxu0
  %v498 = vadd.f32 %v85, %v497
  %v499 = vpop.f32.mrb[0].mxu0
  %500 = vmatprep.mubr.bf16.mxu0 0
  %501 = vmatmul.mubr.bf16.gmra.mrb[0].mxu0 %v294
  %v502 = vpop.f32.mrb[0].mxu0
  %v503 = vadd.f32 %v85, %v502
  %v504 = vpop.f32.mrb[0].mxu0
  %v505 = vpop.f32.mrb[0].mxu0
  %v506 = vadd.f32 %v85, %v505
  %v507 = vpop.f32.mrb[0].mxu0
  %508 = vmatprep.mubr.bf16.mxu0 0
  %509 = vmatmul.mubr.bf16.gmra.mrb[0].mxu0 %v297
  %v510 = vpop.f32.mrb[0].mxu0
  %v511 = vadd.f32 %v85, %v510
  %v512 = vpop.f32.mrb[0].mxu0
  %v513 = vpop.f32.mrb[0].mxu0
  %v514 = vadd.f32 %v85, %v513
  %v515 = vpop.f32.mrb[0].mxu0
  %516 = vmatprep.mubr.bf16.mxu0 0
  %517 = vmatmul.mubr.bf16.gmra.mrb[0].mxu0 %v300
  %v518 = vpop.f32.mrb[0].mxu0
  %v519 = vadd.f32 %v85, %v518
  %v520 = vpop.f32.mrb[0].mxu0
  %v521 = vpop.f32.mrb[0].mxu0
  %v522 = vadd.f32 %v85, %v521
  %v523 = vpop.f32.mrb[0].mxu0
  %524 = vmatprep.mubr.bf16.mxu0 0
  %525 = vmatmul.mubr.bf16.gmra.mrb[0].mxu0 %v303
  %v526 = vpop.f32.mrb[0].mxu0
  %v527 = vadd.f32 %v85, %v526
  %v528 = vpop.f32.mrb[0].mxu0
  %v529 = vpop.f32.mrb[0].mxu0
  %v530 = vadd.f32 %v85, %v529
  %v531 = vpop.f32.mrb[0].mxu0
  %532 = vmatprep.mubr.bf16.mxu0 0
  %533 = vmatmul.mubr.bf16.gmra.mrb[0].mxu0 %v306
  %v534 = vpop.f32.mrb[0].mxu0
  %v535 = vadd.f32 %v85, %v534
  %v536 = vpop.f32.mrb[0].mxu0
  %v537 = vpop.f32.mrb[0].mxu0
  %v538 = vadd.f32 %v85, %v537
  %v539 = vpop.f32.mrb[0].mxu0
  %540 = vmatprep.mubr.bf16.mxu0 0
  %541 = vmatmul.mubr.bf16.gmra.mrb[0].mxu0 %v309
  %v542 = vpop.f32.mrb[0].mxu0
  %v543 = vadd.f32 %v85, %v542
  %v544 = vpop.f32.mrb[0].mxu0
  %v545 = vpop.f32.mrb[0].mxu0
  %v546 = vadd.f32 %v85, %v545
  %v547 = vpop.f32.mrb[0].mxu0
  %548 = vmatprep.mubr.bf16.mxu0 0
  %549 = vmatmul.mubr.bf16.gmra.mrb[0].mxu0 %v312
  %v550 = vpop.f32.mrb[0].mxu0
  %v551 = vadd.f32 %v85, %v550
  %v552 = vpop.f32.mrb[0].mxu0
  %v553 = vpop.f32.mrb[0].mxu0
  %v554 = vadd.f32 %v85, %v553
  %v555 = vpop.f32.mrb[0].mxu0
  %556 = vmatprep.mubr.bf16.mxu0 0
  %557 = vmatmul.mubr.bf16.gmra.mrb[0].mxu0 %v315
  %v558 = vpop.f32.mrb[0].mxu0
  %v559 = vadd.f32 %v85, %v558
  %v560 = vpop.f32.mrb[0].mxu0
  %v561 = vpop.f32.mrb[0].mxu0
  %v562 = vadd.f32 %v85, %v561
  %v563 = vpop.f32.mrb[0].mxu0
  %564 = vmatprep.mubr.bf16.mxu0 0
  %565 = vmatmul.mubr.bf16.gmra.mrb[0].mxu0 %v318
  %v566 = vpop.f32.mrb[0].mxu0
  %v567 = vadd.f32 %v85, %v566
  %v568 = vpop.f32.mrb[0].mxu0
  %v569 = vpop.f32.mrb[0].mxu0
  %v570 = vadd.f32 %v85, %v569
  %v571 = vpop.f32.mrb[0].mxu0
  %572 = vmatprep.mubr.bf16.mxu0 0
  %573 = vmatmul.mubr.bf16.gmra.mrb[0].mxu0 %v321
  %v574 = vpop.f32.mrb[0].mxu0
  %v575 = vadd.f32 %v85, %v574
  %v576 = vpop.f32.mrb[0].mxu0
  %v577 = vpop.f32.mrb[0].mxu0
  %v578 = vadd.f32 %v85, %v577
  %v579 = vpop.f32.mrb[0].mxu0
  %580 = vmatprep.mubr.bf16.mxu0 0
  %581 = vmatmul.mubr.bf16.gmra.mrb[0].mxu0 %v324
  %v582 = vpop.f32.mrb[0].mxu0
  %v583 = vadd.f32 %v85, %v582
  %v584 = vpop.f32.mrb[0].mxu0
  %v585 = vpop.f32.mrb[0].mxu0
  %v586 = vadd.f32 %v85, %v585
  %v587 = vpop.f32.mrb[0].mxu0
  %588 = vmatprep.mubr.bf16.mxu0 0
  %589 = vmatmul.mubr.bf16.gmra.mrb[0].mxu0 %v327
  %v590 = vpop.f32.mrb[0].mxu0
  %v591 = vadd.f32 %v85, %v590
  %v592 = vpop.f32.mrb[0].mxu0
  %v593 = vpop.f32.mrb[0].mxu0
  %v594 = vadd.f32 %v85, %v593
  %v595 = vpop.f32.mrb[0].mxu0
  %596 = vmatprep.mubr.bf16.mxu0 0
  %597 = vmatmul.mubr.bf16.gmra.mrb[0].mxu0 %v330
  %v598 = vpop.f32.mrb[0].mxu0
  %v599 = vadd.f32 %v85, %v598
  %v600 = vpop.f32.mrb[0].mxu0
  %v601 = vpop.f32.mrb[0].mxu0
  %v602 = vadd.f32 %v85, %v601
  %v603 = vpop.f32.mrb[0].mxu0
  %604 = vmatprep.mubr.bf16.mxu0 0
  %605 = vmatmul.mubr.bf16.gmra.mrb[0].mxu0 %v333
  %v606 = vpop.f32.mrb[0].mxu0
  %v607 = vadd.f32 %v85, %v606
  %v608 = vpop.f32.mrb[0].mxu0
  %v609 = vpop.f32.mrb[0].mxu0
  %v610 = vadd.f32 %v85, %v609
  %v611 = vpop.f32.mrb[0].mxu0
  %612 = vmatprep.mubr.bf16.mxu0 0
  %613 = vmatmul.mubr.bf16.gmra.mrb[0].mxu0 %v336
  %v614 = vpop.f32.mrb[0].mxu0
  %v615 = vadd.f32 %v85, %v614
  %v616 = vpop.f32.mrb[0].mxu0
  %v617 = vpop.f32.mrb[0].mxu0
  %v618 = vadd.f32 %v85, %v617
  %v619 = vpop.f32.mrb[0].mxu0
  %620 = vmatprep.mubr.bf16.mxu0 0
  %621 = vmatmul.mubr.bf16.gmra.mrb[0].mxu0 %v339
  %v622 = vpop.f32.mrb[0].mxu0
  %v623 = vadd.f32 %v85, %v622
  %v624 = vpop.f32.mrb[0].mxu0
  %v625 = vpop.f32.mrb[0].mxu0
  %v626 = vadd.f32 %v85, %v625
  %v627 = vpop.f32.mrb[0].mxu0
  %628 = vmatprep.mubr.bf16.mxu0 0
  %629 = vmatmul.mubr.bf16.gmra.mrb[0].mxu0 %v342
  %v630 = vpop.f32.mrb[0].mxu0
  %v631 = vadd.f32 %v85, %v630
  %v632 = vpop.f32.mrb[0].mxu0
  %v633 = vpop.f32.mrb[0].mxu0
  %v634 = vadd.f32 %v85, %v633
  %v635 = vpop.f32.mrb[0].mxu0
  %636 = vdwg.mxu0
  %v637 = vmax.f32 %v383, 0.0
  %v638 = vmax.f32 %v386, 0.0
  %v639 = vmax.f32 %v391, 0.0
  %v640 = vmax.f32 %v394, 0.0
  %v641 = vmax.f32 %v399, 0.0
  %v642 = vmax.f32 %v402, 0.0
  %v643 = vmax.f32 %v407, 0.0
  %v644 = vmax.f32 %v410, 0.0
  %v645 = vmax.f32 %v415, 0.0
  %v646 = vmax.f32 %v418, 0.0
  %v647 = vmax.f32 %v423, 0.0
  %v648 = vmax.f32 %v426, 0.0
  %v649 = vmax.f32 %v431, 0.0
  %v650 = vmax.f32 %v434, 0.0
  %v651 = vmax.f32 %v439, 0.0
  %v652 = vmax.f32 %v442, 0.0
  %v653 = vmax.f32 %v447, 0.0
  %v654 = vmax.f32 %v450, 0.0
  %v655 = vmax.f32 %v455, 0.0
  %v656 = vmax.f32 %v458, 0.0
  %v657 = vmax.f32 %v463, 0.0
  %v658 = vmax.f32 %v466, 0.0
  %v659 = vmax.f32 %v471, 0.0
  %v660 = vmax.f32 %v474, 0.0
  %v661 = vmax.f32 %v479, 0.0
  %v662 = vmax.f32 %v482, 0.0
  %v663 = vmax.f32 %v487, 0.0
  %v664 = vmax.f32 %v490, 0.0
  %v665 = vmax.f32 %v495, 0.0
  %v666 = vmax.f32 %v498, 0.0
  %v667 = vmax.f32 %v503, 0.0
  %v668 = vmax.f32 %v506, 0.0
  %v669 = vmax.f32 %v511, 0.0
  %v670 = vmax.f32 %v514, 0.0
  %v671 = vmax.f32 %v519, 0.0
  %v672 = vmax.f32 %v522, 0.0
  %v673 = vmax.f32 %v527, 0.0
  %v674 = vmax.f32 %v530, 0.0
  %v675 = vmax.f32 %v535, 0.0
  %v676 = vmax.f32 %v538, 0.0
  %v677 = vmax.f32 %v543, 0.0
  %v678 = vmax.f32 %v546, 0.0
  %v679 = vmax.f32 %v551, 0.0
  %v680 = vmax.f32 %v554, 0.0
  %v681 = vmax.f32 %v559, 0.0
  %v682 = vmax.f32 %v562, 0.0
  %v683 = vmax.f32 %v567, 0.0
  %v684 = vmax.f32 %v570, 0.0
  %v685 = vmax.f32 %v575, 0.0
  %v686 = vmax.f32 %v578, 0.0
  %v687 = vmax.f32 %v583, 0.0
  %v688 = vmax.f32 %v586, 0.0
  %v689 = vmax.f32 %v591, 0.0
  %v690 = vmax.f32 %v594, 0.0
  %v691 = vmax.f32 %v599, 0.0
  %v692 = vmax.f32 %v602, 0.0
  %v693 = vmax.f32 %v607, 0.0
  %v694 = vmax.f32 %v610, 0.0
  %v695 = vmax.f32 %v615, 0.0
  %v696 = vmax.f32 %v618, 0.0
  %v697 = vmax.f32 %v623, 0.0
  %v698 = vmax.f32 %v626, 0.0
  %v699 = vmax.f32 %v631, 0.0
  %v700 = vmax.f32 %v634, 0.0
  %v701 = vpack.c.bf16 %v638, %v637
  %v702 = vpack.c.bf16 %v640, %v639
  %v703 = vpack.c.bf16 %v642, %v641
  %v704 = vpack.c.bf16 %v644, %v643
  %v705 = vpack.c.bf16 %v646, %v645
  %v706 = vpack.c.bf16 %v648, %v647
  %v707 = vpack.c.bf16 %v650, %v649
  %v708 = vpack.c.bf16 %v652, %v651
  %v709 = vpack.c.bf16 %v654, %v653
  %v710 = vpack.c.bf16 %v656, %v655
  %v711 = vpack.c.bf16 %v658, %v657
  %v712 = vpack.c.bf16 %v660, %v659
  %v713 = vpack.c.bf16 %v662, %v661
  %v714 = vpack.c.bf16 %v664, %v663
  %v715 = vpack.c.bf16 %v666, %v665
  %v716 = vpack.c.bf16 %v668, %v667
  %v717 = vpack.c.bf16 %v670, %v669
  %v718 = vpack.c.bf16 %v672, %v671
  %v719 = vpack.c.bf16 %v674, %v673
  %v720 = vpack.c.bf16 %v676, %v675
  %v721 = vpack.c.bf16 %v678, %v677
  %v722 = vpack.c.bf16 %v680, %v679
  %v723 = vpack.c.bf16 %v682, %v681
  %v724 = vpack.c.bf16 %v684, %v683
  %v725 = vpack.c.bf16 %v686, %v685
  %v726 = vpack.c.bf16 %v688, %v687
  %v727 = vpack.c.bf16 %v690, %v689
  %v728 = vpack.c.bf16 %v692, %v691
  %v729 = vpack.c.bf16 %v694, %v693
  %v730 = vpack.c.bf16 %v696, %v695
  %v731 = vpack.c.bf16 %v698, %v697
  %v732 = vpack.c.bf16 %v700, %v699
  %v765 = vunpack.c.l.b16 %v701
  %v766 = vunpack.c.h.b16 %v701
  %v767 = vunpack.c.l.b16 %v702
  %v768 = vunpack.c.h.b16 %v702
  %v769 = vunpack.c.l.b16 %v703
  %v770 = vunpack.c.h.b16 %v703
  %v771 = vunpack.c.l.b16 %v704
  %v772 = vunpack.c.h.b16 %v704
  %v773 = vunpack.c.l.b16 %v705
  %v774 = vunpack.c.h.b16 %v705
  %v775 = vunpack.c.l.b16 %v706
  %v776 = vunpack.c.h.b16 %v706
  %v777 = vunpack.c.l.b16 %v707
  %v778 = vunpack.c.h.b16 %v707
  %v779 = vunpack.c.l.b16 %v708
  %v780 = vunpack.c.h.b16 %v708
  %v781 = vunpack.c.l.b16 %v709
  %v782 = vunpack.c.h.b16 %v709
  %v783 = vunpack.c.l.b16 %v710
  %v784 = vunpack.c.h.b16 %v710
  %v785 = vunpack.c.l.b16 %v711
  %v786 = vunpack.c.h.b16 %v711
  %v787 = vunpack.c.l.b16 %v712
  %v788 = vunpack.c.h.b16 %v712
  %v789 = vunpack.c.l.b16 %v713
  %v790 = vunpack.c.h.b16 %v713
  %v791 = vunpack.c.l.b16 %v714
  %v792 = vunpack.c.h.b16 %v714
  %v793 = vunpack.c.l.b16 %v715
  %v794 = vunpack.c.h.b16 %v715
  %v795 = vunpack.c.l.b16 %v716
  %v796 = vunpack.c.h.b16 %v716
  %v797 = vunpack.c.l.b16 %v717
  %v798 = vunpack.c.h.b16 %v717
  %v799 = vunpack.c.l.b16 %v718
  %v800 = vunpack.c.h.b16 %v718
  %v801 = vunpack.c.l.b16 %v719
  %v802 = vunpack.c.h.b16 %v719
  %v803 = vunpack.c.l.b16 %v720
  %v804 = vunpack.c.h.b16 %v720
  %v805 = vunpack.c.l.b16 %v721
  %v806 = vunpack.c.h.b16 %v721
  %v807 = vunpack.c.l.b16 %v722
  %v808 = vunpack.c.h.b16 %v722
  %v809 = vunpack.c.l.b16 %v723
  %v810 = vunpack.c.h.b16 %v723
  %v811 = vunpack.c.l.b16 %v724
  %v812 = vunpack.c.h.b16 %v724
  %v813 = vunpack.c.l.b16 %v725
  %v814 = vunpack.c.h.b16 %v725
  %v815 = vunpack.c.l.b16 %v726
  %v816 = vunpack.c.h.b16 %v726
  %v817 = vunpack.c.l.b16 %v727
  %v818 = vunpack.c.h.b16 %v727
  %v819 = vunpack.c.l.b16 %v728
  %v820 = vunpack.c.h.b16 %v728
  %v821 = vunpack.c.l.b16 %v729
  %v822 = vunpack.c.h.b16 %v729
  %v823 = vunpack.c.l.b16 %v730
  %v824 = vunpack.c.h.b16 %v730
  %v825 = vunpack.c.l.b16 %v731
  %v826 = vunpack.c.h.b16 %v731
  %v827 = vunpack.c.l.b16 %v732
  %v828 = vunpack.c.h.b16 %v732
  %v829 = vpack.c.b16 %v765, %v765
  %v830 = vpack.c.b16 %v766, %v766
  %v831 = vpack.c.b16 %v767, %v767
  %v832 = vpack.c.b16 %v768, %v768
  %v833 = vpack.c.b16 %v769, %v769
  %v834 = vpack.c.b16 %v770, %v770
  %v835 = vpack.c.b16 %v771, %v771
  %v836 = vpack.c.b16 %v772, %v772
  %v837 = vpack.c.b16 %v773, %v773
  %v838 = vpack.c.b16 %v774, %v774
  %v839 = vpack.c.b16 %v775, %v775
  %v840 = vpack.c.b16 %v776, %v776
  %v841 = vpack.c.b16 %v777, %v777
  %v842 = vpack.c.b16 %v778, %v778
  %v843 = vpack.c.b16 %v779, %v779
  %v844 = vpack.c.b16 %v780, %v780
  %v845 = vpack.c.b16 %v781, %v781
  %v846 = vpack.c.b16 %v782, %v782
  %v847 = vpack.c.b16 %v783, %v783
  %v848 = vpack.c.b16 %v784, %v784
  %v849 = vpack.c.b16 %v785, %v785
  %v850 = vpack.c.b16 %v786, %v786
  %v851 = vpack.c.b16 %v787, %v787
  %v852 = vpack.c.b16 %v788, %v788
  %v853 = vpack.c.b16 %v789, %v789
  %v854 = vpack.c.b16 %v790, %v790
  %v855 = vpack.c.b16 %v791, %v791
  %v856 = vpack.c.b16 %v792, %v792
  %v857 = vpack.c.b16 %v793, %v793
  %v858 = vpack.c.b16 %v794, %v794
  %v859 = vpack.c.b16 %v795, %v795
  %v860 = vpack.c.b16 %v796, %v796
  %v861 = vpack.c.b16 %v797, %v797
  %v862 = vpack.c.b16 %v798, %v798
  %v863 = vpack.c.b16 %v799, %v799
  %v864 = vpack.c.b16 %v800, %v800
  %v865 = vpack.c.b16 %v801, %v801
  %v866 = vpack.c.b16 %v802, %v802
  %v867 = vpack.c.b16 %v803, %v803
  %v868 = vpack.c.b16 %v804, %v804
  %v869 = vpack.c.b16 %v805, %v805
  %v870 = vpack.c.b16 %v806, %v806
  %v871 = vpack.c.b16 %v807, %v807
  %v872 = vpack.c.b16 %v808, %v808
  %v873 = vpack.c.b16 %v809, %v809
  %v874 = vpack.c.b16 %v810, %v810
  %v875 = vpack.c.b16 %v811, %v811
  %v876 = vpack.c.b16 %v812, %v812
  %v877 = vpack.c.b16 %v813, %v813
  %v878 = vpack.c.b16 %v814, %v814
  %v879 = vpack.c.b16 %v815, %v815
  %v880 = vpack.c.b16 %v816, %v816
  %v881 = vpack.c.b16 %v817, %v817
  %v882 = vpack.c.b16 %v818, %v818
  %v883 = vpack.c.b16 %v819, %v819
  %v884 = vpack.c.b16 %v820, %v820
  %v885 = vpack.c.b16 %v821, %v821
  %v886 = vpack.c.b16 %v822, %v822
  %v887 = vpack.c.b16 %v823, %v823
  %v888 = vpack.c.b16 %v824, %v824
  %v889 = vpack.c.b16 %v825, %v825
  %v890 = vpack.c.b16 %v826, %v826
  %v891 = vpack.c.b16 %v827, %v827
  %v892 = vpack.c.b16 %v828, %v828
  %vm957 = vcmask 60416
  %958 = vst.msk [vmem:[%s3] sm:$0xf] %vm957, %v829
  %959 = vst.msk [vmem:[%s3 + $0x4] sm:$0xf] %vm957, %v830
  %960 = vst.msk [vmem:[%s3 + $0x8] sm:$0xf] %vm957, %v831
  %961 = vst.msk [vmem:[%s3 + $0xc] sm:$0xf] %vm957, %v832
  %962 = vst.msk [vmem:[%s3 + $0x10] sm:$0xf] %vm957, %v833
  %963 = vst.msk [vmem:[%s3 + $0x14] sm:$0xf] %vm957, %v834
  %964 = vst.msk [vmem:[%s3 + $0x18] sm:$0xf] %vm957, %v835
  %965 = vst.msk [vmem:[%s3 + $0x1c] sm:$0xf] %vm957, %v836
  %966 = vst.msk [vmem:[%s3 + $0x20] sm:$0xf] %vm957, %v837
  %967 = vst.msk [vmem:[%s3 + $0x24] sm:$0xf] %vm957, %v838
  %968 = vst.msk [vmem:[%s3 + $0x28] sm:$0xf] %vm957, %v839
  %969 = vst.msk [vmem:[%s3 + $0x2c] sm:$0xf] %vm957, %v840
  %970 = vst.msk [vmem:[%s3 + $0x30] sm:$0xf] %vm957, %v841
  %971 = vst.msk [vmem:[%s3 + $0x34] sm:$0xf] %vm957, %v842
  %972 = vst.msk [vmem:[%s3 + $0x38] sm:$0xf] %vm957, %v843
  %973 = vst.msk [vmem:[%s3 + $0x3c] sm:$0xf] %vm957, %v844
  %974 = vst.msk [vmem:[%s3 + $0x40] sm:$0xf] %vm957, %v845
  %975 = vst.msk [vmem:[%s3 + $0x44] sm:$0xf] %vm957, %v846
  %976 = vst.msk [vmem:[%s3 + $0x48] sm:$0xf] %vm957, %v847
  %977 = vst.msk [vmem:[%s3 + $0x4c] sm:$0xf] %vm957, %v848
  %978 = vst.msk [vmem:[%s3 + $0x50] sm:$0xf] %vm957, %v849
  %979 = vst.msk [vmem:[%s3 + $0x54] sm:$0xf] %vm957, %v850
  %980 = vst.msk [vmem:[%s3 + $0x58] sm:$0xf] %vm957, %v851
  %981 = vst.msk [vmem:[%s3 + $0x5c] sm:$0xf] %vm957, %v852
  %982 = vst.msk [vmem:[%s3 + $0x60] sm:$0xf] %vm957, %v853
  %983 = vst.msk [vmem:[%s3 + $0x64] sm:$0xf] %vm957, %v854
  %984 = vst.msk [vmem:[%s3 + $0x68] sm:$0xf] %vm957, %v855
  %985 = vst.msk [vmem:[%s3 + $0x6c] sm:$0xf] %vm957, %v856
  %986 = vst.msk [vmem:[%s3 + $0x70] sm:$0xf] %vm957, %v857
  %987 = vst.msk [vmem:[%s3 + $0x74] sm:$0xf] %vm957, %v858
  %988 = vst.msk [vmem:[%s3 + $0x78] sm:$0xf] %vm957, %v859
  %989 = vst.msk [vmem:[%s3 + $0x7c] sm:$0xf] %vm957, %v860
  %990 = vst.msk [vmem:[%s3 + $0x80] sm:$0xf] %vm957, %v861
  %991 = vst.msk [vmem:[%s3 + $0x84] sm:$0xf] %vm957, %v862
  %992 = vst.msk [vmem:[%s3 + $0x88] sm:$0xf] %vm957, %v863
  %993 = vst.msk [vmem:[%s3 + $0x8c] sm:$0xf] %vm957, %v864
  %994 = vst.msk [vmem:[%s3 + $0x90] sm:$0xf] %vm957, %v865
  %995 = vst.msk [vmem:[%s3 + $0x94] sm:$0xf] %vm957, %v866
  %996 = vst.msk [vmem:[%s3 + $0x98] sm:$0xf] %vm957, %v867
  %997 = vst.msk [vmem:[%s3 + $0x9c] sm:$0xf] %vm957, %v868
  %998 = vst.msk [vmem:[%s3 + $0xa0] sm:$0xf] %vm957, %v869
  %999 = vst.msk [vmem:[%s3 + $0xa4] sm:$0xf] %vm957, %v870
  %1000 = vst.msk [vmem:[%s3 + $0xa8] sm:$0xf] %vm957, %v871
  %1001 = vst.msk [vmem:[%s3 + $0xac] sm:$0xf] %vm957, %v872
  %1002 = vst.msk [vmem:[%s3 + $0xb0] sm:$0xf] %vm957, %v873
  %1003 = vst.msk [vmem:[%s3 + $0xb4] sm:$0xf] %vm957, %v874
  %1004 = vst.msk [vmem:[%s3 + $0xb8] sm:$0xf] %vm957, %v875
  %1005 = vst.msk [vmem:[%s3 + $0xbc] sm:$0xf] %vm957, %v876
  %1006 = vst.msk [vmem:[%s3 + $0xc0] sm:$0xf] %vm957, %v877
  %1007 = vst.msk [vmem:[%s3 + $0xc4] sm:$0xf] %vm957, %v878
  %1008 = vst.msk [vmem:[%s3 + $0xc8] sm:$0xf] %vm957, %v879
  %1009 = vst.msk [vmem:[%s3 + $0xcc] sm:$0xf] %vm957, %v880
  %1010 = vst.msk [vmem:[%s3 + $0xd0] sm:$0xf] %vm957, %v881
  %1011 = vst.msk [vmem:[%s3 + $0xd4] sm:$0xf] %vm957, %v882
  %1012 = vst.msk [vmem:[%s3 + $0xd8] sm:$0xf] %vm957, %v883
  %1013 = vst.msk [vmem:[%s3 + $0xdc] sm:$0xf] %vm957, %v884
  %1014 = vst.msk [vmem:[%s3 + $0xe0] sm:$0xf] %vm957, %v885
  %1015 = vst.msk [vmem:[%s3 + $0xe4] sm:$0xf] %vm957, %v886
  %1016 = vst.msk [vmem:[%s3 + $0xe8] sm:$0xf] %vm957, %v887
  %1017 = vst.msk [vmem:[%s3 + $0xec] sm:$0xf] %vm957, %v888
  %1018 = vst.msk [vmem:[%s3 + $0xf0] sm:$0xf] %vm957, %v889
  %1019 = vst.msk [vmem:[%s3 + $0xf4] sm:$0xf] %vm957, %v890
  %1020 = vst.msk [vmem:[%s3 + $0xf8] sm:$0xf] %vm957, %v891
  %1021 = vst.msk [vmem:[%s3 + $0xfc] sm:$0xf] %vm957, %v892
  // Predicated region
  $region14: #{bottleneck_forward.3} parent=0 // pred_check
    _
  $region15: #{bottleneck_forward.3} parent=0 // pred_check_branch
    %1023 = sbr.rel (0) target = $region17
  $region16: #{bottleneck_forward.3} parent=0 // pred_region
    _
  $region17: #{bottleneck_forward.3} parent=0 // pred_fallthru
    _
  // Predicated region
  $region18: #{bottleneck_forward.3} parent=0 // pred_check
    _
  $region19: #{bottleneck_forward.3} parent=0 // pred_check_branch
    %1025 = sbr.rel (0) target = $region21
  $region20: #{bottleneck_forward.3} parent=0 // pred_region
    _
  $region21: #{bottleneck_forward.3} parent=0 // pred_fallthru
    _

// kernel: bottleneck_forward.4
$region0: #{bottleneck_forward.4}
  #allocation0 [shape = 'u32[]', space=smem, size = 0x4, offset = 0x4, fixed_abs, tag = 'smem constant byte address 0x4 - core index']
  #allocation1 [shape = 'u32[144,128]{1,0:T(1,128)}', space=vmem, size = 0x12000, scoped, tag = 'internal scratch']
  %s0 = inlined_call_operand.vmem [shape: bf16[2,9,9,8], index: 0, kind: input, shape index: {}]
  %s1 = inlined_call_operand.vmem [shape: bf16[2,9,9,8], index: 1, kind: input, shape index: {}]
  %s2 = inlined_call_operand.vmem [shape: bf16[2,9,9,8], index: 2, kind: input, shape index: {}]
  %s3 = inlined_call_operand.vmem [shape: bf16[2,9,9,8], index: 3, kind: input, shape index: {}]
  %s4 = inlined_call_operand.vmem [shape: bf16[72,8], index: 4, kind: input, shape index: {}]
  %s5 = inlined_call_operand.vmem [shape: f32[1,8], index: 5, kind: input, shape index: {}]
  %s6 = inlined_call_operand.vmem [shape: bf16[2,64,8], index: 6, kind: output, shape index: {}]
  %s7 = sld [smem:[#allocation0]]
  $region57: #{bottleneck_forward.4} parent=0
    _
  %s9 = ssub.s32 1, %s7
  %s10 = scalar_select 0, %s9, %s7
  loop: start=0, step=1, limit=4
  $region2: #{bottleneck_forward.4} parent=0 // loop_pre_header
    _
  $region3: #{bottleneck_forward.4} parent=0 // loop_header
    %s12 = sphi 0, %s16
    %p13 = scmp.ge.s32.totalorder %s12, 4
    %s22 = sphi 0, %s24
    %s25 = sphi 0, %s22
    %s26 = sphi 0, %s25
    %s42 = sphi 0, %s26
    %s48 = sphi 0, %s50
    %s51 = sphi 0, %s48
    %s52 = sphi 0, %s51
    %s68 = sphi 0, %s52
    %s74 = sphi 0, %s76
    %s77 = sphi 0, %s74
    %s78 = sphi 0, %s77
    %s94 = sphi 0, %s78
    %s100 = sphi 0, %s102
    %s103 = sphi 0, %s100
    %s104 = sphi 0, %s103
    %s120 = sphi 0, %s104
    %s124 = sphi 0, %s124
    %s126 = sphi 0, %s124
    %s127 = sphi 0, %s126
    %s141 = sphi 0, %s127
    %s145 = sphi 0, %s145
    %s147 = sphi 0, %s145
    %s148 = sphi 0, %s147
    %s162 = sphi 0, %s148
    %s168 = sphi 0, %s170
    %s171 = sphi 0, %s168
    %s172 = sphi 0, %s171
    %s188 = sphi 0, %s172
  $region4: #{bottleneck_forward.4} parent=0 // loop_header_branch
    %15 = sbr.rel (%p13) target = $region8
  $region5: #{bottleneck_forward.4} parent=0 // loop_body
    %s17 = ssub.s32 %s12, 1
    %s18 = ssub.s32 %s12, 2
    %s19 = sadd.s32 %s12, 1
    %s20 = ssub.s32 %s12, %s19
    %p21 = scmp.eq.s32.totalorder %s20, 0
    %s23 = sadd.s32 %s22, 1
    %s24 = scalar_select %p21, %s22, %s23
    %p27 = pneg %p21
    %p28 = scmp.eq.s32.totalorder %s12, 1
    %p29 = por %p27, %p28
    %p30 = scmp.ne.s32.totalorder %s22, %s25
    %p31 = scmp.eq.s32.totalorder %s12, 0
    %p32 = por %p30, %p31
    %p33 = scmp.ne.s32.totalorder %s22, %s25
    %p34 = scmp.eq.s32.totalorder %s17, 1
    %p35 = por %p33, %p34
    %p36 = scmp.ne.s32.totalorder %s25, %s26
    %p37 = scmp.eq.s32.totalorder %s17, 0
    %p38 = por %p36, %p37
    %p39 = scmp.ne.s32.totalorder %s25, %s26
    %p40 = scmp.eq.s32.totalorder %s18, 1
    %p41 = por %p39, %p40
    %p43 = scmp.ne.s32.totalorder %s26, %s42
    %p44 = scmp.eq.s32.totalorder %s18, 0
    %p45 = por %p43, %p44
    %s46 = ssub.s32 %s12, %s19
    %p47 = scmp.eq.s32.totalorder %s46, 0
    %s49 = sadd.s32 %s48, 1
    %s50 = scalar_select %p47, %s48, %s49
    %p53 = pneg %p47
    %p54 = scmp.eq.s32.totalorder %s12, 1
    %p55 = por %p53, %p54
    %p56 = scmp.ne.s32.totalorder %s48, %s51
    %p57 = scmp.eq.s32.totalorder %s12, 0
    %p58 = por %p56, %p57
    %p59 = scmp.ne.s32.totalorder %s48, %s51
    %p60 = scmp.eq.s32.totalorder %s17, 1
    %p61 = por %p59, %p60
    %p62 = scmp.ne.s32.totalorder %s51, %s52
    %p63 = scmp.eq.s32.totalorder %s17, 0
    %p64 = por %p62, %p63
    %p65 = scmp.ne.s32.totalorder %s51, %s52
    %p66 = scmp.eq.s32.totalorder %s18, 1
    %p67 = por %p65, %p66
    %p69 = scmp.ne.s32.totalorder %s52, %s68
    %p70 = scmp.eq.s32.totalorder %s18, 0
    %p71 = por %p69, %p70
    %s72 = ssub.s32 %s12, %s19
    %p73 = scmp.eq.s32.totalorder %s72, 0
    %s75 = sadd.s32 %s74, 1
    %s76 = scalar_select %p73, %s74, %s75
    %p79 = pneg %p73
    %p80 = scmp.eq.s32.totalorder %s12, 1
    %p81 = por %p79, %p80
    %p82 = scmp.ne.s32.totalorder %s74, %s77
    %p83 = scmp.eq.s32.totalorder %s12, 0
    %p84 = por %p82, %p83
    %p85 = scmp.ne.s32.totalorder %s74, %s77
    %p86 = scmp.eq.s32.totalorder %s17, 1
    %p87 = por %p85, %p86
    %p88 = scmp.ne.s32.totalorder %s77, %s78
    %p89 = scmp.eq.s32.totalorder %s17, 0
    %p90 = por %p88, %p89
    %p91 = scmp.ne.s32.totalorder %s77, %s78
    %p92 = scmp.eq.s32.totalorder %s18, 1
    %p93 = por %p91, %p92
    %p95 = scmp.ne.s32.totalorder %s78, %s94
    %p96 = scmp.eq.s32.totalorder %s18, 0
    %p97 = por %p95, %p96
    %s98 = ssub.s32 %s12, %s19
    %p99 = scmp.eq.s32.totalorder %s98, 0
    %s101 = sadd.s32 %s100, 1
    %s102 = scalar_select %p99, %s100, %s101
    %p105 = pneg %p99
    %p106 = scmp.eq.s32.totalorder %s12, 1
    %p107 = por %p105, %p106
    %p108 = scmp.ne.s32.totalorder %s100, %s103
    %p109 = scmp.eq.s32.totalorder %s12, 0
    %p110 = por %p108, %p109
    %p111 = scmp.ne.s32.totalorder %s100, %s103
    %p112 = scmp.eq.s32.totalorder %s17, 1
    %p113 = por %p111, %p112
    %p114 = scmp.ne.s32.totalorder %s103, %s104
    %p115 = scmp.eq.s32.totalorder %s17, 0
    %p116 = por %p114, %p115
    %p117 = scmp.ne.s32.totalorder %s103, %s104
    %p118 = scmp.eq.s32.totalorder %s18, 1
    %p119 = por %p117, %p118
    %p121 = scmp.ne.s32.totalorder %s104, %s120
    %p122 = scmp.eq.s32.totalorder %s18, 0
    %p123 = por %p121, %p122
    %s125 = sadd.s32 %s124, 1
    %p128 = scmp.eq.s32.totalorder %s12, 1
    %p129 = scmp.ne.s32.totalorder %s124, %s126
    %p130 = scmp.eq.s32.totalorder %s12, 0
    %p131 = por %p129, %p130
    %p132 = scmp.ne.s32.totalorder %s124, %s126
    %p133 = scmp.eq.s32.totalorder %s17, 1
    %p134 = por %p132, %p133
    %p135 = scmp.ne.s32.totalorder %s126, %s127
    %p136 = scmp.eq.s32.totalorder %s17, 0
    %p137 = por %p135, %p136
    %p138 = scmp.ne.s32.totalorder %s126, %s127
    %p139 = scmp.eq.s32.totalorder %s18, 1
    %p140 = por %p138, %p139
    %p142 = scmp.ne.s32.totalorder %s127, %s141
    %p143 = scmp.eq.s32.totalorder %s18, 0
    %p144 = por %p142, %p143
    %s146 = sadd.s32 %s145, 1
    %p149 = scmp.eq.s32.totalorder %s12, 1
    %p150 = scmp.ne.s32.totalorder %s145, %s147
    %p151 = scmp.eq.s32.totalorder %s12, 0
    %p152 = por %p150, %p151
    %p153 = scmp.ne.s32.totalorder %s145, %s147
    %p154 = scmp.eq.s32.totalorder %s17, 1
    %p155 = por %p153, %p154
    %p156 = scmp.ne.s32.totalorder %s147, %s148
    %p157 = scmp.eq.s32.totalorder %s17, 0
    %p158 = por %p156, %p157
    %p159 = scmp.ne.s32.totalorder %s147, %s148
    %p160 = scmp.eq.s32.totalorder %s18, 1
    %p161 = por %p159, %p160
    %p163 = scmp.ne.s32.totalorder %s148, %s162
    %p164 = scmp.eq.s32.totalorder %s18, 0
    %p165 = por %p163, %p164
    %s166 = ssub.s32 %s12, %s19
    %p167 = scmp.eq.s32.totalorder %s166, 0
    %s169 = sadd.s32 %s168, 1
    %s170 = scalar_select %p167, %s168, %s169
    %p173 = pneg %p167
    %p174 = scmp.eq.s32.totalorder %s12, 1
    %p175 = por %p173, %p174
    %p176 = scmp.ne.s32.totalorder %s168, %s171
    %p177 = scmp.eq.s32.totalorder %s12, 0
    %p178 = por %p176, %p177
    %p179 = scmp.ne.s32.totalorder %s168, %s171
    %p180 = scmp.eq.s32.totalorder %s17, 1
    %p181 = por %p179, %p180
    %p182 = scmp.ne.s32.totalorder %s171, %s172
    %p183 = scmp.eq.s32.totalorder %s17, 0
    %p184 = por %p182, %p183
    %p185 = scmp.ne.s32.totalorder %s171, %s172
    %p186 = scmp.eq.s32.totalorder %s18, 1
    %p187 = por %p185, %p186
    %p189 = scmp.ne.s32.totalorder %s172, %s188
    %p190 = scmp.eq.s32.totalorder %s18, 0
    %p191 = por %p189, %p190
    %p192 = scmp.le.s32.totalorder 1, %s12
    %p193 = scmp.lt.s32.totalorder %s12, 3
    %p194 = pnand %p192, %p193
    %p195 = pneg %p194
    // Predicated region
    $region9: #{bottleneck_forward.4} parent=5 // pred_check
      _
    $region10: #{bottleneck_forward.4} parent=5 // pred_check_branch
      %197 = sbr.rel (%p194) target = $region12
    $region11: #{bottleneck_forward.4} parent=5 // pred_region
      %s198 = ssub.s32 %s12, 1
      // Predicated region
      $region13: #{bottleneck_forward.4} parent=11 // pred_check
        %p199 = pneg %p137
      $region14: #{bottleneck_forward.4} parent=11 // pred_check_branch
        %201 = sbr.rel (%p199) target = $region16
      $region15: #{bottleneck_forward.4} parent=11 // pred_region
        _
      $region16: #{bottleneck_forward.4} parent=11 // pred_fallthru
        _
      // Predicated region
      $region17: #{bottleneck_forward.4} parent=11 // pred_check
        %p202 = pneg %p158
      $region18: #{bottleneck_forward.4} parent=11 // pred_check_branch
        %204 = sbr.rel (%p202) target = $region20
      $region19: #{bottleneck_forward.4} parent=11 // pred_region
        _
      $region20: #{bottleneck_forward.4} parent=11 // pred_fallthru
        _
    $region12: #{bottleneck_forward.4} parent=5 // pred_fallthru
      _
    %p205 = scmp.lt.s32.totalorder %s12, 2
    // Predicated region
    $region21: #{bottleneck_forward.4} parent=5 // pred_check
      %p206 = pneg %p205
    $region22: #{bottleneck_forward.4} parent=5 // pred_check_branch
      %208 = sbr.rel (%p206) target = $region24
    $region23: #{bottleneck_forward.4} parent=5 // pred_region
      // Predicated region
      $region25: #{bottleneck_forward.4} parent=23 // pred_check
        %p209 = pneg %p32
      $region26: #{bottleneck_forward.4} parent=23 // pred_check_branch
        %211 = sbr.rel (%p209) target = $region28
      $region27: #{bottleneck_forward.4} parent=23 // pred_region
        %p212 = scmp.lt.s32.totalorder %s12, 1
        %s213 = scalar_select %p212, %s12, 1
        %s214 = smul.addr %s213, 18
        %s215 = smul.addr %s214, 4
        %s216 = scalar_lea.vmem %s0, %s215
      $region28: #{bottleneck_forward.4} parent=23 // pred_fallthru
        _
      // Predicated region
      $region29: #{bottleneck_forward.4} parent=23 // pred_check
        %p217 = pneg %p58
      $region30: #{bottleneck_forward.4} parent=23 // pred_check_branch
        %219 = sbr.rel (%p217) target = $region32
      $region31: #{bottleneck_forward.4} parent=23 // pred_region
        %p220 = scmp.lt.s32.totalorder %s12, 1
        %s221 = scalar_select %p220, %s12, 1
        %s222 = smul.addr %s221, 18
        %s223 = smul.addr %s222, 4
        %s224 = scalar_lea.vmem %s1, %s223
      $region32: #{bottleneck_forward.4} parent=23 // pred_fallthru
        _
      // Predicated region
      $region33: #{bottleneck_forward.4} parent=23 // pred_check
        %p225 = pneg %p84
      $region34: #{bottleneck_forward.4} parent=23 // pred_check_branch
        %227 = sbr.rel (%p225) target = $region36
      $region35: #{bottleneck_forward.4} parent=23 // pred_region
        %p228 = scmp.lt.s32.totalorder %s12, 1
        %s229 = scalar_select %p228, %s12, 1
        %s230 = smul.addr %s229, 18
        %s231 = smul.addr %s230, 4
        %s232 = scalar_lea.vmem %s2, %s231
      $region36: #{bottleneck_forward.4} parent=23 // pred_fallthru
        _
      // Predicated region
      $region37: #{bottleneck_forward.4} parent=23 // pred_check
        %p233 = pneg %p110
      $region38: #{bottleneck_forward.4} parent=23 // pred_check_branch
        %235 = sbr.rel (%p233) target = $region40
      $region39: #{bottleneck_forward.4} parent=23 // pred_region
        %p236 = scmp.lt.s32.totalorder %s12, 1
        %s237 = scalar_select %p236, %s12, 1
        %s238 = smul.addr %s237, 18
        %s239 = smul.addr %s238, 4
        %s240 = scalar_lea.vmem %s3, %s239
      $region40: #{bottleneck_forward.4} parent=23 // pred_fallthru
        _
    $region24: #{bottleneck_forward.4} parent=5 // pred_fallthru
      _
    %p241 = scmp.le.s32.totalorder 1, %s12
    %p242 = scmp.lt.s32.totalorder %s12, 3
    %p243 = pnand %p241, %p242
    %p244 = pneg %p243
    // Predicated region
    $region41: #{bottleneck_forward.4} parent=5 // pred_check
      _
    $region42: #{bottleneck_forward.4} parent=5 // pred_check_branch
      %246 = sbr.rel (%p243) target = $region44
    $region43: #{bottleneck_forward.4} parent=5 // pred_region
      %s247 = ssub.s32 %s12, 1
      %p248 = scmp.lt.s32.totalorder %s17, 1
      %s249 = scalar_select %p248, %s17, 1
      %s250 = smul.addr %s249, 18
      %s251 = smul.addr %s250, 4
      %s252 = scalar_lea.vmem %s0, %s251
      %p253 = pneg %p38
      %p254 = pneg %p35
      %p255 = scmp.lt.s32.totalorder %s17, 1
      %s256 = scalar_select %p255, %s17, 1
      %s257 = smul.addr %s256, 18
      %s258 = smul.addr %s257, 4
      %s259 = scalar_lea.vmem %s1, %s258
      %p260 = pneg %p64
      %p261 = pneg %p61
      %p262 = scmp.lt.s32.totalorder %s17, 1
      %s263 = scalar_select %p262, %s17, 1
      %s264 = smul.addr %s263, 18
      %s265 = smul.addr %s264, 4
      %s266 = scalar_lea.vmem %s2, %s265
      %p267 = pneg %p90
      %p268 = pneg %p87
      %p269 = scmp.lt.s32.totalorder %s17, 1
      %s270 = scalar_select %p269, %s17, 1
      %s271 = smul.addr %s270, 18
      %s272 = smul.addr %s271, 4
      %s273 = scalar_lea.vmem %s3, %s272
      %p274 = pneg %p116
      %p275 = pneg %p113
      %p276 = pneg %p137
      %p277 = pneg %p134
      %p278 = pneg %p158
      %p279 = pneg %p155
      %p280 = pneg %p184
      %p281 = pneg %p181
      %p282 = scmp.lt.s32.totalorder %s17, 1
      %s283 = scalar_select %p282, %s17, 1
      %s284 = smul.addr %s283, 8
      %s285 = smul.addr %s284, 4
      %s286 = scalar_lea.vmem %s6, %s285
      %p287 = scmp.lt.s32.totalorder %s17, 1
      %s288 = scalar_select %p287, %s17, 1
      %s289 = smul.addr %s288, 18
      %s290 = smul.addr %s289, 4
      %s291 = scalar_lea.vmem %s0, %s290
      %p292 = scmp.lt.s32.totalorder %s17, 1
      %s293 = scalar_select %p292, %s17, 1
      %s294 = smul.addr %s293, 18
      %s295 = smul.addr %s294, 4
      %s296 = scalar_lea.vmem %s1, %s295
      %p297 = scmp.lt.s32.totalorder %s17, 1
      %s298 = scalar_select %p297, %s17, 1
      %s299 = smul.addr %s298, 18
      %s300 = smul.addr %s299, 4
      %s301 = scalar_lea.vmem %s2, %s300
      %p302 = scmp.lt.s32.totalorder %s17, 1
      %s303 = scalar_select %p302, %s17, 1
      %s304 = smul.addr %s303, 18
      %s305 = smul.addr %s304, 4
      %s306 = scalar_lea.vmem %s3, %s305
      %p307 = scmp.lt.s32.totalorder %s17, 1
      %s308 = scalar_select %p307, %s17, 1
      %s309 = smul.addr %s308, 8
      %s310 = smul.addr %s309, 4
      %s311 = scalar_lea.vmem %s6, %s310
      %v313 = vld [vmem:[%s291] sm:$0xf]
      %v314 = vld [vmem:[%s291 + $0x8] sm:$0xf]
      %v315 = vld [vmem:[%s291 + $0x10] sm:$0xf]
      %v316 = vld [vmem:[%s291 + $0x18] sm:$0xf]
      %v317 = vld [vmem:[%s291 + $0x20] sm:$0xf]
      %v318 = vld [vmem:[%s291 + $0x28] sm:$0xf]
      %v319 = vld [vmem:[%s291 + $0x30] sm:$0xf]
      %v320 = vld [vmem:[%s291 + $0x38] sm:$0xf]
      %v321 = vld [vmem:[%s4] sm:$0xf]
      %v322 = vld [vmem:[%s296] sm:$0xf]
      %v323 = vld [vmem:[%s296 + $0x8] sm:$0xf]
      %v324 = vld [vmem:[%s296 + $0x10] sm:$0xf]
      %v325 = vld [vmem:[%s296 + $0x18] sm:$0xf]
      %v326 = vld [vmem:[%s296 + $0x20] sm:$0xf]
      %v327 = vld [vmem:[%s296 + $0x28] sm:$0xf]
      %v328 = vld [vmem:[%s296 + $0x30] sm:$0xf]
      %v329 = vld [vmem:[%s296 + $0x38] sm:$0xf]
      %v330 = vld [vmem:[%s4 + $0x4] sm:$0xf]
      %v339 = vunpack.c.l.b16 %v322
      %v340 = vunpack.c.l.b16 %v323
      %v341 = vunpack.c.l.b16 %v324
      %v342 = vunpack.c.l.b16 %v325
      %v343 = vunpack.c.l.b16 %v326
      %v344 = vunpack.c.l.b16 %v327
      %v345 = vunpack.c.l.b16 %v328
      %v346 = vunpack.c.l.b16 %v329
      %v347 = vpack.c.b16 %v340, %v339
      %v348 = vpack.c.b16 %v342, %v341
      %v349 = vpack.c.b16 %v344, %v343
      %v350 = vpack.c.b16 %v346, %v345
      %vm351 = vcmask 64512
      %v353 = vsel %vm351, %v347, 0
      %v356 = vsel %vm351, %v348, 0
      %v359 = vsel %vm351, %v349, 0
      %v362 = vsel %vm351, %v350, 0
      %vm364 = vcmask 1043456
      %v366 = vsel %vm364, %v330, 0
      %368 = vmatprep.subr.bf16.mxu0 0
      %369 = vmatpush1.bf16.msra.mxu0 %v366
      %370 = vmatprep.subr.bf16.mxu0 0
      %371 = vmatpush1.bf16.msra.mxu0 0
      %372 = vmatprep.subr.bf16.mxu0 0
      %373 = vmatpush1.bf16.msra.mxu0 0
      %374 = vmatprep.subr.bf16.mxu0 0
      %375 = vmatpush1.bf16.msra.mxu0 0
      %376 = vmatprep.subr.bf16.mxu0 0
      %377 = vmatpush1.bf16.msra.mxu0 0
      %378 = vmatprep.subr.bf16.mxu0 0
      %379 = vmatpush1.bf16.msra.mxu0 0
      %380 = vmatprep.subr.bf16.mxu0 0
      %381 = vmatpush1.bf16.msra.mxu0 0
      %382 = vmatprep.subr.bf16.mxu0 0
      %383 = vmatpush1.bf16.msra.mxu0 0
      %384 = vmatprep.subr.bf16.mxu0 0
      %385 = vmatpush1.bf16.msra.mxu0 0
      %386 = vmatprep.subr.bf16.mxu0 0
      %387 = vmatpush1.bf16.msra.mxu0 0
      %388 = vmatprep.subr.bf16.mxu0 0
      %389 = vmatpush1.bf16.msra.mxu0 0
      %390 = vmatprep.subr.bf16.mxu0 0
      %391 = vmatpush1.bf16.msra.mxu0 0
      %392 = vmatprep.subr.bf16.mxu0 0
      %393 = vmatpush1.bf16.msra.mxu0 0
      %394 = vmatprep.subr.bf16.mxu0 0
      %395 = vmatpush1.bf16.msra.mxu0 0
      %396 = vmatprep.subr.bf16.mxu0 0
      %397 = vmatpush1.bf16.msra.mxu0 0
      %398 = vmatprep.subr.bf16.mxu0 0
      %399 = vmatpush1.bf16.msra.mxu0 0
      %400 = vmatprep.mubr.bf16.mxu0 0
      %401 = vmatmul.mubr.bf16.gmra.mrb[0].mxu0 %v353
      %v402 = vpop.f32.mrb[0].mxu0
      %v403 = vadd.f32 0.0, %v402
      %v404 = vpop.f32.mrb[0].mxu0
      %v405 = vpop.f32.mrb[0].mxu0
      %v406 = vadd.f32 0.0, %v405
      %v407 = vpop.f32.mrb[0].mxu0
      %408 = vmatprep.mubr.bf16.mxu0 0
      %409 = vmatmul.mubr.bf16.gmra.mrb[0].mxu0 %v356
      %v410 = vpop.f32.mrb[0].mxu0
      %v411 = vadd.f32 0.0, %v410
      %v412 = vpop.f32.mrb[0].mxu0
      %v413 = vpop.f32.mrb[0].mxu0
      %v414 = vadd.f32 0.0, %v413
      %v415 = vpop.f32.mrb[0].mxu0
      %416 = vmatprep.mubr.bf16.mxu0 0
      %417 = vmatmul.mubr.bf16.gmra.mrb[0].mxu0 %v359
      %v418 = vpop.f32.mrb[0].mxu0
      %v419 = vadd.f32 0.0, %v418
      %v420 = vpop.f32.mrb[0].mxu0
      %v421 = vpop.f32.mrb[0].mxu0
      %v422 = vadd.f32 0.0, %v421
      %v423 = vpop.f32.mrb[0].mxu0
      %424 = vmatprep.mubr.bf16.mxu0 0
      %425 = vmatmul.mubr.bf16.gmra.mrb[0].mxu0 %v362
      %v426 = vpop.f32.mrb[0].mxu0
      %v427 = vadd.f32 0.0, %v426
      %v428 = vpop.f32.mrb[0].mxu0
      %v429 = vpop.f32.mrb[0].mxu0
      %v430 = vadd.f32 0.0, %v429
      %v431 = vpop.f32.mrb[0].mxu0
      %432 = vdwg.mxu0
      %v441 = vunpack.c.l.b16 %v313
      %v442 = vunpack.c.l.b16 %v314
      %v443 = vunpack.c.l.b16 %v315
      %v444 = vunpack.c.l.b16 %v316
      %v445 = vunpack.c.l.b16 %v317
      %v446 = vunpack.c.l.b16 %v318
      %v447 = vunpack.c.l.b16 %v319
      %v448 = vunpack.c.l.b16 %v320
      %v449 = vpack.c.b16 %v442, %v441
      %v450 = vpack.c.b16 %v444, %v443
      %v451 = vpack.c.b16 %v446, %v445
      %v452 = vpack.c.b16 %v448, %v447
      %v454 = vsel %vm351, %v449, 0
      %v457 = vsel %vm351, %v450, 0
      %v460 = vsel %vm351, %v451, 0
      %v463 = vsel %vm351, %v452, 0
      %v466 = vsel %vm364, %v321, 0
      %468 = vmatprep.subr.bf16.mxu0 0
      %469 = vmatpush1.bf16.msra.mxu0 %v466
      %470 = vmatprep.subr.bf16.mxu0 0
      %471 = vmatpush1.bf16.msra.mxu0 0
      %472 = vmatprep.subr.bf16.mxu0 0
      %473 = vmatpush1.bf16.msra.mxu0 0
      %474 = vmatprep.subr.bf16.mxu0 0
      %475 = vmatpush1.bf16.msra.mxu0 0
      %476 = vmatprep.subr.bf16.mxu0 0
      %477 = vmatpush1.bf16.msra.mxu0 0
      %478 = vmatprep.subr.bf16.mxu0 0
      %479 = vmatpush1.bf16.msra.mxu0 0
      %480 = vmatprep.subr.bf16.mxu0 0
      %481 = vmatpush1.bf16.msra.mxu0 0
      %482 = vmatprep.subr.bf16.mxu0 0
      %483 = vmatpush1.bf16.msra.mxu0 0
      %484 = vmatprep.subr.bf16.mxu0 0
      %485 = vmatpush1.bf16.msra.mxu0 0
      %486 = vmatprep.subr.bf16.mxu0 0
      %487 = vmatpush1.bf16.msra.mxu0 0
      %488 = vmatprep.subr.bf16.mxu0 0
      %489 = vmatpush1.bf16.msra.mxu0 0
      %490 = vmatprep.subr.bf16.mxu0 0
      %491 = vmatpush1.bf16.msra.mxu0 0
      %492 = vmatprep.subr.bf16.mxu0 0
      %493 = vmatpush1.bf16.msra.mxu0 0
      %494 = vmatprep.subr.bf16.mxu0 0
      %495 = vmatpush1.bf16.msra.mxu0 0
      %496 = vmatprep.subr.bf16.mxu0 0
      %497 = vmatpush1.bf16.msra.mxu0 0
      %498 = vmatprep.subr.bf16.mxu0 0
      %499 = vmatpush1.bf16.msra.mxu0 0
      %500 = vmatprep.mubr.bf16.mxu0 0
      %501 = vmatmul.mubr.bf16.gmra.mrb[0].mxu0 %v454
      %v502 = vpop.f32.mrb[0].mxu0
      %v503 = vadd.f32 %v403, %v502
      %v504 = vpop.f32.mrb[0].mxu0
      %v505 = vpop.f32.mrb[0].mxu0
      %v506 = vadd.f32 %v406, %v505
      %v507 = vpop.f32.mrb[0].mxu0
      %508 = vmatprep.mubr.bf16.mxu0 0
      %509 = vmatmul.mubr.bf16.gmra.mrb[0].mxu0 %v457
      %v510 = vpop.f32.mrb[0].mxu0
      %v511 = vadd.f32 %v411, %v510
      %v512 = vpop.f32.mrb[0].mxu0
      %v513 = vpop.f32.mrb[0].mxu0
      %v514 = vadd.f32 %v414, %v513
      %v515 = vpop.f32.mrb[0].mxu0
      %516 = vmatprep.mubr.bf16.mxu0 0
      %517 = vmatmul.mubr.bf16.gmra.mrb[0].mxu0 %v460
      %v518 = vpop.f32.mrb[0].mxu0
      %v519 = vadd.f32 %v419, %v518
      %v520 = vpop.f32.mrb[0].mxu0
      %v521 = vpop.f32.mrb[0].mxu0
      %v522 = vadd.f32 %v422, %v521
      %v523 = vpop.f32.mrb[0].mxu0
      %524 = vmatprep.mubr.bf16.mxu0 0
      %525 = vmatmul.mubr.bf16.gmra.mrb[0].mxu0 %v463
      %v526 = vpop.f32.mrb[0].mxu0
      %v527 = vadd.f32 %v427, %v526
      %v528 = vpop.f32.mrb[0].mxu0
      %v529 = vpop.f32.mrb[0].mxu0
      %v530 = vadd.f32 %v430, %v529
      %v531 = vpop.f32.mrb[0].mxu0
      %532 = vdwg.mxu0
      %v533 = vld [vmem:[%s291] sm:$0xf]
      %v534 = vld [vmem:[%s291 + $0x4] sm:$0x1]
      %v535 = vld [vmem:[%s291 + $0x8] sm:$0xf]
      %v536 = vld [vmem:[%s291 + $0xc] sm:$0x1]
      %v537 = vld [vmem:[%s291 + $0x10] sm:$0xf]
      %v538 = vld [vmem:[%s291 + $0x14] sm:$0x1]
      %v539 = vld [vmem:[%s291 + $0x18] sm:$0xf]
      %v540 = vld [vmem:[%s291 + $0x1c] sm:$0x1]
      %v541 = vld [vmem:[%s291 + $0x20] sm:$0xf]
      %v542 = vld [vmem:[%s291 + $0x24] sm:$0x1]
      %v543 = vld [vmem:[%s291 + $0x28] sm:$0xf]
      %v544 = vld [vmem:[%s291 + $0x2c] sm:$0x1]
      %v545 = vld [vmem:[%s291 + $0x30] sm:$0xf]
      %v546 = vld [vmem:[%s291 + $0x34] sm:$0x1]
      %v547 = vld [vmem:[%s291 + $0x38] sm:$0xf]
      %v548 = vld [vmem:[%s291 + $0x3c] sm:$0x1]
      %vm549 = vsmask.f32 3328
      %vm550 = vsmask.f32 7440
      %vm551 = vmor %vm549, %vm550
      %v553 = vshrl.u32 %v533, 16
      %v555 = vrot.slane %v553, 4
      %v556 = vshll.u32 %v533, 16
      %v558 = vrot.slane %v556, 5
      %v559 = vor.u32 %v555, %v558
      %v560 = vrot.slane %v559, 4
      %v562 = vshll.u32 %v534, 16
      %v564 = vrot.slane %v562, 5
      %v565 = vsel %vm551, %v560, %v564
      %v567 = vshrl.u32 %v535, 16
      %v569 = vrot.slane %v567, 4
      %v570 = vshll.u32 %v535, 16
      %v572 = vrot.slane %v570, 5
      %v573 = vor.u32 %v569, %v572
      %v574 = vrot.slane %v573, 4
      %v576 = vshll.u32 %v536, 16
      %v578 = vrot.slane %v576, 5
      %v579 = vsel %vm551, %v574, %v578
      %v581 = vshrl.u32 %v537, 16
      %v583 = vrot.slane %v581, 4
      %v584 = vshll.u32 %v537, 16
      %v586 = vrot.slane %v584, 5
      %v587 = vor.u32 %v583, %v586
      %v588 = vrot.slane %v587, 4
      %v590 = vshll.u32 %v538, 16
      %v592 = vrot.slane %v590, 5
      %v593 = vsel %vm551, %v588, %v592
      %v595 = vshrl.u32 %v539, 16
      %v597 = vrot.slane %v595, 4
      %v598 = vshll.u32 %v539, 16
      %v600 = vrot.slane %v598, 5
      %v601 = vor.u32 %v597, %v600
      %v602 = vrot.slane %v601, 4
      %v604 = vshll.u32 %v540, 16
      %v606 = vrot.slane %v604, 5
      %v607 = vsel %vm551, %v602, %v606
      %v609 = vshrl.u32 %v541, 16
      %v611 = vrot.slane %v609, 4
      %v612 = vshll.u32 %v541, 16
      %v614 = vrot.slane %v612, 5
      %v615 = vor.u32 %v611, %v614
      %v616 = vrot.slane %v615, 4
      %v618 = vshll.u32 %v542, 16
      %v620 = vrot.slane %v618, 5
      %v621 = vsel %vm551, %v616, %v620
      %v623 = vshrl.u32 %v543, 16
      %v625 = vrot.slane %v623, 4
      %v626 = vshll.u32 %v543, 16
      %v628 = vrot.slane %v626, 5
      %v629 = vor.u32 %v625, %v628
      %v630 = vrot.slane %v629, 4
      %v632 = vshll.u32 %v544, 16
      %v634 = vrot.slane %v632, 5
      %v635 = vsel %vm551, %v630, %v634
      %v637 = vshrl.u32 %v545, 16
      %v639 = vrot.slane %v637, 4
      %v640 = vshll.u32 %v545, 16
      %v642 = vrot.slane %v640, 5
      %v643 = vor.u32 %v639, %v642
      %v644 = vrot.slane %v643, 4
      %v646 = vshll.u32 %v546, 16
      %v648 = vrot.slane %v646, 5
      %v649 = vsel %vm551, %v644, %v648
      %v651 = vshrl.u32 %v547, 16
      %v653 = vrot.slane %v651, 4
      %v654 = vshll.u32 %v547, 16
      %v656 = vrot.slane %v654, 5
      %v657 = vor.u32 %v653, %v656
      %v658 = vrot.slane %v657, 4
      %v660 = vshll.u32 %v548, 16
      %v662 = vrot.slane %v660, 5
      %v663 = vsel %vm551, %v658, %v662
      %v664 = vld [vmem:[%s4 + $0x8] sm:$0xf]
      %v665 = vunpack.c.l.b16 %v565
      %v666 = vunpack.c.l.b16 %v579
      %v667 = vunpack.c.l.b16 %v593
      %v668 = vunpack.c.l.b16 %v607
      %v669 = vunpack.c.l.b16 %v621
      %v670 = vunpack.c.l.b16 %v635
      %v671 = vunpack.c.l.b16 %v649
      %v672 = vunpack.c.l.b16 %v663
      %v673 = vpack.c.b16 %v666, %v665
      %v674 = vpack.c.b16 %v668, %v667
      %v675 = vpack.c.b16 %v670, %v669
      %v676 = vpack.c.b16 %v672, %v671
      %v678 = vsel %vm351, %v673, 0
      %v681 = vsel %vm351, %v674, 0
      %v684 = vsel %vm351, %v675, 0
      %v687 = vsel %vm351, %v676, 0
      %v690 = vsel %vm364, %v664, 0
      %692 = vmatprep.subr.bf16.mxu0 0
      %693 = vmatpush1.bf16.msra.mxu0 %v690
      %694 = vmatprep.subr.bf16.mxu0 0
      %695 = vmatpush1.bf16.msra.mxu0 0
      %696 = vmatprep.subr.bf16.mxu0 0
      %697 = vmatpush1.bf16.msra.mxu0 0
      %698 = vmatprep.subr.bf16.mxu0 0
      %699 = vmatpush1.bf16.msra.mxu0 0
      %700 = vmatprep.subr.bf16.mxu0 0
      %701 = vmatpush1.bf16.msra.mxu0 0
      %702 = vmatprep.subr.bf16.mxu0 0
      %703 = vmatpush1.bf16.msra.mxu0 0
      %704 = vmatprep.subr.bf16.mxu0 0
      %705 = vmatpush1.bf16.msra.mxu0 0
      %706 = vmatprep.subr.bf16.mxu0 0
      %707 = vmatpush1.bf16.msra.mxu0 0
      %708 = vmatprep.subr.bf16.mxu0 0
      %709 = vmatpush1.bf16.msra.mxu0 0
      %710 = vmatprep.subr.bf16.mxu0 0
      %711 = vmatpush1.bf16.msra.mxu0 0
      %712 = vmatprep.subr.bf16.mxu0 0
      %713 = vmatpush1.bf16.msra.mxu0 0
      %714 = vmatprep.subr.bf16.mxu0 0
      %715 = vmatpush1.bf16.msra.mxu0 0
      %716 = vmatprep.subr.bf16.mxu0 0
      %717 = vmatpush1.bf16.msra.mxu0 0
      %718 = vmatprep.subr.bf16.mxu0 0
      %719 = vmatpush1.bf16.msra.mxu0 0
      %720 = vmatprep.subr.bf16.mxu0 0
      %721 = vmatpush1.bf16.msra.mxu0 0
      %722 = vmatprep.subr.bf16.mxu0 0
      %723 = vmatpush1.bf16.msra.mxu0 0
      %724 = vmatprep.mubr.bf16.mxu0 0
      %725 = vmatmul.mubr.bf16.gmra.mrb[0].mxu0 %v678
      %v726 = vpop.f32.mrb[0].mxu0
      %v727 = vadd.f32 0.0, %v726
      %v728 = vpop.f32.mrb[0].mxu0
      %v729 = vpop.f32.mrb[0].mxu0
      %v730 = vadd.f32 0.0, %v729
      %v731 = vpop.f32.mrb[0].mxu0
      %732 = vmatprep.mubr.bf16.mxu0 0
      %733 = vmatmul.mubr.bf16.gmra.mrb[0].mxu0 %v681
      %v734 = vpop.f32.mrb[0].mxu0
      %v735 = vadd.f32 0.0, %v734
      %v736 = vpop.f32.mrb[0].mxu0
      %v737 = vpop.f32.mrb[0].mxu0
      %v738 = vadd.f32 0.0, %v737
      %v739 = vpop.f32.mrb[0].mxu0
      %740 = vmatprep.mubr.bf16.mxu0 0
      %741 = vmatmul.mubr.bf16.gmra.mrb[0].mxu0 %v684
      %v742 = vpop.f32.mrb[0].mxu0
      %v743 = vadd.f32 0.0, %v742
      %v744 = vpop.f32.mrb[0].mxu0
      %v745 = vpop.f32.mrb[0].mxu0
      %v746 = vadd.f32 0.0, %v745
      %v747 = vpop.f32.mrb[0].mxu0
      %748 = vmatprep.mubr.bf16.mxu0 0
      %749 = vmatmul.mubr.bf16.gmra.mrb[0].mxu0 %v687
      %v750 = vpop.f32.mrb[0].mxu0
      %v751 = vadd.f32 0.0, %v750
      %v752 = vpop.f32.mrb[0].mxu0
      %v753 = vpop.f32.mrb[0].mxu0
      %v754 = vadd.f32 0.0, %v753
      %v755 = vpop.f32.mrb[0].mxu0
      %756 = vdwg.mxu0
      %v757 = vadd.f32 %v503, %v727
      %v758 = vadd.f32 %v506, %v730
      %v759 = vadd.f32 %v511, %v735
      %v760 = vadd.f32 %v514, %v738
      %v761 = vadd.f32 %v519, %v743
      %v762 = vadd.f32 %v522, %v746
      %v763 = vadd.f32 %v527, %v751
      %v764 = vadd.f32 %v530, %v754
      %v765 = vld [vmem:[%s301] sm:$0xf]
      %v766 = vld [vmem:[%s301 + $0x8] sm:$0xf]
      %v767 = vld [vmem:[%s301 + $0x10] sm:$0xf]
      %v768 = vld [vmem:[%s301 + $0x18] sm:$0xf]
      %v769 = vld [vmem:[%s301 + $0x20] sm:$0xf]
      %v770 = vld [vmem:[%s301 + $0x28] sm:$0xf]
      %v771 = vld [vmem:[%s301 + $0x30] sm:$0xf]
      %v772 = vld [vmem:[%s301 + $0x38] sm:$0xf]
      %v773 = vld [vmem:[%s4 + $0xc] sm:$0xf]
      %v782 = vunpack.c.l.b16 %v765
      %v783 = vunpack.c.l.b16 %v766
      %v784 = vunpack.c.l.b16 %v767
      %v785 = vunpack.c.l.b16 %v768
      %v786 = vunpack.c.l.b16 %v769
      %v787 = vunpack.c.l.b16 %v770
      %v788 = vunpack.c.l.b16 %v771
      %v789 = vunpack.c.l.b16 %v772
      %v790 = vpack.c.b16 %v783, %v782
      %v791 = vpack.c.b16 %v785, %v784
      %v792 = vpack.c.b16 %v787, %v786
      %v793 = vpack.c.b16 %v789, %v788
      %v795 = vsel %vm351, %v790, 0
      %v798 = vsel %vm351, %v791, 0
      %v801 = vsel %vm351, %v792, 0
      %v804 = vsel %vm351, %v793, 0
      %v807 = vsel %vm364, %v773, 0
      %809 = vmatprep.subr.bf16.mxu0 0
      %810 = vmatpush1.bf16.msra.mxu0 %v807
      %811 = vmatprep.subr.bf16.mxu0 0
      %812 = vmatpush1.bf16.msra.mxu0 0
      %813 = vmatprep.subr.bf16.mxu0 0
      %814 = vmatpush1.bf16.msra.mxu0 0
      %815 = vmatprep.subr.bf16.mxu0 0
      %816 = vmatpush1.bf16.msra.mxu0 0
      %817 = vmatprep.subr.bf16.mxu0 0
      %818 = vmatpush1.bf16.msra.mxu0 0
      %819 = vmatprep.subr.bf16.mxu0 0
      %820 = vmatpush1.bf16.msra.mxu0 0
      %821 = vmatprep.subr.bf16.mxu0 0
      %822 = vmatpush1.bf16.msra.mxu0 0
      %823 = vmatprep.subr.bf16.mxu0 0
      %824 = vmatpush1.bf16.msra.mxu0 0
      %825 = vmatprep.subr.bf16.mxu0 0
      %826 = vmatpush1.bf16.msra.mxu0 0
      %827 = vmatprep.subr.bf16.mxu0 0
      %828 = vmatpush1.bf16.msra.mxu0 0
      %829 = vmatprep.subr.bf16.mxu0 0
      %830 = vmatpush1.bf16.msra.mxu0 0
      %831 = vmatprep.subr.bf16.mxu0 0
      %832 = vmatpush1.bf16.msra.mxu0 0
      %833 = vmatprep.subr.bf16.mxu0 0
      %834 = vmatpush1.bf16.msra.mxu0 0
      %835 = vmatprep.subr.bf16.mxu0 0
      %836 = vmatpush1.bf16.msra.mxu0 0
      %837 = vmatprep.subr.bf16.mxu0 0
      %838 = vmatpush1.bf16.msra.mxu0 0
      %839 = vmatprep.subr.bf16.mxu0 0
      %840 = vmatpush1.bf16.msra.mxu0 0
      %841 = vmatprep.mubr.bf16.mxu0 0
      %842 = vmatmul.mubr.bf16.gmra.mrb[0].mxu0 %v795
      %v843 = vpop.f32.mrb[0].mxu0
      %v844 = vadd.f32 0.0, %v843
      %v845 = vpop.f32.mrb[0].mxu0
      %v846 = vpop.f32.mrb[0].mxu0
      %v847 = vadd.f32 0.0, %v846
      %v848 = vpop.f32.mrb[0].mxu0
      %849 = vmatprep.mubr.bf16.mxu0 0
      %850 = vmatmul.mubr.bf16.gmra.mrb[0].mxu0 %v798
      %v851 = vpop.f32.mrb[0].mxu0
      %v852 = vadd.f32 0.0, %v851
      %v853 = vpop.f32.mrb[0].mxu0
      %v854 = vpop.f32.mrb[0].mxu0
      %v855 = vadd.f32 0.0, %v854
      %v856 = vpop.f32.mrb[0].mxu0
      %857 = vmatprep.mubr.bf16.mxu0 0
      %858 = vmatmul.mubr.bf16.gmra.mrb[0].mxu0 %v801
      %v859 = vpop.f32.mrb[0].mxu0
      %v860 = vadd.f32 0.0, %v859
      %v861 = vpop.f32.mrb[0].mxu0
      %v862 = vpop.f32.mrb[0].mxu0
      %v863 = vadd.f32 0.0, %v862
      %v864 = vpop.f32.mrb[0].mxu0
      %865 = vmatprep.mubr.bf16.mxu0 0
      %866 = vmatmul.mubr.bf16.gmra.mrb[0].mxu0 %v804
      %v867 = vpop.f32.mrb[0].mxu0
      %v868 = vadd.f32 0.0, %v867
      %v869 = vpop.f32.mrb[0].mxu0
      %v870 = vpop.f32.mrb[0].mxu0
      %v871 = vadd.f32 0.0, %v870
      %v872 = vpop.f32.mrb[0].mxu0
      %873 = vdwg.mxu0
      %v874 = vadd.f32 %v757, %v844
      %v875 = vadd.f32 %v758, %v847
      %v876 = vadd.f32 %v759, %v852
      %v877 = vadd.f32 %v760, %v855
      %v878 = vadd.f32 %v761, %v860
      %v879 = vadd.f32 %v762, %v863
      %v880 = vadd.f32 %v763, %v868
      %v881 = vadd.f32 %v764, %v871
      %v882 = vld [vmem:[%s306] sm:$0xf]
      %v883 = vld [vmem:[%s306 + $0x8] sm:$0xf]
      %v884 = vld [vmem:[%s306 + $0x10] sm:$0xf]
      %v885 = vld [vmem:[%s306 + $0x18] sm:$0xf]
      %v886 = vld [vmem:[%s306 + $0x20] sm:$0xf]
      %v887 = vld [vmem:[%s306 + $0x28] sm:$0xf]
      %v888 = vld [vmem:[%s306 + $0x30] sm:$0xf]
      %v889 = vld [vmem:[%s306 + $0x38] sm:$0xf]
      %v890 = vld [vmem:[%s4 + $0x10] sm:$0xf]
      %v899 = vunpack.c.l.b16 %v882
      %v900 = vunpack.c.l.b16 %v883
      %v901 = vunpack.c.l.b16 %v884
      %v902 = vunpack.c.l.b16 %v885
      %v903 = vunpack.c.l.b16 %v886
      %v904 = vunpack.c.l.b16 %v887
      %v905 = vunpack.c.l.b16 %v888
      %v906 = vunpack.c.l.b16 %v889
      %v907 = vpack.c.b16 %v900, %v899
      %v908 = vpack.c.b16 %v902, %v901
      %v909 = vpack.c.b16 %v904, %v903
      %v910 = vpack.c.b16 %v906, %v905
      %v912 = vsel %vm351, %v907, 0
      %v915 = vsel %vm351, %v908, 0
      %v918 = vsel %vm351, %v909, 0
      %v921 = vsel %vm351, %v910, 0
      %v924 = vsel %vm364, %v890, 0
      %926 = vmatprep.subr.bf16.mxu0 0
      %927 = vmatpush1.bf16.msra.mxu0 %v924
      %928 = vmatprep.subr.bf16.mxu0 0
      %929 = vmatpush1.bf16.msra.mxu0 0
      %930 = vmatprep.subr.bf16.mxu0 0
      %931 = vmatpush1.bf16.msra.mxu0 0
      %932 = vmatprep.subr.bf16.mxu0 0
      %933 = vmatpush1.bf16.msra.mxu0 0
      %934 = vmatprep.subr.bf16.mxu0 0
      %935 = vmatpush1.bf16.msra.mxu0 0
      %936 = vmatprep.subr.bf16.mxu0 0
      %937 = vmatpush1.bf16.msra.mxu0 0
      %938 = vmatprep.subr.bf16.mxu0 0
      %939 = vmatpush1.bf16.msra.mxu0 0
      %940 = vmatprep.subr.bf16.mxu0 0
      %941 = vmatpush1.bf16.msra.mxu0 0
      %942 = vmatprep.subr.bf16.mxu0 0
      %943 = vmatpush1.bf16.msra.mxu0 0
      %944 = vmatprep.subr.bf16.mxu0 0
      %945 = vmatpush1.bf16.msra.mxu0 0
      %946 = vmatprep.subr.bf16.mxu0 0
      %947 = vmatpush1.bf16.msra.mxu0 0
      %948 = vmatprep.subr.bf16.mxu0 0
      %949 = vmatpush1.bf16.msra.mxu0 0
      %950 = vmatprep.subr.bf16.mxu0 0
      %951 = vmatpush1.bf16.msra.mxu0 0
      %952 = vmatprep.subr.bf16.mxu0 0
      %953 = vmatpush1.bf16.msra.mxu0 0
      %954 = vmatprep.subr.bf16.mxu0 0
      %955 = vmatpush1.bf16.msra.mxu0 0
      %956 = vmatprep.subr.bf16.mxu0 0
      %957 = vmatpush1.bf16.msra.mxu0 0
      %958 = vmatprep.mubr.bf16.mxu0 0
      %959 = vmatmul.mubr.bf16.gmra.mrb[0].mxu0 %v912
      %v960 = vpop.f32.mrb[0].mxu0
      %v961 = vadd.f32 0.0, %v960
      %v962 = vpop.f32.mrb[0].mxu0
      %v963 = vpop.f32.mrb[0].mxu0
      %v964 = vadd.f32 0.0, %v963
      %v965 = vpop.f32.mrb[0].mxu0
      %966 = vmatprep.mubr.bf16.mxu0 0
      %967 = vmatmul.mubr.bf16.gmra.mrb[0].mxu0 %v915
      %v968 = vpop.f32.mrb[0].mxu0
      %v969 = vadd.f32 0.0, %v968
      %v970 = vpop.f32.mrb[0].mxu0
      %v971 = vpop.f32.mrb[0].mxu0
      %v972 = vadd.f32 0.0, %v971
      %v973 = vpop.f32.mrb[0].mxu0
      %974 = vmatprep.mubr.bf16.mxu0 0
      %975 = vmatmul.mubr.bf16.gmra.mrb[0].mxu0 %v918
      %v976 = vpop.f32.mrb[0].mxu0
      %v977 = vadd.f32 0.0, %v976
      %v978 = vpop.f32.mrb[0].mxu0
      %v979 = vpop.f32.mrb[0].mxu0
      %v980 = vadd.f32 0.0, %v979
      %v981 = vpop.f32.mrb[0].mxu0
      %982 = vmatprep.mubr.bf16.mxu0 0
      %983 = vmatmul.mubr.bf16.gmra.mrb[0].mxu0 %v921
      %v984 = vpop.f32.mrb[0].mxu0
      %v985 = vadd.f32 0.0, %v984
      %v986 = vpop.f32.mrb[0].mxu0
      %v987 = vpop.f32.mrb[0].mxu0
      %v988 = vadd.f32 0.0, %v987
      %v989 = vpop.f32.mrb[0].mxu0
      %990 = vdwg.mxu0
      %v991 = vadd.f32 %v874, %v961
      %v992 = vadd.f32 %v875, %v964
      %v993 = vadd.f32 %v876, %v969
      %v994 = vadd.f32 %v877, %v972
      %v995 = vadd.f32 %v878, %v977
      %v996 = vadd.f32 %v879, %v980
      %v997 = vadd.f32 %v880, %v985
      %v998 = vadd.f32 %v881, %v988
      %v999 = vld [vmem:[%s301] sm:$0xf]
      %v1000 = vld [vmem:[%s301 + $0x4] sm:$0x1]
      %v1001 = vld [vmem:[%s301 + $0x8] sm:$0xf]
      %v1002 = vld [vmem:[%s301 + $0xc] sm:$0x1]
      %v1003 = vld [vmem:[%s301 + $0x10] sm:$0xf]
      %v1004 = vld [vmem:[%s301 + $0x14] sm:$0x1]
      %v1005 = vld [vmem:[%s301 + $0x18] sm:$0xf]
      %v1006 = vld [vmem:[%s301 + $0x1c] sm:$0x1]
      %v1007 = vld [vmem:[%s301 + $0x20] sm:$0xf]
      %v1008 = vld [vmem:[%s301 + $0x24] sm:$0x1]
      %v1009 = vld [vmem:[%s301 + $0x28] sm:$0xf]
      %v1010 = vld [vmem:[%s301 + $0x2c] sm:$0x1]
      %v1011 = vld [vmem:[%s301 + $0x30] sm:$0xf]
      %v1012 = vld [vmem:[%s301 + $0x34] sm:$0x1]
      %v1013 = vld [vmem:[%s301 + $0x38] sm:$0xf]
      %v1014 = vld [vmem:[%s301 + $0x3c] sm:$0x1]
      %v1016 = vshrl.u32 %v999, 16
      %v1018 = vrot.slane %v1016, 4
      %v1019 = vshll.u32 %v999, 16
      %v1021 = vrot.slane %v1019, 5
      %v1022 = vor.u32 %v1018, %v1021
      %v1023 = vrot.slane %v1022, 4
      %v1025 = vshll.u32 %v1000, 16
      %v1027 = vrot.slane %v1025, 5
      %v1028 = vsel %vm551, %v1023, %v1027
      %v1030 = vshrl.u32 %v1001, 16
      %v1032 = vrot.slane %v1030, 4
      %v1033 = vshll.u32 %v1001, 16
      %v1035 = vrot.slane %v1033, 5
      %v1036 = vor.u32 %v1032, %v1035
      %v1037 = vrot.slane %v1036, 4
      %v1039 = vshll.u32 %v1002, 16
      %v1041 = vrot.slane %v1039, 5
      %v1042 = vsel %vm551, %v1037, %v1041
      %v1044 = vshrl.u32 %v1003, 16
      %v1046 = vrot.slane %v1044, 4
      %v1047 = vshll.u32 %v1003, 16
      %v1049 = vrot.slane %v1047, 5
      %v1050 = vor.u32 %v1046, %v1049
      %v1051 = vrot.slane %v1050, 4
      %v1053 = vshll.u32 %v1004, 16
      %v1055 = vrot.slane %v1053, 5
      %v1056 = vsel %vm551, %v1051, %v1055
      %v1058 = vshrl.u32 %v1005, 16
      %v1060 = vrot.slane %v1058, 4
      %v1061 = vshll.u32 %v1005, 16
      %v1063 = vrot.slane %v1061, 5
      %v1064 = vor.u32 %v1060, %v1063
      %v1065 = vrot.slane %v1064, 4
      %v1067 = vshll.u32 %v1006, 16
      %v1069 = vrot.slane %v1067, 5
      %v1070 = vsel %vm551, %v1065, %v1069
      %v1072 = vshrl.u32 %v1007, 16
      %v1074 = vrot.slane %v1072, 4
      %v1075 = vshll.u32 %v1007, 16
      %v1077 = vrot.slane %v1075, 5
      %v1078 = vor.u32 %v1074, %v1077
      %v1079 = vrot.slane %v1078, 4
      %v1081 = vshll.u32 %v1008, 16
      %v1083 = vrot.slane %v1081, 5
      %v1084 = vsel %vm551, %v1079, %v1083
      %v1086 = vshrl.u32 %v1009, 16
      %v1088 = vrot.slane %v1086, 4
      %v1089 = vshll.u32 %v1009, 16
      %v1091 = vrot.slane %v1089, 5
      %v1092 = vor.u32 %v1088, %v1091
      %v1093 = vrot.slane %v1092, 4
      %v1095 = vshll.u32 %v1010, 16
      %v1097 = vrot.slane %v1095, 5
      %v1098 = vsel %vm551, %v1093, %v1097
      %v1100 = vshrl.u32 %v1011, 16
      %v1102 = vrot.slane %v1100, 4
      %v1103 = vshll.u32 %v1011, 16
      %v1105 = vrot.slane %v1103, 5
      %v1106 = vor.u32 %v1102, %v1105
      %v1107 = vrot.slane %v1106, 4
      %v1109 = vshll.u32 %v1012, 16
      %v1111 = vrot.slane %v1109, 5
      %v1112 = vsel %vm551, %v1107, %v1111
      %v1114 = vshrl.u32 %v1013, 16
      %v1116 = vrot.slane %v1114, 4
      %v1117 = vshll.u32 %v1013, 16
      %v1119 = vrot.slane %v1117, 5
      %v1120 = vor.u32 %v1116, %v1119
      %v1121 = vrot.slane %v1120, 4
      %v1123 = vshll.u32 %v1014, 16
      %v1125 = vrot.slane %v1123, 5
      %v1126 = vsel %vm551, %v1121, %v1125
      %v1127 = vld [vmem:[%s4 + $0x14] sm:$0xf]
      %v1128 = vunpack.c.l.b16 %v1028
      %v1129 = vunpack.c.l.b16 %v1042
      %v1130 = vunpack.c.l.b16 %v1056
      %v1131 = vunpack.c.l.b16 %v1070
      %v1132 = vunpack.c.l.b16 %v1084
      %v1133 = vunpack.c.l.b16 %v1098
      %v1134 = vunpack.c.l.b16 %v1112
      %v1135 = vunpack.c.l.b16 %v1126
      %v1136 = vpack.c.b16 %v1129, %v1128
      %v1137 = vpack.c.b16 %v1131, %v1130
      %v1138 = vpack.c.b16 %v1133, %v1132
      %v1139 = vpack.c.b16 %v1135, %v1134
      %v1141 = vsel %vm351, %v1136, 0
      %v1144 = vsel %vm351, %v1137, 0
      %v1147 = vsel %vm351, %v1138, 0
      %v1150 = vsel %vm351, %v1139, 0
      %v1153 = vsel %vm364, %v1127, 0
      %1155 = vmatprep.subr.bf16.mxu0 0
      %1156 = vmatpush1.bf16.msra.mxu0 %v1153
      %1157 = vmatprep.subr.bf16.mxu0 0
      %1158 = vmatpush1.bf16.msra.mxu0 0
      %1159 = vmatprep.subr.bf16.mxu0 0
      %1160 = vmatpush1.bf16.msra.mxu0 0
      %1161 = vmatprep.subr.bf16.mxu0 0
      %1162 = vmatpush1.bf16.msra.mxu0 0
      %1163 = vmatprep.subr.bf16.mxu0 0
      %1164 = vmatpush1.bf16.msra.mxu0 0
      %1165 = vmatprep.subr.bf16.mxu0 0
      %1166 = vmatpush1.bf16.msra.mxu0 0
      %1167 = vmatprep.subr.bf16.mxu0 0
      %1168 = vmatpush1.bf16.msra.mxu0 0
      %1169 = vmatprep.subr.bf16.mxu0 0
      %1170 = vmatpush1.bf16.msra.mxu0 0
      %1171 = vmatprep.subr.bf16.mxu0 0
      %1172 = vmatpush1.bf16.msra.mxu0 0
      %1173 = vmatprep.subr.bf16.mxu0 0
      %1174 = vmatpush1.bf16.msra.mxu0 0
      %1175 = vmatprep.subr.bf16.mxu0 0
      %1176 = vmatpush1.bf16.msra.mxu0 0
      %1177 = vmatprep.subr.bf16.mxu0 0
      %1178 = vmatpush1.bf16.msra.mxu0 0
      %1179 = vmatprep.subr.bf16.mxu0 0
      %1180 = vmatpush1.bf16.msra.mxu0 0
      %1181 = vmatprep.subr.bf16.mxu0 0
      %1182 = vmatpush1.bf16.msra.mxu0 0
      %1183 = vmatprep.subr.bf16.mxu0 0
      %1184 = vmatpush1.bf16.msra.mxu0 0
      %1185 = vmatprep.subr.bf16.mxu0 0
      %1186 = vmatpush1.bf16.msra.mxu0 0
      %1187 = vmatprep.mubr.bf16.mxu0 0
      %1188 = vmatmul.mubr.bf16.gmra.mrb[0].mxu0 %v1141
      %v1189 = vpop.f32.mrb[0].mxu0
      %v1190 = vadd.f32 0.0, %v1189
      %v1191 = vpop.f32.mrb[0].mxu0
      %v1192 = vpop.f32.mrb[0].mxu0
      %v1193 = vadd.f32 0.0, %v1192
      %v1194 = vpop.f32.mrb[0].mxu0
      %1195 = vmatprep.mubr.bf16.mxu0 0
      %1196 = vmatmul.mubr.bf16.gmra.mrb[0].mxu0 %v1144
      %v1197 = vpop.f32.mrb[0].mxu0
      %v1198 = vadd.f32 0.0, %v1197
      %v1199 = vpop.f32.mrb[0].mxu0
      %v1200 = vpop.f32.mrb[0].mxu0
      %v1201 = vadd.f32 0.0, %v1200
      %v1202 = vpop.f32.mrb[0].mxu0
      %1203 = vmatprep.mubr.bf16.mxu0 0
      %1204 = vmatmul.mubr.bf16.gmra.mrb[0].mxu0 %v1147
      %v1205 = vpop.f32.mrb[0].mxu0
      %v1206 = vadd.f32 0.0, %v1205
      %v1207 = vpop.f32.mrb[0].mxu0
      %v1208 = vpop.f32.mrb[0].mxu0
      %v1209 = vadd.f32 0.0, %v1208
      %v1210 = vpop.f32.mrb[0].mxu0
      %1211 = vmatprep.mubr.bf16.mxu0 0
      %1212 = vmatmul.mubr.bf16.gmra.mrb[0].mxu0 %v1150
      %v1213 = vpop.f32.mrb[0].mxu0
      %v1214 = vadd.f32 0.0, %v1213
      %v1215 = vpop.f32.mrb[0].mxu0
      %v1216 = vpop.f32.mrb[0].mxu0
      %v1217 = vadd.f32 0.0, %v1216
      %v1218 = vpop.f32.mrb[0].mxu0
      %1219 = vdwg.mxu0
      %v1220 = vadd.f32 %v991, %v1190
      %v1221 = vadd.f32 %v992, %v1193
      %v1222 = vadd.f32 %v993, %v1198
      %v1223 = vadd.f32 %v994, %v1201
      %v1224 = vadd.f32 %v995, %v1206
      %v1225 = vadd.f32 %v996, %v1209
      %v1226 = vadd.f32 %v997, %v1214
      %v1227 = vadd.f32 %v998, %v1217
      %s1228 = scalar_lea.vmem %s291, 8
      %v1229 = vld [vmem:[%s1228] sm:$0xf]
      %v1230 = vld [vmem:[%s1228 + $0x8] sm:$0xf]
      %v1231 = vld [vmem:[%s1228 + $0x10] sm:$0xf]
      %v1232 = vld [vmem:[%s1228 + $0x18] sm:$0xf]
      %v1233 = vld [vmem:[%s1228 + $0x20] sm:$0xf]
      %v1234 = vld [vmem:[%s1228 + $0x28] sm:$0xf]
      %v1235 = vld [vmem:[%s1228 + $0x30] sm:$0xf]
      %v1236 = vld [vmem:[%s1228 + $0x38] sm:$0xf]
      %v1237 = vld [vmem:[%s4 + $0x18] sm:$0xf]
      %v1246 = vunpack.c.l.b16 %v1229
      %v1247 = vunpack.c.l.b16 %v1230
      %v1248 = vunpack.c.l.b16 %v1231
      %v1249 = vunpack.c.l.b16 %v1232
      %v1250 = vunpack.c.l.b16 %v1233
      %v1251 = vunpack.c.l.b16 %v1234
      %v1252 = vunpack.c.l.b16 %v1235
      %v1253 = vunpack.c.l.b16 %v1236
      %v1254 = vpack.c.b16 %v1247, %v1246
      %v1255 = vpack.c.b16 %v1249, %v1248
      %v1256 = vpack.c.b16 %v1251, %v1250
      %v1257 = vpack.c.b16 %v1253, %v1252
      %v1259 = vsel %vm351, %v1254, 0
      %v1262 = vsel %vm351, %v1255, 0
      %v1265 = vsel %vm351, %v1256, 0
      %v1268 = vsel %vm351, %v1257, 0
      %v1271 = vsel %vm364, %v1237, 0
      %1273 = vmatprep.subr.bf16.mxu0 0
      %1274 = vmatpush1.bf16.msra.mxu0 %v1271
      %1275 = vmatprep.subr.bf16.mxu0 0
      %1276 = vmatpush1.bf16.msra.mxu0 0
      %1277 = vmatprep.subr.bf16.mxu0 0
      %1278 = vmatpush1.bf16.msra.mxu0 0
      %1279 = vmatprep.subr.bf16.mxu0 0
      %1280 = vmatpush1.bf16.msra.mxu0 0
      %1281 = vmatprep.subr.bf16.mxu0 0
      %1282 = vmatpush1.bf16.msra.mxu0 0
      %1283 = vmatprep.subr.bf16.mxu0 0
      %1284 = vmatpush1.bf16.msra.mxu0 0
      %1285 = vmatprep.subr.bf16.mxu0 0
      %1286 = vmatpush1.bf16.msra.mxu0 0
      %1287 = vmatprep.subr.bf16.mxu0 0
      %1288 = vmatpush1.bf16.msra.mxu0 0
      %1289 = vmatprep.subr.bf16.mxu0 0
      %1290 = vmatpush1.bf16.msra.mxu0 0
      %1291 = vmatprep.subr.bf16.mxu0 0
      %1292 = vmatpush1.bf16.msra.mxu0 0
      %1293 = vmatprep.subr.bf16.mxu0 0
      %1294 = vmatpush1.bf16.msra.mxu0 0
      %1295 = vmatprep.subr.bf16.mxu0 0
      %1296 = vmatpush1.bf16.msra.mxu0 0
      %1297 = vmatprep.subr.bf16.mxu0 0
      %1298 = vmatpush1.bf16.msra.mxu0 0
      %1299 = vmatprep.subr.bf16.mxu0 0
      %1300 = vmatpush1.bf16.msra.mxu0 0
      %1301 = vmatprep.subr.bf16.mxu0 0
      %1302 = vmatpush1.bf16.msra.mxu0 0
      %1303 = vmatprep.subr.bf16.mxu0 0
      %1304 = vmatpush1.bf16.msra.mxu0 0
      %1305 = vmatprep.mubr.bf16.mxu0 0
      %1306 = vmatmul.mubr.bf16.gmra.mrb[0].mxu0 %v1259
      %v1307 = vpop.f32.mrb[0].mxu0
      %v1308 = vadd.f32 0.0, %v1307
      %v1309 = vpop.f32.mrb[0].mxu0
      %v1310 = vpop.f32.mrb[0].mxu0
      %v1311 = vadd.f32 0.0, %v1310
      %v1312 = vpop.f32.mrb[0].mxu0
      %1313 = vmatprep.mubr.bf16.mxu0 0
      %1314 = vmatmul.mubr.bf16.gmra.mrb[0].mxu0 %v1262
      %v1315 = vpop.f32.mrb[0].mxu0
      %v1316 = vadd.f32 0.0, %v1315
      %v1317 = vpop.f32.mrb[0].mxu0
      %v1318 = vpop.f32.mrb[0].mxu0
      %v1319 = vadd.f32 0.0, %v1318
      %v1320 = vpop.f32.mrb[0].mxu0
      %1321 = vmatprep.mubr.bf16.mxu0 0
      %1322 = vmatmul.mubr.bf16.gmra.mrb[0].mxu0 %v1265
      %v1323 = vpop.f32.mrb[0].mxu0
      %v1324 = vadd.f32 0.0, %v1323
      %v1325 = vpop.f32.mrb[0].mxu0
      %v1326 = vpop.f32.mrb[0].mxu0
      %v1327 = vadd.f32 0.0, %v1326
      %v1328 = vpop.f32.mrb[0].mxu0
      %1329 = vmatprep.mubr.bf16.mxu0 0
      %1330 = vmatmul.mubr.bf16.gmra.mrb[0].mxu0 %v1268
      %v1331 = vpop.f32.mrb[0].mxu0
      %v1332 = vadd.f32 0.0, %v1331
      %v1333 = vpop.f32.mrb[0].mxu0
      %v1334 = vpop.f32.mrb[0].mxu0
      %v1335 = vadd.f32 0.0, %v1334
      %v1336 = vpop.f32.mrb[0].mxu0
      %1337 = vdwg.mxu0
      %v1338 = vadd.f32 %v1220, %v1308
      %v1339 = vadd.f32 %v1221, %v1311
      %v1340 = vadd.f32 %v1222, %v1316
      %v1341 = vadd.f32 %v1223, %v1319
      %v1342 = vadd.f32 %v1224, %v1324
      %v1343 = vadd.f32 %v1225, %v1327
      %v1344 = vadd.f32 %v1226, %v1332
      %v1345 = vadd.f32 %v1227, %v1335
      %s1346 = scalar_lea.vmem %s296, 8
      %v1347 = vld [vmem:[%s1346] sm:$0xf]
      %v1348 = vld [vmem:[%s1346 + $0x8] sm:$0xf]
      %v1349 = vld [vmem:[%s1346 + $0x10] sm:$0xf]
      %v1350 = vld [vmem:[%s1346 + $0x18] sm:$0xf]
      %v1351 = vld [vmem:[%s1346 + $0x20] sm:$0xf]
      %v1352 = vld [vmem:[%s1346 + $0x28] sm:$0xf]
      %v1353 = vld [vmem:[%s1346 + $0x30] sm:$0xf]
      %v1354 = vld [vmem:[%s1346 + $0x38] sm:$0xf]
      %v1355 = vld [vmem:[%s4 + $0x1c] sm:$0xf]
      %v1364 = vunpack.c.l.b16 %v1347
      %v1365 = vunpack.c.l.b16 %v1348
      %v1366 = vunpack.c.l.b16 %v1349
      %v1367 = vunpack.c.l.b16 %v1350
      %v1368 = vunpack.c.l.b16 %v1351
      %v1369 = vunpack.c.l.b16 %v1352
      %v1370 = vunpack.c.l.b16 %v1353
      %v1371 = vunpack.c.l.b16 %v1354
      %v1372 = vpack.c.b16 %v1365, %v1364
      %v1373 = vpack.c.b16 %v1367, %v1366
      %v1374 = vpack.c.b16 %v1369, %v1368
      %v1375 = vpack.c.b16 %v1371, %v1370
      %v1377 = vsel %vm351, %v1372, 0
      %v1380 = vsel %vm351, %v1373, 0
      %v1383 = vsel %vm351, %v1374, 0
      %v1386 = vsel %vm351, %v1375, 0
      %v1389 = vsel %vm364, %v1355, 0
      %1391 = vmatprep.subr.bf16.mxu0 0
      %1392 = vmatpush1.bf16.msra.mxu0 %v1389
      %1393 = vmatprep.subr.bf16.mxu0 0
      %1394 = vmatpush1.bf16.msra.mxu0 0
      %1395 = vmatprep.subr.bf16.mxu0 0
      %1396 = vmatpush1.bf16.msra.mxu0 0
      %1397 = vmatprep.subr.bf16.mxu0 0
      %1398 = vmatpush1.bf16.msra.mxu0 0
      %1399 = vmatprep.subr.bf16.mxu0 0
      %1400 = vmatpush1.bf16.msra.mxu0 0
      %1401 = vmatprep.subr.bf16.mxu0 0
      %1402 = vmatpush1.bf16.msra.mxu0 0
      %1403 = vmatprep.subr.bf16.mxu0 0
      %1404 = vmatpush1.bf16.msra.mxu0 0
      %1405 = vmatprep.subr.bf16.mxu0 0
      %1406 = vmatpush1.bf16.msra.mxu0 0
      %1407 = vmatprep.subr.bf16.mxu0 0
      %1408 = vmatpush1.bf16.msra.mxu0 0
      %1409 = vmatprep.subr.bf16.mxu0 0
      %1410 = vmatpush1.bf16.msra.mxu0 0
      %1411 = vmatprep.subr.bf16.mxu0 0
      %1412 = vmatpush1.bf16.msra.mxu0 0
      %1413 = vmatprep.subr.bf16.mxu0 0
      %1414 = vmatpush1.bf16.msra.mxu0 0
      %1415 = vmatprep.subr.bf16.mxu0 0
      %1416 = vmatpush1.bf16.msra.mxu0 0
      %1417 = vmatprep.subr.bf16.mxu0 0
      %1418 = vmatpush1.bf16.msra.mxu0 0
      %1419 = vmatprep.subr.bf16.mxu0 0
      %1420 = vmatpush1.bf16.msra.mxu0 0
      %1421 = vmatprep.subr.bf16.mxu0 0
      %1422 = vmatpush1.bf16.msra.mxu0 0
      %1423 = vmatprep.mubr.bf16.mxu0 0
      %1424 = vmatmul.mubr.bf16.gmra.mrb[0].mxu0 %v1377
      %v1425 = vpop.f32.mrb[0].mxu0
      %v1426 = vadd.f32 0.0, %v1425
      %v1427 = vpop.f32.mrb[0].mxu0
      %v1428 = vpop.f32.mrb[0].mxu0
      %v1429 = vadd.f32 0.0, %v1428
      %v1430 = vpop.f32.mrb[0].mxu0
      %1431 = vmatprep.mubr.bf16.mxu0 0
      %1432 = vmatmul.mubr.bf16.gmra.mrb[0].mxu0 %v1380
      %v1433 = vpop.f32.mrb[0].mxu0
      %v1434 = vadd.f32 0.0, %v1433
      %v1435 = vpop.f32.mrb[0].mxu0
      %v1436 = vpop.f32.mrb[0].mxu0
      %v1437 = vadd.f32 0.0, %v1436
      %v1438 = vpop.f32.mrb[0].mxu0
      %1439 = vmatprep.mubr.bf16.mxu0 0
      %1440 = vmatmul.mubr.bf16.gmra.mrb[0].mxu0 %v1383
      %v1441 = vpop.f32.mrb[0].mxu0
      %v1442 = vadd.f32 0.0, %v1441
      %v1443 = vpop.f32.mrb[0].mxu0
      %v1444 = vpop.f32.mrb[0].mxu0
      %v1445 = vadd.f32 0.0, %v1444
      %v1446 = vpop.f32.mrb[0].mxu0
      %1447 = vmatprep.mubr.bf16.mxu0 0
      %1448 = vmatmul.mubr.bf16.gmra.mrb[0].mxu0 %v1386
      %v1449 = vpop.f32.mrb[0].mxu0
      %v1450 = vadd.f32 0.0, %v1449
      %v1451 = vpop.f32.mrb[0].mxu0
      %v1452 = vpop.f32.mrb[0].mxu0
      %v1453 = vadd.f32 0.0, %v1452
      %v1454 = vpop.f32.mrb[0].mxu0
      %1455 = vdwg.mxu0
      %v1456 = vadd.f32 %v1338, %v1426
      %v1457 = vadd.f32 %v1339, %v1429
      %v1458 = vadd.f32 %v1340, %v1434
      %v1459 = vadd.f32 %v1341, %v1437
      %v1460 = vadd.f32 %v1342, %v1442
      %v1461 = vadd.f32 %v1343, %v1445
      %v1462 = vadd.f32 %v1344, %v1450
      %v1463 = vadd.f32 %v1345, %v1453
      %v1464 = vld [vmem:[%s1228] sm:$0xf]
      %v1465 = vld [vmem:[%s1228 + $0x4] sm:$0x1]
      %v1466 = vld [vmem:[%s1228 + $0x8] sm:$0xf]
      %v1467 = vld [vmem:[%s1228 + $0xc] sm:$0x1]
      %v1468 = vld [vmem:[%s1228 + $0x10] sm:$0xf]
      %v1469 = vld [vmem:[%s1228 + $0x14] sm:$0x1]
      %v1470 = vld [vmem:[%s1228 + $0x18] sm:$0xf]
      %v1471 = vld [vmem:[%s1228 + $0x1c] sm:$0x1]
      %v1472 = vld [vmem:[%s1228 + $0x20] sm:$0xf]
      %v1473 = vld [vmem:[%s1228 + $0x24] sm:$0x1]
      %v1474 = vld [vmem:[%s1228 + $0x28] sm:$0xf]
      %v1475 = vld [vmem:[%s1228 + $0x2c] sm:$0x1]
      %v1476 = vld [vmem:[%s1228 + $0x30] sm:$0xf]
      %v1477 = vld [vmem:[%s1228 + $0x34] sm:$0x1]
      %v1478 = vld [vmem:[%s1228 + $0x38] sm:$0xf]
      %v1479 = vld [vmem:[%s1228 + $0x3c] sm:$0x1]
      %v1481 = vshrl.u32 %v1464, 16
      %v1483 = vrot.slane %v1481, 4
      %v1484 = vshll.u32 %v1464, 16
      %v1486 = vrot.slane %v1484, 5
      %v1487 = vor.u32 %v1483, %v1486
      %v1488 = vrot.slane %v1487, 4
      %v1490 = vshll.u32 %v1465, 16
      %v1492 = vrot.slane %v1490, 5
      %v1493 = vsel %vm551, %v1488, %v1492
      %v1495 = vshrl.u32 %v1466, 16
      %v1497 = vrot.slane %v1495, 4
      %v1498 = vshll.u32 %v1466, 16
      %v1500 = vrot.slane %v1498, 5
      %v1501 = vor.u32 %v1497, %v1500
      %v1502 = vrot.slane %v1501, 4
      %v1504 = vshll.u32 %v1467, 16
      %v1506 = vrot.slane %v1504, 5
      %v1507 = vsel %vm551, %v1502, %v1506
      %v1509 = vshrl.u32 %v1468, 16
      %v1511 = vrot.slane %v1509, 4
      %v1512 = vshll.u32 %v1468, 16
      %v1514 = vrot.slane %v1512, 5
      %v1515 = vor.u32 %v1511, %v1514
      %v1516 = vrot.slane %v1515, 4
      %v1518 = vshll.u32 %v1469, 16
      %v1520 = vrot.slane %v1518, 5
      %v1521 = vsel %vm551, %v1516, %v1520
      %v1523 = vshrl.u32 %v1470, 16
      %v1525 = vrot.slane %v1523, 4
      %v1526 = vshll.u32 %v1470, 16
      %v1528 = vrot.slane %v1526, 5
      %v1529 = vor.u32 %v1525, %v1528
      %v1530 = vrot.slane %v1529, 4
      %v1532 = vshll.u32 %v1471, 16
      %v1534 = vrot.slane %v1532, 5
      %v1535 = vsel %vm551, %v1530, %v1534
      %v1537 = vshrl.u32 %v1472, 16
      %v1539 = vrot.slane %v1537, 4
      %v1540 = vshll.u32 %v1472, 16
      %v1542 = vrot.slane %v1540, 5
      %v1543 = vor.u32 %v1539, %v1542
      %v1544 = vrot.slane %v1543, 4
      %v1546 = vshll.u32 %v1473, 16
      %v1548 = vrot.slane %v1546, 5
      %v1549 = vsel %vm551, %v1544, %v1548
      %v1551 = vshrl.u32 %v1474, 16
      %v1553 = vrot.slane %v1551, 4
      %v1554 = vshll.u32 %v1474, 16
      %v1556 = vrot.slane %v1554, 5
      %v1557 = vor.u32 %v1553, %v1556
      %v1558 = vrot.slane %v1557, 4
      %v1560 = vshll.u32 %v1475, 16
      %v1562 = vrot.slane %v1560, 5
      %v1563 = vsel %vm551, %v1558, %v1562
      %v1565 = vshrl.u32 %v1476, 16
      %v1567 = vrot.slane %v1565, 4
      %v1568 = vshll.u32 %v1476, 16
      %v1570 = vrot.slane %v1568, 5
      %v1571 = vor.u32 %v1567, %v1570
      %v1572 = vrot.slane %v1571, 4
      %v1574 = vshll.u32 %v1477, 16
      %v1576 = vrot.slane %v1574, 5
      %v1577 = vsel %vm551, %v1572, %v1576
      %v1579 = vshrl.u32 %v1478, 16
      %v1581 = vrot.slane %v1579, 4
      %v1582 = vshll.u32 %v1478, 16
      %v1584 = vrot.slane %v1582, 5
      %v1585 = vor.u32 %v1581, %v1584
      %v1586 = vrot.slane %v1585, 4
      %v1588 = vshll.u32 %v1479, 16
      %v1590 = vrot.slane %v1588, 5
      %v1591 = vsel %vm551, %v1586, %v1590
      %v1592 = vld [vmem:[%s4 + $0x20] sm:$0xf]
      %v1593 = vunpack.c.l.b16 %v1493
      %v1594 = vunpack.c.l.b16 %v1507
      %v1595 = vunpack.c.l.b16 %v1521
      %v1596 = vunpack.c.l.b16 %v1535
      %v1597 = vunpack.c.l.b16 %v1549
      %v1598 = vunpack.c.l.b16 %v1563
      %v1599 = vunpack.c.l.b16 %v1577
      %v1600 = vunpack.c.l.b16 %v1591
      %v1601 = vpack.c.b16 %v1594, %v1593
      %v1602 = vpack.c.b16 %v1596, %v1595
      %v1603 = vpack.c.b16 %v1598, %v1597
      %v1604 = vpack.c.b16 %v1600, %v1599
      %v1606 = vsel %vm351, %v1601, 0
      %v1609 = vsel %vm351, %v1602, 0
      %v1612 = vsel %vm351, %v1603, 0
      %v1615 = vsel %vm351, %v1604, 0
      %v1618 = vsel %vm364, %v1592, 0
      %1620 = vmatprep.subr.bf16.mxu0 0
      %1621 = vmatpush1.bf16.msra.mxu0 %v1618
      %1622 = vmatprep.subr.bf16.mxu0 0
      %1623 = vmatpush1.bf16.msra.mxu0 0
      %1624 = vmatprep.subr.bf16.mxu0 0
      %1625 = vmatpush1.bf16.msra.mxu0 0
      %1626 = vmatprep.subr.bf16.mxu0 0
      %1627 = vmatpush1.bf16.msra.mxu0 0
      %1628 = vmatprep.subr.bf16.mxu0 0
      %1629 = vmatpush1.bf16.msra.mxu0 0
      %1630 = vmatprep.subr.bf16.mxu0 0
      %1631 = vmatpush1.bf16.msra.mxu0 0
      %1632 = vmatprep.subr.bf16.mxu0 0
      %1633 = vmatpush1.bf16.msra.mxu0 0
      %1634 = vmatprep.subr.bf16.mxu0 0
      %1635 = vmatpush1.bf16.msra.mxu0 0
      %1636 = vmatprep.subr.bf16.mxu0 0
      %1637 = vmatpush1.bf16.msra.mxu0 0
      %1638 = vmatprep.subr.bf16.mxu0 0
      %1639 = vmatpush1.bf16.msra.mxu0 0
      %1640 = vmatprep.subr.bf16.mxu0 0
      %1641 = vmatpush1.bf16.msra.mxu0 0
      %1642 = vmatprep.subr.bf16.mxu0 0
      %1643 = vmatpush1.bf16.msra.mxu0 0
      %1644 = vmatprep.subr.bf16.mxu0 0
      %1645 = vmatpush1.bf16.msra.mxu0 0
      %1646 = vmatprep.subr.bf16.mxu0 0
      %1647 = vmatpush1.bf16.msra.mxu0 0
      %1648 = vmatprep.subr.bf16.mxu0 0
      %1649 = vmatpush1.bf16.msra.mxu0 0
      %1650 = vmatprep.subr.bf16.mxu0 0
      %1651 = vmatpush1.bf16.msra.mxu0 0
      %1652 = vmatprep.mubr.bf16.mxu0 0
      %1653 = vmatmul.mubr.bf16.gmra.mrb[0].mxu0 %v1606
      %v1654 = vpop.f32.mrb[0].mxu0
      %v1655 = vadd.f32 0.0, %v1654
      %v1656 = vpop.f32.mrb[0].mxu0
      %v1657 = vpop.f32.mrb[0].mxu0
      %v1658 = vadd.f32 0.0, %v1657
      %v1659 = vpop.f32.mrb[0].mxu0
      %1660 = vmatprep.mubr.bf16.mxu0 0
      %1661 = vmatmul.mubr.bf16.gmra.mrb[0].mxu0 %v1609
      %v1662 = vpop.f32.mrb[0].mxu0
      %v1663 = vadd.f32 0.0, %v1662
      %v1664 = vpop.f32.mrb[0].mxu0
      %v1665 = vpop.f32.mrb[0].mxu0
      %v1666 = vadd.f32 0.0, %v1665
      %v1667 = vpop.f32.mrb[0].mxu0
      %1668 = vmatprep.mubr.bf16.mxu0 0
      %1669 = vmatmul.mubr.bf16.gmra.mrb[0].mxu0 %v1612
      %v1670 = vpop.f32.mrb[0].mxu0
      %v1671 = vadd.f32 0.0, %v1670
      %v1672 = vpop.f32.mrb[0].mxu0
      %v1673 = vpop.f32.mrb[0].mxu0
      %v1674 = vadd.f32 0.0, %v1673
      %v1675 = vpop.f32.mrb[0].mxu0
      %1676 = vmatprep.mubr.bf16.mxu0 0
      %1677 = vmatmul.mubr.bf16.gmra.mrb[0].mxu0 %v1615
      %v1678 = vpop.f32.mrb[0].mxu0
      %v1679 = vadd.f32 0.0, %v1678
      %v1680 = vpop.f32.mrb[0].mxu0
      %v1681 = vpop.f32.mrb[0].mxu0
      %v1682 = vadd.f32 0.0, %v1681
      %v1683 = vpop.f32.mrb[0].mxu0
      %1684 = vdwg.mxu0
      %v1685 = vadd.f32 %v1456, %v1655
      %v1686 = vadd.f32 %v1457, %v1658
      %v1687 = vadd.f32 %v1458, %v1663
      %v1688 = vadd.f32 %v1459, %v1666
      %v1689 = vadd.f32 %v1460, %v1671
      %v1690 = vadd.f32 %v1461, %v1674
      %v1691 = vadd.f32 %v1462, %v1679
      %v1692 = vadd.f32 %v1463, %v1682
      %v1693 = vld [vmem:[%s5] sm:$0x1]
      %v1695 = vlaneseq
      %v1696 = vshrl.u32 %v1695, 7
      %v1697 = vsub.s32 0, %v1696
      %v1698 = vrot.slane %v1693, %v1697
      %v1700 = vadd.f32 %v1685, %v1698
      %v1701 = vadd.f32 %v1686, %v1698
      %v1702 = vadd.f32 %v1687, %v1698
      %v1703 = vadd.f32 %v1688, %v1698
      %v1704 = vadd.f32 %v1689, %v1698
      %v1705 = vadd.f32 %v1690, %v1698
      %v1706 = vadd.f32 %v1691, %v1698
      %v1707 = vadd.f32 %v1692, %v1698
      %v1708 = vmax.f32 %v1700, 0.0
      %v1709 = vmax.f32 %v1701, 0.0
      %v1710 = vmax.f32 %v1702, 0.0
      %v1711 = vmax.f32 %v1703, 0.0
      %v1712 = vmax.f32 %v1704, 0.0
      %v1713 = vmax.f32 %v1705, 0.0
      %v1714 = vmax.f32 %v1706, 0.0
      %v1715 = vmax.f32 %v1707, 0.0
      %v1716 = vpack.c.bf16 %v1709, %v1708
      %v1717 = vpack.c.bf16 %v1711, %v1710
      %v1718 = vpack.c.bf16 %v1713, %v1712
      %v1719 = vpack.c.bf16 %v1715, %v1714
      %v1724 = vunpack.c.l.b16 %v1716
      %v1725 = vunpack.c.h.b16 %v1716
      %v1726 = vunpack.c.l.b16 %v1717
      %v1727 = vunpack.c.h.b16 %v1717
      %v1728 = vunpack.c.l.b16 %v1718
      %v1729 = vunpack.c.h.b16 %v1718
      %v1730 = vunpack.c.l.b16 %v1719
      %v1731 = vunpack.c.h.b16 %v1719
      %v1732 = vpack.c.b16 %v1724, %v1724
      %v1733 = vpack.c.b16 %v1725, %v1725
      %v1734 = vpack.c.b16 %v1726, %v1726
      %v1735 = vpack.c.b16 %v1727, %v1727
      %v1736 = vpack.c.b16 %v1728, %v1728
      %v1737 = vpack.c.b16 %v1729, %v1729
      %v1738 = vpack.c.b16 %v1730, %v1730
      %v1739 = vpack.c.b16 %v1731, %v1731
      %vm1748 = vcmask 60416
      %1749 = vst.msk [vmem:[%s311] sm:$0xf] %vm1748, %v1732
      %1750 = vst.msk [vmem:[%s311 + $0x4] sm:$0xf] %vm1748, %v1733
      %1751 = vst.msk [vmem:[%s311 + $0x8] sm:$0xf] %vm1748, %v1734
      %1752 = vst.msk [vmem:[%s311 + $0xc] sm:$0xf] %vm1748, %v1735
      %1753 = vst.msk [vmem:[%s311 + $0x10] sm:$0xf] %vm1748, %v1736
      %1754 = vst.msk [vmem:[%s311 + $0x14] sm:$0xf] %vm1748, %v1737
      %1755 = vst.msk [vmem:[%s311 + $0x18] sm:$0xf] %vm1748, %v1738
      %1756 = vst.msk [vmem:[%s311 + $0x1c] sm:$0xf] %vm1748, %v1739
      %p1757 = scmp.lt.s32.totalorder %s17, 1
      %s1758 = scalar_select %p1757, %s17, 1
      %s1759 = smul.addr %s1758, 8
      %s1760 = smul.addr %s1759, 4
      %s1761 = scalar_lea.vmem %s6, %s1760
      // Predicated region
      $region45: #{bottleneck_forward.4} parent=43 // pred_check
        %p1762 = pneg %p181
      $region46: #{bottleneck_forward.4} parent=43 // pred_check_branch
        %1764 = sbr.rel (%p1762) target = $region48
      $region47: #{bottleneck_forward.4} parent=43 // pred_region
        _
      $region48: #{bottleneck_forward.4} parent=43 // pred_fallthru
        _
    $region44: #{bottleneck_forward.4} parent=5 // pred_fallthru
      _
    %p1765 = scmp.le.s32.totalorder 2, %s12
    // Predicated region
    $region49: #{bottleneck_forward.4} parent=5 // pred_check
      %p1766 = pneg %p1765
    $region50: #{bottleneck_forward.4} parent=5 // pred_check_branch
      %1768 = sbr.rel (%p1766) target = $region52
    $region51: #{bottleneck_forward.4} parent=5 // pred_region
      %s1769 = ssub.s32 %s12, 2
      // Predicated region
      $region53: #{bottleneck_forward.4} parent=51 // pred_check
        %p1770 = pneg %p187
      $region54: #{bottleneck_forward.4} parent=51 // pred_check_branch
        %1772 = sbr.rel (%p1770) target = $region56
      $region55: #{bottleneck_forward.4} parent=51 // pred_region
        %p1773 = scmp.lt.s32.totalorder %s18, 1
        %s1774 = scalar_select %p1773, %s18, 1
        %s1775 = smul.addr %s1774, 8
        %s1776 = smul.addr %s1775, 4
        %s1777 = scalar_lea.vmem %s6, %s1776
      $region56: #{bottleneck_forward.4} parent=51 // pred_fallthru
        _
    $region52: #{bottleneck_forward.4} parent=5 // pred_fallthru
      _
  $region6: #{bottleneck_forward.4} parent=0 // loop_footer
    %s16 = sadd.s32 1, %s12
  $region7: #{bottleneck_forward.4} parent=0 // loop_footer_branch
    %11 = sbr.rel target = $region3
  $region8: #{bottleneck_forward.4} parent=0 // loop_exit
    _

</llo_original>
